<compile_context>
chip_gen: v7x
topology: tpu7x:2x2x1
jax: 0.10.0
libtpu: 0.0.40
codegen_flags: <defaults>
</compile_context>

<pallas_src>
import functools

import jax
import jax.numpy as jnp
from jax.experimental import pallas as pl
from jax.experimental.pallas import tpu as pltpu

LN_EPS = 1e-5
NEG_INF = -1e9


def _pick_tile(dim, target):
    """Largest divisor of `dim` that is <= target (never returns the full dim unless it fits).

    TODO(synk): for production shapes with awkward divisors, switch to pl.cdiv grids with a
    masked tail block instead of shrinking the tile.
    """
    t = min(dim, target)
    while dim % t != 0:
        t -= 1
    return t


# ----------------------------- LayerNorm (row-tiled, final norm) -----------------------------

def _layernorm_kernel(x_ref, g_ref, b_ref, o_ref):
    x = x_ref[...].astype(jnp.float32)
    mean = jnp.mean(x, axis=-1, keepdims=True)
    var = jnp.mean(jnp.square(x - mean), axis=-1, keepdims=True)
    xn = (x - mean) * jax.lax.rsqrt(var + LN_EPS)
    o_ref[...] = (xn * g_ref[...] + b_ref[...]).astype(o_ref.dtype)


def layernorm(x2d, gamma, beta, *, out_dtype=jnp.float32, tm_target=256):
    M, D = x2d.shape
    tm = _pick_tile(M, tm_target)
    return pl.pallas_call(
        _layernorm_kernel,
        out_shape=jax.ShapeDtypeStruct((M, D), out_dtype),
        grid=(M // tm,),
        in_specs=[pl.BlockSpec((tm, D), lambda i: (i, 0)),
                  pl.BlockSpec((1, D), lambda i: (0, 0)),
                  pl.BlockSpec((1, D), lambda i: (0, 0))],
        out_specs=pl.BlockSpec((tm, D), lambda i: (i, 0)),
        compiler_params=pltpu.CompilerParams(dimension_semantics=("parallel",)),
    )(x2d, gamma.reshape(1, D), beta.reshape(1, D))


# ------------------ fused LayerNorm + Linear (LN1+QKV, LN2+Q) ------------------
# The normalized (and bf16-cast) row block is computed once at j==0, cached in VMEM scratch,
# and reused for every N tile.

def _ln_linear_kernel(x_ref, g_ref, b_ref, w_ref, bias_ref, o_ref, xn_ref):
    @pl.when(pl.program_id(1) == 0)
    def _():
        x = x_ref[...].astype(jnp.float32)
        mean = jnp.mean(x, axis=-1, keepdims=True)
        var = jnp.mean(jnp.square(x - mean), axis=-1, keepdims=True)
        xn = (x - mean) * jax.lax.rsqrt(var + LN_EPS)
        xn_ref[...] = (xn * g_ref[...] + b_ref[...]).astype(xn_ref.dtype)

    y = jnp.dot(xn_ref[...], w_ref[...], preferred_element_type=jnp.float32)
    o_ref[...] = (y + bias_ref[...]).astype(o_ref.dtype)


def ln_linear(x2d, gamma, beta, w, b, *, tm_target=256, tn_target=256):
    M, D = x2d.shape
    N = w.shape[1]
    tm = _pick_tile(M, tm_target)
    tn = _pick_tile(N, tn_target)
    return pl.pallas_call(
        _ln_linear_kernel,
        out_shape=jax.ShapeDtypeStruct((M, N), jnp.bfloat16),
        grid=(M // tm, N // tn),
        in_specs=[pl.BlockSpec((tm, D), lambda i, j: (i, 0)),
                  pl.BlockSpec((1, D), lambda i, j: (0, 0)),
                  pl.BlockSpec((1, D), lambda i, j: (0, 0)),
                  pl.BlockSpec((D, tn), lambda i, j: (0, j)),
                  pl.BlockSpec((1, tn), lambda i, j: (0, j))],
        out_specs=pl.BlockSpec((tm, tn), lambda i, j: (i, j)),
        scratch_shapes=[pltpu.VMEM((tm, D), jnp.bfloat16)],
        compiler_params=pltpu.CompilerParams(
            # scratch (xn) is carried across the N axis -> arbitrary
            dimension_semantics=("parallel", "arbitrary")),
    )(x2d, gamma.reshape(1, D), beta.reshape(1, D), w, b.reshape(1, N))


# ------------- tiled Linear (K-accumulated, optional fused residual) -------------
# Inputs are already bf16 (activation path is bf16 end-to-end); accumulation is f32 in VMEM.

def _linear_kernel(x_ref, w_ref, bias_ref, o_ref, acc_ref, *, activation):
    @pl.when(pl.program_id(2) == 0)
    def _():
        acc_ref[...] = jnp.zeros_like(acc_ref)

    acc_ref[...] += jnp.dot(x_ref[...], w_ref[...], preferred_element_type=jnp.float32)

    @pl.when(pl.program_id(2) == pl.num_programs(2) - 1)
    def _():
        y = acc_ref[...] + bias_ref[...]
        if activation == "relu":
            y = jnp.maximum(y, 0.0)
        o_ref[...] = y.astype(o_ref.dtype)


def _linear_residual_kernel(x_ref, w_ref, bias_ref, res_ref, o_ref, acc_ref):
    @pl.when(pl.program_id(2) == 0)
    def _():
        acc_ref[...] = jnp.zeros_like(acc_ref)

    acc_ref[...] += jnp.dot(x_ref[...], w_ref[...], preferred_element_type=jnp.float32)

    @pl.when(pl.program_id(2) == pl.num_programs(2) - 1)
    def _():
        y = acc_ref[...] + bias_ref[...] + res_ref[...].astype(jnp.float32)
        o_ref[...] = y.astype(o_ref.dtype)


def linear(x2d, w, b, *, residual=None, activation=None,
           tm_target=256, tn_target=256, tk_target=512):
    M, K = x2d.shape
    N = w.shape[1]
    tm = _pick_tile(M, tm_target)
    tn = _pick_tile(N, tn_target)
    tk = _pick_tile(K, tk_target)
    # TODO(synk): for M >> N put the N axis outermost so weight blocks are reused across row
    # tiles; if profiling shows exposed K-axis DMA, add pipeline_mode=pl.Buffered(3) on w.
    in_specs = [pl.BlockSpec((tm, tk), lambda i, j, k: (i, k)),
                pl.BlockSpec((tk, tn), lambda i, j, k: (k, j)),
                pl.BlockSpec((1, tn), lambda i, j, k: (0, j))]
    args = [x2d, w, b.reshape(1, N)]
    if residual is not None:
        in_specs.append(pl.BlockSpec((tm, tn), lambda i, j, k: (i, j)))
        args.append(residual)
        kern = _linear_residual_kernel
    else:
        kern = functools.partial(_linear_kernel, activation=activation)
    return pl.pallas_call(
        kern,
        out_shape=jax.ShapeDtypeStruct((M, N), jnp.bfloat16),
        grid=(M // tm, N // tn, K // tk),
        in_specs=in_specs,
        out_specs=pl.BlockSpec((tm, tn), lambda i, j, k: (i, j)),
        scratch_shapes=[pltpu.VMEM((tm, tn), jnp.float32)],
        compiler_params=pltpu.CompilerParams(
            dimension_semantics=("parallel", "parallel", "arbitrary")),
    )(*args)


# ------------------- fused LN3 + FFN (w1 / ReLU / w2) + residual -------------------
# The [M, d_ff] intermediate never touches HBM: each ReLU(xn @ w1_j) tile is contracted
# immediately against the matching w2_j slice into a resident (tm, D) f32 accumulator.

def _ffn_kernel(x_ref, g_ref, b_ref, w1_ref, b1_ref, w2_ref, b2_ref,
                o_ref, acc_ref, xn_ref):
    j = pl.program_id(1)

    @pl.when(j == 0)
    def _():
        x = x_ref[...].astype(jnp.float32)
        mean = jnp.mean(x, axis=-1, keepdims=True)
        var = jnp.mean(jnp.square(x - mean), axis=-1, keepdims=True)
        xn = (x - mean) * jax.lax.rsqrt(var + LN_EPS)
        xn_ref[...] = (xn * g_ref[...] + b_ref[...]).astype(xn_ref.dtype)
        acc_ref[...] = jnp.zeros_like(acc_ref)

    h = jnp.dot(xn_ref[...], w1_ref[...], preferred_element_type=jnp.float32)
    h = jnp.maximum(h + b1_ref[...], 0.0)
    acc_ref[...] += jnp.dot(h.astype(jnp.bfloat16), w2_ref[...],
                            preferred_element_type=jnp.float32)

    @pl.when(j == pl.num_programs(1) - 1)
    def _():
        y = x_ref[...].astype(jnp.float32) + acc_ref[...] + b2_ref[...]
        o_ref[...] = y.astype(o_ref.dtype)


def ffn_block(x2d, gamma, beta, w1, b1, w2, b2, *, tm_target=256, tff_target=256):
    # tff_target=256 keeps the double-buffered (D,tff)+(tff,D) weight blocks + (tm,D) blocks
    # inside v7x's 64 MiB VMEM at realistic d_model; enlarge on v5e/v6e if profiling warrants.
    M, D = x2d.shape
    FF = w1.shape[1]
    tm = _pick_tile(M, tm_target)
    tff = _pick_tile(FF, tff_target)
    return pl.pallas_call(
        _ffn_kernel,
        out_shape=jax.ShapeDtypeStruct((M, D), jnp.bfloat16),
        grid=(M // tm, FF // tff),
        in_specs=[pl.BlockSpec((tm, D), lambda i, j: (i, 0)),
                  pl.BlockSpec((1, D), lambda i, j: (0, 0)),
                  pl.BlockSpec((1, D), lambda i, j: (0, 0)),
                  pl.BlockSpec((D, tff), lambda i, j: (0, j)),
                  pl.BlockSpec((1, tff), lambda i, j: (0, j)),
                  pl.BlockSpec((tff, D), lambda i, j: (j, 0)),
                  pl.BlockSpec((1, D), lambda i, j: (0, 0))],
        out_specs=pl.BlockSpec((tm, D), lambda i, j: (i, 0)),
        scratch_shapes=[pltpu.VMEM((tm, D), jnp.float32),
                        pltpu.VMEM((tm, D), jnp.bfloat16)],
        compiler_params=pltpu.CompilerParams(
            dimension_semantics=("parallel", "arbitrary")),
    )(x2d, gamma.reshape(1, D), beta.reshape(1, D),
      w1, b1.reshape(1, FF), w2, b2.reshape(1, D))


# ----------------------------- attention kernel -----------------------------
# Head-major [B, H, T, dh] inputs, grid over (B, H): lane-dense loads/stores, no per-head
# lane slicing, no masked partial stores, and B*H parallel grid points for megacore.
# The keep mask is built in-kernel from the tiny [B,1,Tk] key-padding row + an iota causal
# triangle (no O(B*T*T) f32 mask is ever written to HBM).
# TODO(synk): for long sequences replace with a flash-style (B*H, Tq-tile, Tk-tile) grid with
#             online-softmax scratch, and process >=2 heads per invocation so the PV matmul's
#             output lane width is >=256 on v6e/v7x.

def _attn_kernel(q_ref, k_ref, v_ref, km_ref, o_ref, *, scale, causal):
    q = q_ref[0, 0] * scale                                   # [Tq, dh] bf16 (scale folded here)
    k = k_ref[0, 0]                                           # [Tk, dh] bf16
    v = v_ref[0, 0]                                           # [Tk, dh] bf16
    # contract last dims directly (no XLU transpose of k)
    s = jax.lax.dot_general(q, k, (((1,), (1,)), ((), ())),
                            preferred_element_type=jnp.float32)  # [Tq, Tk] f32
    keep = jnp.broadcast_to(km_ref[0] > 0, s.shape)           # [Tq, Tk] from [1, Tk] row
    if causal:
        qi = jax.lax.broadcasted_iota(jnp.int32, s.shape, 0)
        ki = jax.lax.broadcasted_iota(jnp.int32, s.shape, 1)
        keep = jnp.logical_and(keep, ki <= qi)
    s = jnp.where(keep, s, NEG_INF)
    m = jnp.max(s, axis=-1, keepdims=True)
    p = jnp.exp(s - m)
    l = jnp.sum(p, axis=-1, keepdims=True)
    p = p * pl.reciprocal(l, approx=True)                     # EUP, frees the VALU
    o = jnp.dot(p.astype(jnp.bfloat16), v, preferred_element_type=jnp.float32)
    o_ref[0, 0] = o.astype(o_ref.dtype)


def attention(q, k, v, key_mask, *, causal):
    # q: [B, H, Tq, dh], k/v: [B, H, Tk, dh], key_mask: [B, 1, Tk] int32 (1 = attend)
    B, H, Tq, dh = q.shape
    Tk = k.shape[2]
    kern = functools.partial(_attn_kernel, scale=dh ** -0.5, causal=causal)
    return pl.pallas_call(
        kern,
        out_shape=jax.ShapeDtypeStruct((B, H, Tq, dh), jnp.bfloat16),
        grid=(B, H),
        in_specs=[pl.BlockSpec((1, 1, Tq, dh), lambda b, h: (b, h, 0, 0)),
                  pl.BlockSpec((1, 1, Tk, dh), lambda b, h: (b, h, 0, 0)),
                  pl.BlockSpec((1, 1, Tk, dh), lambda b, h: (b, h, 0, 0)),
                  pl.BlockSpec((1, 1, Tk), lambda b, h: (b, 0, 0))],
        out_specs=pl.BlockSpec((1, 1, Tq, dh), lambda b, h: (b, h, 0, 0)),
        compiler_params=pltpu.CompilerParams(
            dimension_semantics=("parallel", "parallel")),
    )(q, k, v, key_mask)


# ----------------------------- model glue -----------------------------

def decoder_layer(x2d, enc2d, self_keymask, cross_keymask, p, B, T, S, D, H):
    dh = D // H

    # sublayer 0: masked self-attention (LN fused into fused-QKV matmul; residual fused into O-proj)
    sa = p["self_attn"]
    qkv = ln_linear(x2d, p["ln1_g"], p["ln1_b"], sa["wqkv"], sa["bqkv"])       # [B*T, 3D] bf16
    qkv = qkv.reshape(B, T, 3, H, dh).transpose(2, 0, 3, 1, 4)                 # [3, B, H, T, dh]
    attn = attention(qkv[0], qkv[1], qkv[2], self_keymask, causal=True)        # [B, H, T, dh]
    attn2d = attn.transpose(0, 2, 1, 3).reshape(B * T, D)
    x2d = linear(attn2d, sa["wo"], sa["bo"], residual=x2d)

    # sublayer 1: cross-attention over encoder output
    ca = p["cross_attn"]
    q = ln_linear(x2d, p["ln2_g"], p["ln2_b"], ca["wq"], ca["bq"])             # [B*T, D] bf16
    qh = q.reshape(B, T, H, dh).transpose(0, 2, 1, 3)                          # [B, H, T, dh]
    kv = linear(enc2d, ca["wkv"], ca["bkv"])                                   # [B*S, 2D] bf16
    kvh = kv.reshape(B, S, 2, H, dh).transpose(2, 0, 3, 1, 4)                  # [2, B, H, S, dh]
    attn = attention(qh, kvh[0], kvh[1], cross_keymask, causal=False)
    attn2d = attn.transpose(0, 2, 1, 3).reshape(B * T, D)
    x2d = linear(attn2d, ca["wo"], ca["bo"], residual=x2d)

    # sublayer 2: FFN (LN3 + w1/ReLU/w2 + residual in one kernel; d_ff intermediate stays in VMEM)
    x2d = ffn_block(x2d, p["ln3_g"], p["ln3_b"], p["w1"], p["b1"], p["w2"], p["b2"])
    return x2d


def decoder_forward(x, encoder_out, src_mask_padding, tgt_mask_padding,
                    tgt_mask_causal, params, H):
    # masks: boolean, True = attend
    #   src_mask_padding [B, 1, S], tgt_mask_padding [B, 1, T], tgt_mask_causal [1, T, T]
    # Only the tiny key-padding rows go to the kernels; the causal triangle is rebuilt in-kernel
    # from iota (tgt_mask_causal is assumed to be the standard lower-triangular mask).
    B, T, D = x.shape
    S = encoder_out.shape[1]
    del tgt_mask_causal  # regenerated in-kernel (lower-triangular)
    self_keymask = tgt_mask_padding.astype(jnp.int32)     # [B, 1, T]
    cross_keymask = src_mask_padding.astype(jnp.int32)    # [B, 1, S]

    # bf16 activation path end-to-end (f32 accumulators / LN stats / softmax in-kernel).
    x2d = x.reshape(B * T, D).astype(jnp.bfloat16)
    enc2d = encoder_out.reshape(B * S, D).astype(jnp.bfloat16)

    for lp in params["layers"]:
        x2d = decoder_layer(x2d, enc2d, self_keymask, cross_keymask, lp, B, T, S, D, H)
    out2d = layernorm(x2d, params["norm_g"], params["norm_b"], out_dtype=jnp.float32)
    return out2d.reshape(B, T, D)


# ----------------------------- parameter init -----------------------------

def init_params(key, n_layers, d_model, d_ff):
    wdtype = jnp.bfloat16   # weights in bf16; biases / LN params in f32

    def lin(kk, din, dout):
        w = (jax.random.normal(kk, (din, dout), jnp.float32) * (din ** -0.5)).astype(wdtype)
        return w, jnp.zeros((dout,), jnp.float32)

    def self_attn_params(k):
        k1, k2 = jax.random.split(k, 2)
        wqkv, bqkv = lin(k1, d_model, 3 * d_model)   # fused Q|K|V projection
        wo, bo = lin(k2, d_model, d_model)
        return dict(wqkv=wqkv, bqkv=bqkv, wo=wo, bo=bo)

    def cross_attn_params(k):
        k1, k2, k3 = jax.random.split(k, 3)
        wq, bq = lin(k1, d_model, d_model)
        wkv, bkv = lin(k2, d_model, 2 * d_model)     # fused K|V projection
        wo, bo = lin(k3, d_model, d_model)
        return dict(wq=wq, bq=bq, wkv=wkv, bkv=bkv, wo=wo, bo=bo)

    layers = []
    for i in range(n_layers):
        k = jax.random.fold_in(key, i)
        k1, k2, k3, k4 = jax.random.split(k, 4)
        w1, b1 = lin(k3, d_model, d_ff)
        w2, b2 = lin(k4, d_ff, d_model)
        layers.append(dict(
            self_attn=self_attn_params(k1),
            cross_attn=cross_attn_params(k2),
            w1=w1, b1=b1, w2=w2, b2=b2,
            ln1_g=jnp.ones((d_model,), jnp.float32), ln1_b=jnp.zeros((d_model,), jnp.float32),
            ln2_g=jnp.ones((d_model,), jnp.float32), ln2_b=jnp.zeros((d_model,), jnp.float32),
            ln3_g=jnp.ones((d_model,), jnp.float32), ln3_b=jnp.zeros((d_model,), jnp.float32),
        ))
    return dict(layers=layers,
                norm_g=jnp.ones((d_model,), jnp.float32),
                norm_b=jnp.zeros((d_model,), jnp.float32))


# ----------------------------- main -----------------------------

if __name__ == "__main__":
    B, T, S, D, H, FF, NLAYERS = 2, 8, 8, 32, 4, 64, 2

    key = jax.random.PRNGKey(0)
    kx, kenc, kp = jax.random.split(key, 3)

    x = jax.random.normal(kx, (B, T, D), jnp.float32)
    encoder_out = jax.random.normal(kenc, (B, S, D), jnp.float32)

    # padding masks: batch 0 fully valid; batch 1 has last 2 positions padded
    src_valid = jnp.array([[True] * S, [True] * (S - 2) + [False] * 2])
    tgt_valid = jnp.array([[True] * T, [True] * (T - 2) + [False] * 2])
    src_mask_padding = src_valid[:, None, :]                       # [B, 1, S]
    tgt_mask_padding = tgt_valid[:, None, :]                       # [B, 1, T]
    tgt_mask_causal = jnp.tril(jnp.ones((T, T), jnp.bool_))[None]  # [1, T, T]

    params = init_params(kp, NLAYERS, D, FF)

    fwd = jax.jit(decoder_forward, static_argnums=(6,))
    out = fwd(x, encoder_out, src_mask_padding, tgt_mask_padding,
              tgt_mask_causal, params, H)
    out = jax.block_until_ready(out)
    assert out.shape == (B, T, D)
    assert bool(jnp.all(jnp.isfinite(out)))
    print("KERNEL_OK")
</pallas_src>

<mosaic_0001>
module attributes {stable_mosaic.version = 11 : i64} {
  func.func @_ln_linear_kernel(%arg0: i32, %arg1: i32, %arg2: memref<16x32xbf16, #tpu.memory_space<vmem>>, %arg3: memref<1x32xf32, #tpu.memory_space<vmem>>, %arg4: memref<1x32xf32, #tpu.memory_space<vmem>>, %arg5: memref<32x96xbf16, #tpu.memory_space<vmem>>, %arg6: memref<1x96xf32, #tpu.memory_space<vmem>>, %arg7: memref<16x96xbf16, #tpu.memory_space<vmem>>, %arg8: memref<16x32xbf16, #tpu.memory_space<vmem>>) attributes {dimension_semantics = [#tpu.dimension_semantics<parallel>, #tpu.dimension_semantics<arbitrary>], iteration_bounds = array<i64: 1, 1>, scalar_prefetch = 0 : i64, scratch_operands = 1 : i64, tpu.core_type = #tpu.core_type<tc>, window_params = [{transform_indices = @transform_0, window_bounds = array<i64: 16, 32>}, {pipeline_mode = #tpu.pipeline_mode<synchronous>, transform_indices = @transform_1, window_bounds = array<i64: 1, 32>}, {pipeline_mode = #tpu.pipeline_mode<synchronous>, transform_indices = @transform_2, window_bounds = array<i64: 1, 32>}, {transform_indices = @transform_3, window_bounds = array<i64: 32, 96>}, {transform_indices = @transform_4, window_bounds = array<i64: 1, 96>}, {transform_indices = @transform_5, window_bounds = array<i64: 16, 96>}]} {
    %c0_i32 = arith.constant 0 : i32
    %0 = arith.cmpi eq, %arg1, %c0_i32 : i32
    %1 = arith.extui %0 : i1 to i32
    %c0_i32_0 = arith.constant 0 : i32
    %2 = arith.cmpi ne, %1, %c0_i32_0 : i32
    scf.if %2 {
      %c0_8 = arith.constant 0 : index
      %c0_9 = arith.constant 0 : index
      %11 = vector.load %arg2[%c0_8, %c0_9] : memref<16x32xbf16, #tpu.memory_space<vmem>>, vector<16x32xbf16>
      %12 = arith.extf %11 : vector<16x32xbf16> to vector<16x32xf32>
      %cst_10 = arith.constant dense<0.000000e+00> : vector<16xf32>
      %13 = vector.multi_reduction <add>, %12, %cst_10 [1] : vector<16x32xf32> to vector<16xf32>
      %14 = vector.shape_cast %13 : vector<16xf32> to vector<16x1xf32>
      %cst_11 = arith.constant 3.200000e+01 : f32
      %15 = vector.broadcast %cst_11 : f32 to vector<16x1xf32>
      %16 = arith.divf %14, %15 : vector<16x1xf32>
      %17 = vector.broadcast %16 : vector<16x1xf32> to vector<16x32xf32>
      %18 = arith.subf %12, %17 : vector<16x32xf32>
      %19 = arith.mulf %18, %18 : vector<16x32xf32>
      %cst_12 = arith.constant dense<0.000000e+00> : vector<16xf32>
      %20 = vector.multi_reduction <add>, %19, %cst_12 [1] : vector<16x32xf32> to vector<16xf32>
      %21 = vector.shape_cast %20 : vector<16xf32> to vector<16x1xf32>
      %cst_13 = arith.constant 3.200000e+01 : f32
      %22 = vector.broadcast %cst_13 : f32 to vector<16x1xf32>
      %23 = arith.divf %21, %22 : vector<16x1xf32>
      %24 = vector.broadcast %16 : vector<16x1xf32> to vector<16x32xf32>
      %25 = arith.subf %12, %24 : vector<16x32xf32>
      %cst_14 = arith.constant 9.99999974E-6 : f32
      %26 = vector.broadcast %cst_14 : f32 to vector<16x1xf32>
      %27 = arith.addf %23, %26 : vector<16x1xf32>
      %28 = math.rsqrt %27 : vector<16x1xf32>
      %29 = vector.broadcast %28 : vector<16x1xf32> to vector<16x32xf32>
      %30 = arith.mulf %25, %29 : vector<16x32xf32>
      %c0_15 = arith.constant 0 : index
      %c0_16 = arith.constant 0 : index
      %31 = vector.load %arg3[%c0_15, %c0_16] : memref<1x32xf32, #tpu.memory_space<vmem>>, vector<1x32xf32>
      %32 = vector.broadcast %31 : vector<1x32xf32> to vector<16x32xf32>
      %33 = arith.mulf %30, %32 : vector<16x32xf32>
      %c0_17 = arith.constant 0 : index
      %c0_18 = arith.constant 0 : index
      %34 = vector.load %arg4[%c0_17, %c0_18] : memref<1x32xf32, #tpu.memory_space<vmem>>, vector<1x32xf32>
      %35 = vector.broadcast %34 : vector<1x32xf32> to vector<16x32xf32>
      %36 = arith.addf %33, %35 : vector<16x32xf32>
      %37 = arith.truncf %36 : vector<16x32xf32> to vector<16x32xbf16>
      %c0_19 = arith.constant 0 : index
      %c0_20 = arith.constant 0 : index
      %38 = vector.load %arg8[%c0_19, %c0_20] : memref<16x32xbf16, #tpu.memory_space<vmem>>, vector<16x32xbf16>
      tpu.vector_store %arg8[%c0_19, %c0_20], %37 {strides = array<i32>} : memref<16x32xbf16, #tpu.memory_space<vmem>>, vector<16x32xbf16>,
    } else {
    }
    %c0 = arith.constant 0 : index
    %c0_1 = arith.constant 0 : index
    %3 = vector.load %arg8[%c0, %c0_1] : memref<16x32xbf16, #tpu.memory_space<vmem>>, vector<16x32xbf16>
    %c0_2 = arith.constant 0 : index
    %c0_3 = arith.constant 0 : index
    %4 = vector.load %arg5[%c0_2, %c0_3] : memref<32x96xbf16, #tpu.memory_space<vmem>>, vector<32x96xbf16>
    %cst = arith.constant dense<0.000000e+00> : vector<16x96xf32>
    %5 = tpu.matmul %3, %4, %cst {dimension_numbers = #tpu.dot_dimension_numbers<[1], [0], [0], [1], [0, 0, 1, 1], [], []>} : vector<16x32xbf16>, vector<32x96xbf16>, vector<16x96xf32> -> vector<16x96xf32>
    %c0_4 = arith.constant 0 : index
    %c0_5 = arith.constant 0 : index
    %6 = vector.load %arg6[%c0_4, %c0_5] : memref<1x96xf32, #tpu.memory_space<vmem>>, vector<1x96xf32>
    %7 = vector.broadcast %6 : vector<1x96xf32> to vector<16x96xf32>
    %8 = arith.addf %5, %7 : vector<16x96xf32>
    %9 = arith.truncf %8 : vector<16x96xf32> to vector<16x96xbf16>
    %c0_6 = arith.constant 0 : index
    %c0_7 = arith.constant 0 : index
    %10 = vector.load %arg7[%c0_6, %c0_7] : memref<16x96xbf16, #tpu.memory_space<vmem>>, vector<16x96xbf16>
    tpu.vector_store %arg7[%c0_6, %c0_7], %9 {strides = array<i32>} : memref<16x96xbf16, #tpu.memory_space<vmem>>, vector<16x96xbf16>,
    return
  }
  func.func @transform_0(%arg0: i32, %arg1: i32) -> (i32, i32) {
    %c0_i32 = arith.constant 0 : i32
    %c0_i32_0 = arith.constant 0 : i32
    return %arg0, %c0_i32 : i32, i32
  }
  func.func @transform_1(%arg0: i32, %arg1: i32) -> (i32, i32) {
    %c0_i32 = arith.constant 0 : i32
    %c0_i32_0 = arith.constant 0 : i32
    %c0_i32_1 = arith.constant 0 : i32
    return %c0_i32, %c0_i32_0 : i32, i32
  }
  func.func @transform_2(%arg0: i32, %arg1: i32) -> (i32, i32) {
    %c0_i32 = arith.constant 0 : i32
    %c0_i32_0 = arith.constant 0 : i32
    %c0_i32_1 = arith.constant 0 : i32
    return %c0_i32, %c0_i32_0 : i32, i32
  }
  func.func @transform_3(%arg0: i32, %arg1: i32) -> (i32, i32) {
    %c0_i32 = arith.constant 0 : i32
    %c0_i32_0 = arith.constant 0 : i32
    return %c0_i32, %arg1 : i32, i32
  }
  func.func @transform_4(%arg0: i32, %arg1: i32) -> (i32, i32) {
    %c0_i32 = arith.constant 0 : i32
    %c0_i32_0 = arith.constant 0 : i32
    return %c0_i32, %arg1 : i32, i32
  }
  func.func @transform_5(%arg0: i32, %arg1: i32) -> (i32, i32) {
    %c0_i32 = arith.constant 0 : i32
    return %arg0, %arg1 : i32, i32
  }
}

module attributes {stable_mosaic.version = 11 : i64} {
  func.func @_attn_kernel(%arg0: i32, %arg1: i32, %arg2: memref<1x1x8x8xbf16, #tpu.memory_space<vmem>>, %arg3: memref<1x1x8x8xbf16, #tpu.memory_space<vmem>>, %arg4: memref<1x1x8x8xbf16, #tpu.memory_space<vmem>>, %arg5: memref<1x1x8xi32, #tpu.memory_space<vmem>>, %arg6: memref<1x1x8x8xbf16, #tpu.memory_space<vmem>>) attributes {dimension_semantics = [#tpu.dimension_semantics<parallel>, #tpu.dimension_semantics<parallel>], iteration_bounds = array<i64: 2, 4>, scalar_prefetch = 0 : i64, scratch_operands = 0 : i64, tpu.core_type = #tpu.core_type<tc>, window_params = [{transform_indices = @transform_0, window_bounds = array<i64: 1, 1, 8, 8>}, {transform_indices = @transform_1, window_bounds = array<i64: 1, 1, 8, 8>}, {transform_indices = @transform_2, window_bounds = array<i64: 1, 1, 8, 8>}, {transform_indices = @transform_3, window_bounds = array<i64: 1, 1, 8>}, {transform_indices = @transform_4, window_bounds = array<i64: 1, 1, 8, 8>}]} {
    %c0 = arith.constant 0 : index
    %c0_0 = arith.constant 0 : index
    %c0_1 = arith.constant 0 : index
    %c0_2 = arith.constant 0 : index
    %0 = vector.load %arg2[%c0, %c0_0, %c0_1, %c0_2] : memref<1x1x8x8xbf16, #tpu.memory_space<vmem>>, vector<1x1x8x8xbf16>
    %1 = vector.shape_cast %0 : vector<1x1x8x8xbf16> to vector<8x8xbf16>
    %cst = arith.constant 3.535160e-01 : bf16
    %2 = vector.broadcast %cst : bf16 to vector<8x8xbf16>
    %3 = arith.mulf %1, %2 : vector<8x8xbf16>
    %c0_3 = arith.constant 0 : index
    %c0_4 = arith.constant 0 : index
    %c0_5 = arith.constant 0 : index
    %c0_6 = arith.constant 0 : index
    %4 = vector.load %arg3[%c0_3, %c0_4, %c0_5, %c0_6] : memref<1x1x8x8xbf16, #tpu.memory_space<vmem>>, vector<1x1x8x8xbf16>
    %5 = vector.shape_cast %4 : vector<1x1x8x8xbf16> to vector<8x8xbf16>
    %c0_7 = arith.constant 0 : index
    %c0_8 = arith.constant 0 : index
    %c0_9 = arith.constant 0 : index
    %c0_10 = arith.constant 0 : index
    %6 = vector.load %arg4[%c0_7, %c0_8, %c0_9, %c0_10] : memref<1x1x8x8xbf16, #tpu.memory_space<vmem>>, vector<1x1x8x8xbf16>
    %7 = vector.shape_cast %6 : vector<1x1x8x8xbf16> to vector<8x8xbf16>
    %cst_11 = arith.constant dense<0.000000e+00> : vector<8x8xf32>
    %8 = tpu.matmul %3, %5, %cst_11 {dimension_numbers = #tpu.dot_dimension_numbers<[1], [1], [0], [0], [0, 0, 1, 0], [], []>} : vector<8x8xbf16>, vector<8x8xbf16>, vector<8x8xf32> -> vector<8x8xf32>
    %c0_12 = arith.constant 0 : index
    %c0_13 = arith.constant 0 : index
    %c0_14 = arith.constant 0 : index
    %9 = vector.load %arg5[%c0_12, %c0_13, %c0_14] : memref<1x1x8xi32, #tpu.memory_space<vmem>>, vector<1x1x8xi32>
    %10 = vector.shape_cast %9 : vector<1x1x8xi32> to vector<1x8xi32>
    %c0_i32 = arith.constant 0 : i32
    %11 = vector.broadcast %c0_i32 : i32 to vector<1x8xi32>
    %12 = arith.cmpi sgt, %10, %11 : vector<1x8xi32>
    %13 = vector.shape_cast %12 : vector<1x8xi1> to vector<1x8xi1>
    %14 = vector.broadcast %13 : vector<1x8xi1> to vector<8x8xi1>
    %15 = tpu.iota {dimensions = array<i32: 0>} : vector<8x8xi32>
    %16 = tpu.iota {dimensions = array<i32: 1>} : vector<8x8xi32>
    %17 = arith.cmpi sle, %16, %15 : vector<8x8xi32>
    %18 = arith.andi %14, %17 : vector<8x8xi1>
    %cst_15 = arith.constant -1.000000e+09 : f32
    %19 = vector.broadcast %cst_15 : f32 to vector<8x8xf32>
    %20 = arith.select %18, %8, %19 : vector<8x8xi1>, vector<8x8xf32>
    %cst_16 = arith.constant dense<0xFF800000> : vector<8xf32>
    %21 = vector.multi_reduction <maximumf>, %20, %cst_16 [1] : vector<8x8xf32> to vector<8xf32>
    %22 = vector.shape_cast %21 : vector<8xf32> to vector<8x1xf32>
    %23 = vector.broadcast %22 : vector<8x1xf32> to vector<8x8xf32>
    %24 = arith.subf %20, %23 : vector<8x8xf32>
    %25 = math.exp %24 : vector<8x8xf32>
    %cst_17 = arith.constant dense<0.000000e+00> : vector<8xf32>
    %26 = vector.multi_reduction <add>, %25, %cst_17 [1] : vector<8x8xf32> to vector<8xf32>
    %27 = vector.shape_cast %26 : vector<8xf32> to vector<8x1xf32>
    %28 = tpu.reciprocal %27 {approx = true} : vector<8x1xf32> -> vector<8x1xf32>
    %29 = vector.broadcast %28 : vector<8x1xf32> to vector<8x8xf32>
    %30 = arith.mulf %25, %29 : vector<8x8xf32>
    %31 = arith.truncf %30 : vector<8x8xf32> to vector<8x8xbf16>
    %cst_18 = arith.constant dense<0.000000e+00> : vector<8x8xf32>
    %32 = tpu.matmul %31, %7, %cst_18 {dimension_numbers = #tpu.dot_dimension_numbers<[1], [0], [0], [1], [0, 0, 1, 1], [], []>} : vector<8x8xbf16>, vector<8x8xbf16>, vector<8x8xf32> -> vector<8x8xf32>
    %33 = arith.truncf %32 : vector<8x8xf32> to vector<8x8xbf16>
    %c0_19 = arith.constant 0 : index
    %c0_20 = arith.constant 0 : index
    %c0_21 = arith.constant 0 : index
    %c0_22 = arith.constant 0 : index
    %34 = vector.load %arg6[%c0_19, %c0_20, %c0_21, %c0_22] : memref<1x1x8x8xbf16, #tpu.memory_space<vmem>>, vector<1x1x8x8xbf16>
    %35 = vector.shape_cast %34 : vector<1x1x8x8xbf16> to vector<8x8xbf16>
    %36 = vector.shape_cast %33 : vector<8x8xbf16> to vector<1x1x8x8xbf16>
    tpu.vector_store %arg6[%c0_19, %c0_20, %c0_21, %c0_22], %36 {strides = array<i32>} : memref<1x1x8x8xbf16, #tpu.memory_space<vmem>>, vector<1x1x8x8xbf16>,
    return
  }
  func.func @transform_0(%arg0: i32, %arg1: i32) -> (i32, i32, i32, i32) {
    %c0_i32 = arith.constant 0 : i32
    %c0_i32_0 = arith.constant 0 : i32
    %c0_i32_1 = arith.constant 0 : i32
    return %arg0, %arg1, %c0_i32, %c0_i32_0 : i32, i32, i32, i32
  }
  func.func @transform_1(%arg0: i32, %arg1: i32) -> (i32, i32, i32, i32) {
    %c0_i32 = arith.constant 0 : i32
    %c0_i32_0 = arith.constant 0 : i32
    %c0_i32_1 = arith.constant 0 : i32
    return %arg0, %arg1, %c0_i32, %c0_i32_0 : i32, i32, i32, i32
  }
  func.func @transform_2(%arg0: i32, %arg1: i32) -> (i32, i32, i32, i32) {
    %c0_i32 = arith.constant 0 : i32
    %c0_i32_0 = arith.constant 0 : i32
    %c0_i32_1 = arith.constant 0 : i32
    return %arg0, %arg1, %c0_i32, %c0_i32_0 : i32, i32, i32, i32
  }
  func.func @transform_3(%arg0: i32, %arg1: i32) -> (i32, i32, i32) {
    %c0_i32 = arith.constant 0 : i32
    %c0_i32_0 = arith.constant 0 : i32
    %c0_i32_1 = arith.constant 0 : i32
    return %arg0, %c0_i32, %c0_i32_0 : i32, i32, i32
  }
  func.func @transform_4(%arg0: i32, %arg1: i32) -> (i32, i32, i32, i32) {
    %c0_i32 = arith.constant 0 : i32
    %c0_i32_0 = arith.constant 0 : i32
    %c0_i32_1 = arith.constant 0 : i32
    return %arg0, %arg1, %c0_i32, %c0_i32_0 : i32, i32, i32, i32
  }
}

module attributes {stable_mosaic.version = 11 : i64} {
  func.func @_ln_linear_kernel(%arg0: i32, %arg1: i32, %arg2: memref<16x32xbf16, #tpu.memory_space<vmem>>, %arg3: memref<1x32xf32, #tpu.memory_space<vmem>>, %arg4: memref<1x32xf32, #tpu.memory_space<vmem>>, %arg5: memref<32x32xbf16, #tpu.memory_space<vmem>>, %arg6: memref<1x32xf32, #tpu.memory_space<vmem>>, %arg7: memref<16x32xbf16, #tpu.memory_space<vmem>>, %arg8: memref<16x32xbf16, #tpu.memory_space<vmem>>) attributes {dimension_semantics = [#tpu.dimension_semantics<parallel>, #tpu.dimension_semantics<arbitrary>], iteration_bounds = array<i64: 1, 1>, scalar_prefetch = 0 : i64, scratch_operands = 1 : i64, tpu.core_type = #tpu.core_type<tc>, window_params = [{transform_indices = @transform_0, window_bounds = array<i64: 16, 32>}, {pipeline_mode = #tpu.pipeline_mode<synchronous>, transform_indices = @transform_1, window_bounds = array<i64: 1, 32>}, {pipeline_mode = #tpu.pipeline_mode<synchronous>, transform_indices = @transform_2, window_bounds = array<i64: 1, 32>}, {transform_indices = @transform_3, window_bounds = array<i64: 32, 32>}, {transform_indices = @transform_4, window_bounds = array<i64: 1, 32>}, {transform_indices = @transform_5, window_bounds = array<i64: 16, 32>}]} {
    %c0_i32 = arith.constant 0 : i32
    %0 = arith.cmpi eq, %arg1, %c0_i32 : i32
    %1 = arith.extui %0 : i1 to i32
    %c0_i32_0 = arith.constant 0 : i32
    %2 = arith.cmpi ne, %1, %c0_i32_0 : i32
    scf.if %2 {
      %c0_8 = arith.constant 0 : index
      %c0_9 = arith.constant 0 : index
      %11 = vector.load %arg2[%c0_8, %c0_9] : memref<16x32xbf16, #tpu.memory_space<vmem>>, vector<16x32xbf16>
      %12 = arith.extf %11 : vector<16x32xbf16> to vector<16x32xf32>
      %cst_10 = arith.constant dense<0.000000e+00> : vector<16xf32>
      %13 = vector.multi_reduction <add>, %12, %cst_10 [1] : vector<16x32xf32> to vector<16xf32>
      %14 = vector.shape_cast %13 : vector<16xf32> to vector<16x1xf32>
      %cst_11 = arith.constant 3.200000e+01 : f32
      %15 = vector.broadcast %cst_11 : f32 to vector<16x1xf32>
      %16 = arith.divf %14, %15 : vector<16x1xf32>
      %17 = vector.broadcast %16 : vector<16x1xf32> to vector<16x32xf32>
      %18 = arith.subf %12, %17 : vector<16x32xf32>
      %19 = arith.mulf %18, %18 : vector<16x32xf32>
      %cst_12 = arith.constant dense<0.000000e+00> : vector<16xf32>
      %20 = vector.multi_reduction <add>, %19, %cst_12 [1] : vector<16x32xf32> to vector<16xf32>
      %21 = vector.shape_cast %20 : vector<16xf32> to vector<16x1xf32>
      %cst_13 = arith.constant 3.200000e+01 : f32
      %22 = vector.broadcast %cst_13 : f32 to vector<16x1xf32>
      %23 = arith.divf %21, %22 : vector<16x1xf32>
      %24 = vector.broadcast %16 : vector<16x1xf32> to vector<16x32xf32>
      %25 = arith.subf %12, %24 : vector<16x32xf32>
      %cst_14 = arith.constant 9.99999974E-6 : f32
      %26 = vector.broadcast %cst_14 : f32 to vector<16x1xf32>
      %27 = arith.addf %23, %26 : vector<16x1xf32>
      %28 = math.rsqrt %27 : vector<16x1xf32>
      %29 = vector.broadcast %28 : vector<16x1xf32> to vector<16x32xf32>
      %30 = arith.mulf %25, %29 : vector<16x32xf32>
      %c0_15 = arith.constant 0 : index
      %c0_16 = arith.constant 0 : index
      %31 = vector.load %arg3[%c0_15, %c0_16] : memref<1x32xf32, #tpu.memory_space<vmem>>, vector<1x32xf32>
      %32 = vector.broadcast %31 : vector<1x32xf32> to vector<16x32xf32>
      %33 = arith.mulf %30, %32 : vector<16x32xf32>
      %c0_17 = arith.constant 0 : index
      %c0_18 = arith.constant 0 : index
      %34 = vector.load %arg4[%c0_17, %c0_18] : memref<1x32xf32, #tpu.memory_space<vmem>>, vector<1x32xf32>
      %35 = vector.broadcast %34 : vector<1x32xf32> to vector<16x32xf32>
      %36 = arith.addf %33, %35 : vector<16x32xf32>
      %37 = arith.truncf %36 : vector<16x32xf32> to vector<16x32xbf16>
      %c0_19 = arith.constant 0 : index
      %c0_20 = arith.constant 0 : index
      %38 = vector.load %arg8[%c0_19, %c0_20] : memref<16x32xbf16, #tpu.memory_space<vmem>>, vector<16x32xbf16>
      tpu.vector_store %arg8[%c0_19, %c0_20], %37 {strides = array<i32>} : memref<16x32xbf16, #tpu.memory_space<vmem>>, vector<16x32xbf16>,
    } else {
    }
    %c0 = arith.constant 0 : index
    %c0_1 = arith.constant 0 : index
    %3 = vector.load %arg8[%c0, %c0_1] : memref<16x32xbf16, #tpu.memory_space<vmem>>, vector<16x32xbf16>
    %c0_2 = arith.constant 0 : index
    %c0_3 = arith.constant 0 : index
    %4 = vector.load %arg5[%c0_2, %c0_3] : memref<32x32xbf16, #tpu.memory_space<vmem>>, vector<32x32xbf16>
    %cst = arith.constant dense<0.000000e+00> : vector<16x32xf32>
    %5 = tpu.matmul %3, %4, %cst {dimension_numbers = #tpu.dot_dimension_numbers<[1], [0], [0], [1], [0, 0, 1, 1], [], []>} : vector<16x32xbf16>, vector<32x32xbf16>, vector<16x32xf32> -> vector<16x32xf32>
    %c0_4 = arith.constant 0 : index
    %c0_5 = arith.constant 0 : index
    %6 = vector.load %arg6[%c0_4, %c0_5] : memref<1x32xf32, #tpu.memory_space<vmem>>, vector<1x32xf32>
    %7 = vector.broadcast %6 : vector<1x32xf32> to vector<16x32xf32>
    %8 = arith.addf %5, %7 : vector<16x32xf32>
    %9 = arith.truncf %8 : vector<16x32xf32> to vector<16x32xbf16>
    %c0_6 = arith.constant 0 : index
    %c0_7 = arith.constant 0 : index
    %10 = vector.load %arg7[%c0_6, %c0_7] : memref<16x32xbf16, #tpu.memory_space<vmem>>, vector<16x32xbf16>
    tpu.vector_store %arg7[%c0_6, %c0_7], %9 {strides = array<i32>} : memref<16x32xbf16, #tpu.memory_space<vmem>>, vector<16x32xbf16>,
    return
  }
  func.func @transform_0(%arg0: i32, %arg1: i32) -> (i32, i32) {
    %c0_i32 = arith.constant 0 : i32
    %c0_i32_0 = arith.constant 0 : i32
    return %arg0, %c0_i32 : i32, i32
  }
  func.func @transform_1(%arg0: i32, %arg1: i32) -> (i32, i32) {
    %c0_i32 = arith.constant 0 : i32
    %c0_i32_0 = arith.constant 0 : i32
    %c0_i32_1 = arith.constant 0 : i32
    return %c0_i32, %c0_i32_0 : i32, i32
  }
  func.func @transform_2(%arg0: i32, %arg1: i32) -> (i32, i32) {
    %c0_i32 = arith.constant 0 : i32
    %c0_i32_0 = arith.constant 0 : i32
    %c0_i32_1 = arith.constant 0 : i32
    return %c0_i32, %c0_i32_0 : i32, i32
  }
  func.func @transform_3(%arg0: i32, %arg1: i32) -> (i32, i32) {
    %c0_i32 = arith.constant 0 : i32
    %c0_i32_0 = arith.constant 0 : i32
    return %c0_i32, %arg1 : i32, i32
  }
  func.func @transform_4(%arg0: i32, %arg1: i32) -> (i32, i32) {
    %c0_i32 = arith.constant 0 : i32
    %c0_i32_0 = arith.constant 0 : i32
    return %c0_i32, %arg1 : i32, i32
  }
  func.func @transform_5(%arg0: i32, %arg1: i32) -> (i32, i32) {
    %c0_i32 = arith.constant 0 : i32
    return %arg0, %arg1 : i32, i32
  }
}

module attributes {stable_mosaic.version = 11 : i64} {
  func.func @_linear_residual_kernel(%arg0: i32, %arg1: i32, %arg2: i32, %arg3: memref<16x32xbf16, #tpu.memory_space<vmem>>, %arg4: memref<32x32xbf16, #tpu.memory_space<vmem>>, %arg5: memref<1x32xf32, #tpu.memory_space<vmem>>, %arg6: memref<16x32xbf16, #tpu.memory_space<vmem>>, %arg7: memref<16x32xbf16, #tpu.memory_space<vmem>>, %arg8: memref<16x32xf32, #tpu.memory_space<vmem>>) attributes {dimension_semantics = [#tpu.dimension_semantics<parallel>, #tpu.dimension_semantics<parallel>, #tpu.dimension_semantics<arbitrary>], iteration_bounds = array<i64: 1, 1, 1>, scalar_prefetch = 0 : i64, scratch_operands = 1 : i64, tpu.core_type = #tpu.core_type<tc>, window_params = [{transform_indices = @transform_0, window_bounds = array<i64: 16, 32>}, {transform_indices = @transform_1, window_bounds = array<i64: 32, 32>}, {transform_indices = @transform_2, window_bounds = array<i64: 1, 32>}, {transform_indices = @transform_3, window_bounds = array<i64: 16, 32>}, {transform_indices = @transform_4, window_bounds = array<i64: 16, 32>}]} {
    %c0_i32 = arith.constant 0 : i32
    %0 = arith.cmpi eq, %arg2, %c0_i32 : i32
    %1 = arith.extui %0 : i1 to i32
    %c0_i32_0 = arith.constant 0 : i32
    %2 = arith.cmpi ne, %1, %c0_i32_0 : i32
    scf.if %2 {
      %cst_10 = arith.constant 0.000000e+00 : f32
      %12 = vector.broadcast %cst_10 : f32 to vector<16x32xf32>
      %c0_11 = arith.constant 0 : index
      %c0_12 = arith.constant 0 : index
      %13 = vector.load %arg8[%c0_11, %c0_12] : memref<16x32xf32, #tpu.memory_space<vmem>>, vector<16x32xf32>
      tpu.vector_store %arg8[%c0_11, %c0_12], %12 {strides = array<i32>} : memref<16x32xf32, #tpu.memory_space<vmem>>, vector<16x32xf32>,
    } else {
    }
    %c0 = arith.constant 0 : index
    %c0_1 = arith.constant 0 : index
    %3 = vector.load %arg8[%c0, %c0_1] : memref<16x32xf32, #tpu.memory_space<vmem>>, vector<16x32xf32>
    %c0_2 = arith.constant 0 : index
    %c0_3 = arith.constant 0 : index
    %4 = vector.load %arg3[%c0_2, %c0_3] : memref<16x32xbf16, #tpu.memory_space<vmem>>, vector<16x32xbf16>
    %c0_4 = arith.constant 0 : index
    %c0_5 = arith.constant 0 : index
    %5 = vector.load %arg4[%c0_4, %c0_5] : memref<32x32xbf16, #tpu.memory_space<vmem>>, vector<32x32xbf16>
    %cst = arith.constant dense<0.000000e+00> : vector<16x32xf32>
    %6 = tpu.matmul %4, %5, %cst {dimension_numbers = #tpu.dot_dimension_numbers<[1], [0], [0], [1], [0, 0, 1, 1], [], []>} : vector<16x32xbf16>, vector<32x32xbf16>, vector<16x32xf32> -> vector<16x32xf32>
    %7 = arith.addf %3, %6 : vector<16x32xf32>
    %c0_6 = arith.constant 0 : index
    %c0_7 = arith.constant 0 : index
    %8 = vector.load %arg8[%c0_6, %c0_7] : memref<16x32xf32, #tpu.memory_space<vmem>>, vector<16x32xf32>
    tpu.vector_store %arg8[%c0_6, %c0_7], %7 {strides = array<i32>} : memref<16x32xf32, #tpu.memory_space<vmem>>, vector<16x32xf32>,
    %c0_i32_8 = arith.constant 0 : i32
    %9 = arith.cmpi eq, %arg2, %c0_i32_8 : i32
    %10 = arith.extui %9 : i1 to i32
    %c0_i32_9 = arith.constant 0 : i32
    %11 = arith.cmpi ne, %10, %c0_i32_9 : i32
    scf.if %11 {
      %c0_10 = arith.constant 0 : index
      %c0_11 = arith.constant 0 : index
      %12 = vector.load %arg8[%c0_10, %c0_11] : memref<16x32xf32, #tpu.memory_space<vmem>>, vector<16x32xf32>
      %c0_12 = arith.constant 0 : index
      %c0_13 = arith.constant 0 : index
      %13 = vector.load %arg5[%c0_12, %c0_13] : memref<1x32xf32, #tpu.memory_space<vmem>>, vector<1x32xf32>
      %14 = vector.broadcast %13 : vector<1x32xf32> to vector<16x32xf32>
      %15 = arith.addf %12, %14 : vector<16x32xf32>
      %c0_14 = arith.constant 0 : index
      %c0_15 = arith.constant 0 : index
      %16 = vector.load %arg6[%c0_14, %c0_15] : memref<16x32xbf16, #tpu.memory_space<vmem>>, vector<16x32xbf16>
      %17 = arith.extf %16 : vector<16x32xbf16> to vector<16x32xf32>
      %18 = arith.addf %15, %17 : vector<16x32xf32>
      %19 = arith.truncf %18 : vector<16x32xf32> to vector<16x32xbf16>
      %c0_16 = arith.constant 0 : index
      %c0_17 = arith.constant 0 : index
      %20 = vector.load %arg7[%c0_16, %c0_17] : memref<16x32xbf16, #tpu.memory_space<vmem>>, vector<16x32xbf16>
      tpu.vector_store %arg7[%c0_16, %c0_17], %19 {strides = array<i32>} : memref<16x32xbf16, #tpu.memory_space<vmem>>, vector<16x32xbf16>,
    } else {
    }
    return
  }
  func.func @transform_0(%arg0: i32, %arg1: i32, %arg2: i32) -> (i32, i32) {
    %c0_i32 = arith.constant 0 : i32
    return %arg0, %arg2 : i32, i32
  }
  func.func @transform_1(%arg0: i32, %arg1: i32, %arg2: i32) -> (i32, i32) {
    %c0_i32 = arith.constant 0 : i32
    return %arg2, %arg1 : i32, i32
  }
  func.func @transform_2(%arg0: i32, %arg1: i32, %arg2: i32) -> (i32, i32) {
    %c0_i32 = arith.constant 0 : i32
    %c0_i32_0 = arith.constant 0 : i32
    return %c0_i32, %arg1 : i32, i32
  }
  func.func @transform_3(%arg0: i32, %arg1: i32, %arg2: i32) -> (i32, i32) {
    %c0_i32 = arith.constant 0 : i32
    return %arg0, %arg1 : i32, i32
  }
  func.func @transform_4(%arg0: i32, %arg1: i32, %arg2: i32) -> (i32, i32) {
    %c0_i32 = arith.constant 0 : i32
    return %arg0, %arg1 : i32, i32
  }
}

module attributes {stable_mosaic.version = 11 : i64} {
  func.func @_linear_kernel(%arg0: i32, %arg1: i32, %arg2: i32, %arg3: memref<16x32xbf16, #tpu.memory_space<vmem>>, %arg4: memref<32x64xbf16, #tpu.memory_space<vmem>>, %arg5: memref<1x64xf32, #tpu.memory_space<vmem>>, %arg6: memref<16x64xbf16, #tpu.memory_space<vmem>>, %arg7: memref<16x64xf32, #tpu.memory_space<vmem>>) attributes {dimension_semantics = [#tpu.dimension_semantics<parallel>, #tpu.dimension_semantics<parallel>, #tpu.dimension_semantics<arbitrary>], iteration_bounds = array<i64: 1, 1, 1>, scalar_prefetch = 0 : i64, scratch_operands = 1 : i64, tpu.core_type = #tpu.core_type<tc>, window_params = [{transform_indices = @transform_0, window_bounds = array<i64: 16, 32>}, {transform_indices = @transform_1, window_bounds = array<i64: 32, 64>}, {transform_indices = @transform_2, window_bounds = array<i64: 1, 64>}, {transform_indices = @transform_3, window_bounds = array<i64: 16, 64>}]} {
    %c0_i32 = arith.constant 0 : i32
    %0 = arith.cmpi eq, %arg2, %c0_i32 : i32
    %1 = arith.extui %0 : i1 to i32
    %c0_i32_0 = arith.constant 0 : i32
    %2 = arith.cmpi ne, %1, %c0_i32_0 : i32
    scf.if %2 {
      %cst_10 = arith.constant 0.000000e+00 : f32
      %12 = vector.broadcast %cst_10 : f32 to vector<16x64xf32>
      %c0_11 = arith.constant 0 : index
      %c0_12 = arith.constant 0 : index
      %13 = vector.load %arg7[%c0_11, %c0_12] : memref<16x64xf32, #tpu.memory_space<vmem>>, vector<16x64xf32>
      tpu.vector_store %arg7[%c0_11, %c0_12], %12 {strides = array<i32>} : memref<16x64xf32, #tpu.memory_space<vmem>>, vector<16x64xf32>,
    } else {
    }
    %c0 = arith.constant 0 : index
    %c0_1 = arith.constant 0 : index
    %3 = vector.load %arg7[%c0, %c0_1] : memref<16x64xf32, #tpu.memory_space<vmem>>, vector<16x64xf32>
    %c0_2 = arith.constant 0 : index
    %c0_3 = arith.constant 0 : index
    %4 = vector.load %arg3[%c0_2, %c0_3] : memref<16x32xbf16, #tpu.memory_space<vmem>>, vector<16x32xbf16>
    %c0_4 = arith.constant 0 : index
    %c0_5 = arith.constant 0 : index
    %5 = vector.load %arg4[%c0_4, %c0_5] : memref<32x64xbf16, #tpu.memory_space<vmem>>, vector<32x64xbf16>
    %cst = arith.constant dense<0.000000e+00> : vector<16x64xf32>
    %6 = tpu.matmul %4, %5, %cst {dimension_numbers = #tpu.dot_dimension_numbers<[1], [0], [0], [1], [0, 0, 1, 1], [], []>} : vector<16x32xbf16>, vector<32x64xbf16>, vector<16x64xf32> -> vector<16x64xf32>
    %7 = arith.addf %3, %6 : vector<16x64xf32>
    %c0_6 = arith.constant 0 : index
    %c0_7 = arith.constant 0 : index
    %8 = vector.load %arg7[%c0_6, %c0_7] : memref<16x64xf32, #tpu.memory_space<vmem>>, vector<16x64xf32>
    tpu.vector_store %arg7[%c0_6, %c0_7], %7 {strides = array<i32>} : memref<16x64xf32, #tpu.memory_space<vmem>>, vector<16x64xf32>,
    %c0_i32_8 = arith.constant 0 : i32
    %9 = arith.cmpi eq, %arg2, %c0_i32_8 : i32
    %10 = arith.extui %9 : i1 to i32
    %c0_i32_9 = arith.constant 0 : i32
    %11 = arith.cmpi ne, %10, %c0_i32_9 : i32
    scf.if %11 {
      %c0_10 = arith.constant 0 : index
      %c0_11 = arith.constant 0 : index
      %12 = vector.load %arg7[%c0_10, %c0_11] : memref<16x64xf32, #tpu.memory_space<vmem>>, vector<16x64xf32>
      %c0_12 = arith.constant 0 : index
      %c0_13 = arith.constant 0 : index
      %13 = vector.load %arg5[%c0_12, %c0_13] : memref<1x64xf32, #tpu.memory_space<vmem>>, vector<1x64xf32>
      %14 = vector.broadcast %13 : vector<1x64xf32> to vector<16x64xf32>
      %15 = arith.addf %12, %14 : vector<16x64xf32>
      %16 = arith.truncf %15 : vector<16x64xf32> to vector<16x64xbf16>
      %c0_14 = arith.constant 0 : index
      %c0_15 = arith.constant 0 : index
      %17 = vector.load %arg6[%c0_14, %c0_15] : memref<16x64xbf16, #tpu.memory_space<vmem>>, vector<16x64xbf16>
      tpu.vector_store %arg6[%c0_14, %c0_15], %16 {strides = array<i32>} : memref<16x64xbf16, #tpu.memory_space<vmem>>, vector<16x64xbf16>,
    } else {
    }
    return
  }
  func.func @transform_0(%arg0: i32, %arg1: i32, %arg2: i32) -> (i32, i32) {
    %c0_i32 = arith.constant 0 : i32
    return %arg0, %arg2 : i32, i32
  }
  func.func @transform_1(%arg0: i32, %arg1: i32, %arg2: i32) -> (i32, i32) {
    %c0_i32 = arith.constant 0 : i32
    return %arg2, %arg1 : i32, i32
  }
  func.func @transform_2(%arg0: i32, %arg1: i32, %arg2: i32) -> (i32, i32) {
    %c0_i32 = arith.constant 0 : i32
    %c0_i32_0 = arith.constant 0 : i32
    return %c0_i32, %arg1 : i32, i32
  }
  func.func @transform_3(%arg0: i32, %arg1: i32, %arg2: i32) -> (i32, i32) {
    %c0_i32 = arith.constant 0 : i32
    return %arg0, %arg1 : i32, i32
  }
}

module attributes {stable_mosaic.version = 11 : i64} {
  func.func @_attn_kernel(%arg0: i32, %arg1: i32, %arg2: memref<1x1x8x8xbf16, #tpu.memory_space<vmem>>, %arg3: memref<1x1x8x8xbf16, #tpu.memory_space<vmem>>, %arg4: memref<1x1x8x8xbf16, #tpu.memory_space<vmem>>, %arg5: memref<1x1x8xi32, #tpu.memory_space<vmem>>, %arg6: memref<1x1x8x8xbf16, #tpu.memory_space<vmem>>) attributes {dimension_semantics = [#tpu.dimension_semantics<parallel>, #tpu.dimension_semantics<parallel>], iteration_bounds = array<i64: 2, 4>, scalar_prefetch = 0 : i64, scratch_operands = 0 : i64, tpu.core_type = #tpu.core_type<tc>, window_params = [{transform_indices = @transform_0, window_bounds = array<i64: 1, 1, 8, 8>}, {transform_indices = @transform_1, window_bounds = array<i64: 1, 1, 8, 8>}, {transform_indices = @transform_2, window_bounds = array<i64: 1, 1, 8, 8>}, {transform_indices = @transform_3, window_bounds = array<i64: 1, 1, 8>}, {transform_indices = @transform_4, window_bounds = array<i64: 1, 1, 8, 8>}]} {
    %c0 = arith.constant 0 : index
    %c0_0 = arith.constant 0 : index
    %c0_1 = arith.constant 0 : index
    %c0_2 = arith.constant 0 : index
    %0 = vector.load %arg2[%c0, %c0_0, %c0_1, %c0_2] : memref<1x1x8x8xbf16, #tpu.memory_space<vmem>>, vector<1x1x8x8xbf16>
    %1 = vector.shape_cast %0 : vector<1x1x8x8xbf16> to vector<8x8xbf16>
    %cst = arith.constant 3.535160e-01 : bf16
    %2 = vector.broadcast %cst : bf16 to vector<8x8xbf16>
    %3 = arith.mulf %1, %2 : vector<8x8xbf16>
    %c0_3 = arith.constant 0 : index
    %c0_4 = arith.constant 0 : index
    %c0_5 = arith.constant 0 : index
    %c0_6 = arith.constant 0 : index
    %4 = vector.load %arg3[%c0_3, %c0_4, %c0_5, %c0_6] : memref<1x1x8x8xbf16, #tpu.memory_space<vmem>>, vector<1x1x8x8xbf16>
    %5 = vector.shape_cast %4 : vector<1x1x8x8xbf16> to vector<8x8xbf16>
    %c0_7 = arith.constant 0 : index
    %c0_8 = arith.constant 0 : index
    %c0_9 = arith.constant 0 : index
    %c0_10 = arith.constant 0 : index
    %6 = vector.load %arg4[%c0_7, %c0_8, %c0_9, %c0_10] : memref<1x1x8x8xbf16, #tpu.memory_space<vmem>>, vector<1x1x8x8xbf16>
    %7 = vector.shape_cast %6 : vector<1x1x8x8xbf16> to vector<8x8xbf16>
    %cst_11 = arith.constant dense<0.000000e+00> : vector<8x8xf32>
    %8 = tpu.matmul %3, %5, %cst_11 {dimension_numbers = #tpu.dot_dimension_numbers<[1], [1], [0], [0], [0, 0, 1, 0], [], []>} : vector<8x8xbf16>, vector<8x8xbf16>, vector<8x8xf32> -> vector<8x8xf32>
    %c0_12 = arith.constant 0 : index
    %c0_13 = arith.constant 0 : index
    %c0_14 = arith.constant 0 : index
    %9 = vector.load %arg5[%c0_12, %c0_13, %c0_14] : memref<1x1x8xi32, #tpu.memory_space<vmem>>, vector<1x1x8xi32>
    %10 = vector.shape_cast %9 : vector<1x1x8xi32> to vector<1x8xi32>
    %c0_i32 = arith.constant 0 : i32
    %11 = vector.broadcast %c0_i32 : i32 to vector<1x8xi32>
    %12 = arith.cmpi sgt, %10, %11 : vector<1x8xi32>
    %13 = vector.shape_cast %12 : vector<1x8xi1> to vector<1x8xi1>
    %14 = vector.broadcast %13 : vector<1x8xi1> to vector<8x8xi1>
    %cst_15 = arith.constant -1.000000e+09 : f32
    %15 = vector.broadcast %cst_15 : f32 to vector<8x8xf32>
    %16 = arith.select %14, %8, %15 : vector<8x8xi1>, vector<8x8xf32>
    %cst_16 = arith.constant dense<0xFF800000> : vector<8xf32>
    %17 = vector.multi_reduction <maximumf>, %16, %cst_16 [1] : vector<8x8xf32> to vector<8xf32>
    %18 = vector.shape_cast %17 : vector<8xf32> to vector<8x1xf32>
    %19 = vector.broadcast %18 : vector<8x1xf32> to vector<8x8xf32>
    %20 = arith.subf %16, %19 : vector<8x8xf32>
    %21 = math.exp %20 : vector<8x8xf32>
    %cst_17 = arith.constant dense<0.000000e+00> : vector<8xf32>
    %22 = vector.multi_reduction <add>, %21, %cst_17 [1] : vector<8x8xf32> to vector<8xf32>
    %23 = vector.shape_cast %22 : vector<8xf32> to vector<8x1xf32>
    %24 = tpu.reciprocal %23 {approx = true} : vector<8x1xf32> -> vector<8x1xf32>
    %25 = vector.broadcast %24 : vector<8x1xf32> to vector<8x8xf32>
    %26 = arith.mulf %21, %25 : vector<8x8xf32>
    %27 = arith.truncf %26 : vector<8x8xf32> to vector<8x8xbf16>
    %cst_18 = arith.constant dense<0.000000e+00> : vector<8x8xf32>
    %28 = tpu.matmul %27, %7, %cst_18 {dimension_numbers = #tpu.dot_dimension_numbers<[1], [0], [0], [1], [0, 0, 1, 1], [], []>} : vector<8x8xbf16>, vector<8x8xbf16>, vector<8x8xf32> -> vector<8x8xf32>
    %29 = arith.truncf %28 : vector<8x8xf32> to vector<8x8xbf16>
    %c0_19 = arith.constant 0 : index
    %c0_20 = arith.constant 0 : index
    %c0_21 = arith.constant 0 : index
    %c0_22 = arith.constant 0 : index
    %30 = vector.load %arg6[%c0_19, %c0_20, %c0_21, %c0_22] : memref<1x1x8x8xbf16, #tpu.memory_space<vmem>>, vector<1x1x8x8xbf16>
    %31 = vector.shape_cast %30 : vector<1x1x8x8xbf16> to vector<8x8xbf16>
    %32 = vector.shape_cast %29 : vector<8x8xbf16> to vector<1x1x8x8xbf16>
    tpu.vector_store %arg6[%c0_19, %c0_20, %c0_21, %c0_22], %32 {strides = array<i32>} : memref<1x1x8x8xbf16, #tpu.memory_space<vmem>>, vector<1x1x8x8xbf16>,
    return
  }
  func.func @transform_0(%arg0: i32, %arg1: i32) -> (i32, i32, i32, i32) {
    %c0_i32 = arith.constant 0 : i32
    %c0_i32_0 = arith.constant 0 : i32
    %c0_i32_1 = arith.constant 0 : i32
    return %arg0, %arg1, %c0_i32, %c0_i32_0 : i32, i32, i32, i32
  }
  func.func @transform_1(%arg0: i32, %arg1: i32) -> (i32, i32, i32, i32) {
    %c0_i32 = arith.constant 0 : i32
    %c0_i32_0 = arith.constant 0 : i32
    %c0_i32_1 = arith.constant 0 : i32
    return %arg0, %arg1, %c0_i32, %c0_i32_0 : i32, i32, i32, i32
  }
  func.func @transform_2(%arg0: i32, %arg1: i32) -> (i32, i32, i32, i32) {
    %c0_i32 = arith.constant 0 : i32
    %c0_i32_0 = arith.constant 0 : i32
    %c0_i32_1 = arith.constant 0 : i32
    return %arg0, %arg1, %c0_i32, %c0_i32_0 : i32, i32, i32, i32
  }
  func.func @transform_3(%arg0: i32, %arg1: i32) -> (i32, i32, i32) {
    %c0_i32 = arith.constant 0 : i32
    %c0_i32_0 = arith.constant 0 : i32
    %c0_i32_1 = arith.constant 0 : i32
    return %arg0, %c0_i32, %c0_i32_0 : i32, i32, i32
  }
  func.func @transform_4(%arg0: i32, %arg1: i32) -> (i32, i32, i32, i32) {
    %c0_i32 = arith.constant 0 : i32
    %c0_i32_0 = arith.constant 0 : i32
    %c0_i32_1 = arith.constant 0 : i32
    return %arg0, %arg1, %c0_i32, %c0_i32_0 : i32, i32, i32, i32
  }
}

module attributes {stable_mosaic.version = 11 : i64} {
  func.func @_layernorm_kernel(%arg0: i32, %arg1: memref<16x32xbf16, #tpu.memory_space<vmem>>, %arg2: memref<1x32xf32, #tpu.memory_space<vmem>>, %arg3: memref<1x32xf32, #tpu.memory_space<vmem>>, %arg4: memref<16x32xf32, #tpu.memory_space<vmem>>) attributes {dimension_semantics = [#tpu.dimension_semantics<parallel>], iteration_bounds = array<i64: 1>, scalar_prefetch = 0 : i64, scratch_operands = 0 : i64, tpu.core_type = #tpu.core_type<tc>, window_params = [{transform_indices = @transform_0, window_bounds = array<i64: 16, 32>}, {pipeline_mode = #tpu.pipeline_mode<synchronous>, transform_indices = @transform_1, window_bounds = array<i64: 1, 32>}, {pipeline_mode = #tpu.pipeline_mode<synchronous>, transform_indices = @transform_2, window_bounds = array<i64: 1, 32>}, {transform_indices = @transform_3, window_bounds = array<i64: 16, 32>}]} {
    %c0 = arith.constant 0 : index
    %c0_0 = arith.constant 0 : index
    %0 = vector.load %arg1[%c0, %c0_0] : memref<16x32xbf16, #tpu.memory_space<vmem>>, vector<16x32xbf16>
    %1 = arith.extf %0 : vector<16x32xbf16> to vector<16x32xf32>
    %cst = arith.constant dense<0.000000e+00> : vector<16xf32>
    %2 = vector.multi_reduction <add>, %1, %cst [1] : vector<16x32xf32> to vector<16xf32>
    %3 = vector.shape_cast %2 : vector<16xf32> to vector<16x1xf32>
    %cst_1 = arith.constant 3.200000e+01 : f32
    %4 = vector.broadcast %cst_1 : f32 to vector<16x1xf32>
    %5 = arith.divf %3, %4 : vector<16x1xf32>
    %6 = vector.broadcast %5 : vector<16x1xf32> to vector<16x32xf32>
    %7 = arith.subf %1, %6 : vector<16x32xf32>
    %8 = arith.mulf %7, %7 : vector<16x32xf32>
    %cst_2 = arith.constant dense<0.000000e+00> : vector<16xf32>
    %9 = vector.multi_reduction <add>, %8, %cst_2 [1] : vector<16x32xf32> to vector<16xf32>
    %10 = vector.shape_cast %9 : vector<16xf32> to vector<16x1xf32>
    %cst_3 = arith.constant 3.200000e+01 : f32
    %11 = vector.broadcast %cst_3 : f32 to vector<16x1xf32>
    %12 = arith.divf %10, %11 : vector<16x1xf32>
    %13 = vector.broadcast %5 : vector<16x1xf32> to vector<16x32xf32>
    %14 = arith.subf %1, %13 : vector<16x32xf32>
    %cst_4 = arith.constant 9.99999974E-6 : f32
    %15 = vector.broadcast %cst_4 : f32 to vector<16x1xf32>
    %16 = arith.addf %12, %15 : vector<16x1xf32>
    %17 = math.rsqrt %16 : vector<16x1xf32>
    %18 = vector.broadcast %17 : vector<16x1xf32> to vector<16x32xf32>
    %19 = arith.mulf %14, %18 : vector<16x32xf32>
    %c0_5 = arith.constant 0 : index
    %c0_6 = arith.constant 0 : index
    %20 = vector.load %arg2[%c0_5, %c0_6] : memref<1x32xf32, #tpu.memory_space<vmem>>, vector<1x32xf32>
    %21 = vector.broadcast %20 : vector<1x32xf32> to vector<16x32xf32>
    %22 = arith.mulf %19, %21 : vector<16x32xf32>
    %c0_7 = arith.constant 0 : index
    %c0_8 = arith.constant 0 : index
    %23 = vector.load %arg3[%c0_7, %c0_8] : memref<1x32xf32, #tpu.memory_space<vmem>>, vector<1x32xf32>
    %24 = vector.broadcast %23 : vector<1x32xf32> to vector<16x32xf32>
    %25 = arith.addf %22, %24 : vector<16x32xf32>
    %c0_9 = arith.constant 0 : index
    %c0_10 = arith.constant 0 : index
    %26 = vector.load %arg4[%c0_9, %c0_10] : memref<16x32xf32, #tpu.memory_space<vmem>>, vector<16x32xf32>
    tpu.vector_store %arg4[%c0_9, %c0_10], %25 {strides = array<i32>} : memref<16x32xf32, #tpu.memory_space<vmem>>, vector<16x32xf32>,
    return
  }
  func.func @transform_0(%arg0: i32) -> (i32, i32) {
    %c0_i32 = arith.constant 0 : i32
    %c0_i32_0 = arith.constant 0 : i32
    return %arg0, %c0_i32 : i32, i32
  }
  func.func @transform_1(%arg0: i32) -> (i32, i32) {
    %c0_i32 = arith.constant 0 : i32
    %c0_i32_0 = arith.constant 0 : i32
    %c0_i32_1 = arith.constant 0 : i32
    return %c0_i32, %c0_i32_0 : i32, i32
  }
  func.func @transform_2(%arg0: i32) -> (i32, i32) {
    %c0_i32 = arith.constant 0 : i32
    %c0_i32_0 = arith.constant 0 : i32
    %c0_i32_1 = arith.constant 0 : i32
    return %c0_i32, %c0_i32_0 : i32, i32
  }
  func.func @transform_3(%arg0: i32) -> (i32, i32) {
    %c0_i32 = arith.constant 0 : i32
    %c0_i32_0 = arith.constant 0 : i32
    return %arg0, %c0_i32 : i32, i32
  }
}

module attributes {stable_mosaic.version = 11 : i64} {
  func.func @_ffn_kernel(%arg0: i32, %arg1: i32, %arg2: memref<16x32xbf16, #tpu.memory_space<vmem>>, %arg3: memref<1x32xf32, #tpu.memory_space<vmem>>, %arg4: memref<1x32xf32, #tpu.memory_space<vmem>>, %arg5: memref<32x64xbf16, #tpu.memory_space<vmem>>, %arg6: memref<1x64xf32, #tpu.memory_space<vmem>>, %arg7: memref<64x32xbf16, #tpu.memory_space<vmem>>, %arg8: memref<1x32xf32, #tpu.memory_space<vmem>>, %arg9: memref<16x32xbf16, #tpu.memory_space<vmem>>, %arg10: memref<16x32xf32, #tpu.memory_space<vmem>>, %arg11: memref<16x32xbf16, #tpu.memory_space<vmem>>) attributes {dimension_semantics = [#tpu.dimension_semantics<parallel>, #tpu.dimension_semantics<arbitrary>], iteration_bounds = array<i64: 1, 1>, scalar_prefetch = 0 : i64, scratch_operands = 2 : i64, tpu.core_type = #tpu.core_type<tc>, window_params = [{transform_indices = @transform_0, window_bounds = array<i64: 16, 32>}, {pipeline_mode = #tpu.pipeline_mode<synchronous>, transform_indices = @transform_1, window_bounds = array<i64: 1, 32>}, {pipeline_mode = #tpu.pipeline_mode<synchronous>, transform_indices = @transform_2, window_bounds = array<i64: 1, 32>}, {transform_indices = @transform_3, window_bounds = array<i64: 32, 64>}, {transform_indices = @transform_4, window_bounds = array<i64: 1, 64>}, {transform_indices = @transform_5, window_bounds = array<i64: 64, 32>}, {pipeline_mode = #tpu.pipeline_mode<synchronous>, transform_indices = @transform_6, window_bounds = array<i64: 1, 32>}, {transform_indices = @transform_7, window_bounds = array<i64: 16, 32>}]} {
    %c0_i32 = arith.constant 0 : i32
    %0 = arith.cmpi eq, %arg1, %c0_i32 : i32
    %1 = arith.extui %0 : i1 to i32
    %c0_i32_0 = arith.constant 0 : i32
    %2 = arith.cmpi ne, %1, %c0_i32_0 : i32
    scf.if %2 {
      %c0_16 = arith.constant 0 : index
      %c0_17 = arith.constant 0 : index
      %20 = vector.load %arg2[%c0_16, %c0_17] : memref<16x32xbf16, #tpu.memory_space<vmem>>, vector<16x32xbf16>
      %21 = arith.extf %20 : vector<16x32xbf16> to vector<16x32xf32>
      %cst_18 = arith.constant dense<0.000000e+00> : vector<16xf32>
      %22 = vector.multi_reduction <add>, %21, %cst_18 [1] : vector<16x32xf32> to vector<16xf32>
      %23 = vector.shape_cast %22 : vector<16xf32> to vector<16x1xf32>
      %cst_19 = arith.constant 3.200000e+01 : f32
      %24 = vector.broadcast %cst_19 : f32 to vector<16x1xf32>
      %25 = arith.divf %23, %24 : vector<16x1xf32>
      %26 = vector.broadcast %25 : vector<16x1xf32> to vector<16x32xf32>
      %27 = arith.subf %21, %26 : vector<16x32xf32>
      %28 = arith.mulf %27, %27 : vector<16x32xf32>
      %cst_20 = arith.constant dense<0.000000e+00> : vector<16xf32>
      %29 = vector.multi_reduction <add>, %28, %cst_20 [1] : vector<16x32xf32> to vector<16xf32>
      %30 = vector.shape_cast %29 : vector<16xf32> to vector<16x1xf32>
      %cst_21 = arith.constant 3.200000e+01 : f32
      %31 = vector.broadcast %cst_21 : f32 to vector<16x1xf32>
      %32 = arith.divf %30, %31 : vector<16x1xf32>
      %33 = vector.broadcast %25 : vector<16x1xf32> to vector<16x32xf32>
      %34 = arith.subf %21, %33 : vector<16x32xf32>
      %cst_22 = arith.constant 9.99999974E-6 : f32
      %35 = vector.broadcast %cst_22 : f32 to vector<16x1xf32>
      %36 = arith.addf %32, %35 : vector<16x1xf32>
      %37 = math.rsqrt %36 : vector<16x1xf32>
      %38 = vector.broadcast %37 : vector<16x1xf32> to vector<16x32xf32>
      %39 = arith.mulf %34, %38 : vector<16x32xf32>
      %c0_23 = arith.constant 0 : index
      %c0_24 = arith.constant 0 : index
      %40 = vector.load %arg3[%c0_23, %c0_24] : memref<1x32xf32, #tpu.memory_space<vmem>>, vector<1x32xf32>
      %41 = vector.broadcast %40 : vector<1x32xf32> to vector<16x32xf32>
      %42 = arith.mulf %39, %41 : vector<16x32xf32>
      %c0_25 = arith.constant 0 : index
      %c0_26 = arith.constant 0 : index
      %43 = vector.load %arg4[%c0_25, %c0_26] : memref<1x32xf32, #tpu.memory_space<vmem>>, vector<1x32xf32>
      %44 = vector.broadcast %43 : vector<1x32xf32> to vector<16x32xf32>
      %45 = arith.addf %42, %44 : vector<16x32xf32>
      %46 = arith.truncf %45 : vector<16x32xf32> to vector<16x32xbf16>
      %c0_27 = arith.constant 0 : index
      %c0_28 = arith.constant 0 : index
      %47 = vector.load %arg11[%c0_27, %c0_28] : memref<16x32xbf16, #tpu.memory_space<vmem>>, vector<16x32xbf16>
      tpu.vector_store %arg11[%c0_27, %c0_28], %46 {strides = array<i32>} : memref<16x32xbf16, #tpu.memory_space<vmem>>, vector<16x32xbf16>,
      %cst_29 = arith.constant 0.000000e+00 : f32
      %48 = vector.broadcast %cst_29 : f32 to vector<16x32xf32>
      %c0_30 = arith.constant 0 : index
      %c0_31 = arith.constant 0 : index
      %49 = vector.load %arg10[%c0_30, %c0_31] : memref<16x32xf32, #tpu.memory_space<vmem>>, vector<16x32xf32>
      tpu.vector_store %arg10[%c0_30, %c0_31], %48 {strides = array<i32>} : memref<16x32xf32, #tpu.memory_space<vmem>>, vector<16x32xf32>,
    } else {
    }
    %c0 = arith.constant 0 : index
    %c0_1 = arith.constant 0 : index
    %3 = vector.load %arg11[%c0, %c0_1] : memref<16x32xbf16, #tpu.memory_space<vmem>>, vector<16x32xbf16>
    %c0_2 = arith.constant 0 : index
    %c0_3 = arith.constant 0 : index
    %4 = vector.load %arg5[%c0_2, %c0_3] : memref<32x64xbf16, #tpu.memory_space<vmem>>, vector<32x64xbf16>
    %cst = arith.constant dense<0.000000e+00> : vector<16x64xf32>
    %5 = tpu.matmul %3, %4, %cst {dimension_numbers = #tpu.dot_dimension_numbers<[1], [0], [0], [1], [0, 0, 1, 1], [], []>} : vector<16x32xbf16>, vector<32x64xbf16>, vector<16x64xf32> -> vector<16x64xf32>
    %c0_4 = arith.constant 0 : index
    %c0_5 = arith.constant 0 : index
    %6 = vector.load %arg6[%c0_4, %c0_5] : memref<1x64xf32, #tpu.memory_space<vmem>>, vector<1x64xf32>
    %7 = vector.broadcast %6 : vector<1x64xf32> to vector<16x64xf32>
    %8 = arith.addf %5, %7 : vector<16x64xf32>
    %cst_6 = arith.constant 0.000000e+00 : f32
    %9 = vector.broadcast %cst_6 : f32 to vector<16x64xf32>
    %10 = arith.maximumf %8, %9 : vector<16x64xf32>
    %c0_7 = arith.constant 0 : index
    %c0_8 = arith.constant 0 : index
    %11 = vector.load %arg10[%c0_7, %c0_8] : memref<16x32xf32, #tpu.memory_space<vmem>>, vector<16x32xf32>
    %12 = arith.truncf %10 : vector<16x64xf32> to vector<16x64xbf16>
    %c0_9 = arith.constant 0 : index
    %c0_10 = arith.constant 0 : index
    %13 = vector.load %arg7[%c0_9, %c0_10] : memref<64x32xbf16, #tpu.memory_space<vmem>>, vector<64x32xbf16>
    %cst_11 = arith.constant dense<0.000000e+00> : vector<16x32xf32>
    %14 = tpu.matmul %12, %13, %cst_11 {dimension_numbers = #tpu.dot_dimension_numbers<[1], [0], [0], [1], [0, 0, 1, 1], [], []>} : vector<16x64xbf16>, vector<64x32xbf16>, vector<16x32xf32> -> vector<16x32xf32>
    %15 = arith.addf %11, %14 : vector<16x32xf32>
    %c0_12 = arith.constant 0 : index
    %c0_13 = arith.constant 0 : index
    %16 = vector.load %arg10[%c0_12, %c0_13] : memref<16x32xf32, #tpu.memory_space<vmem>>, vector<16x32xf32>
    tpu.vector_store %arg10[%c0_12, %c0_13], %15 {strides = array<i32>} : memref<16x32xf32, #tpu.memory_space<vmem>>, vector<16x32xf32>,
    %c0_i32_14 = arith.constant 0 : i32
    %17 = arith.cmpi eq, %arg1, %c0_i32_14 : i32
    %18 = arith.extui %17 : i1 to i32
    %c0_i32_15 = arith.constant 0 : i32
    %19 = arith.cmpi ne, %18, %c0_i32_15 : i32
    scf.if %19 {
      %c0_16 = arith.constant 0 : index
      %c0_17 = arith.constant 0 : index
      %20 = vector.load %arg2[%c0_16, %c0_17] : memref<16x32xbf16, #tpu.memory_space<vmem>>, vector<16x32xbf16>
      %21 = arith.extf %20 : vector<16x32xbf16> to vector<16x32xf32>
      %c0_18 = arith.constant 0 : index
      %c0_19 = arith.constant 0 : index
      %22 = vector.load %arg10[%c0_18, %c0_19] : memref<16x32xf32, #tpu.memory_space<vmem>>, vector<16x32xf32>
      %23 = arith.addf %21, %22 : vector<16x32xf32>
      %c0_20 = arith.constant 0 : index
      %c0_21 = arith.constant 0 : index
      %24 = vector.load %arg8[%c0_20, %c0_21] : memref<1x32xf32, #tpu.memory_space<vmem>>, vector<1x32xf32>
      %25 = vector.broadcast %24 : vector<1x32xf32> to vector<16x32xf32>
      %26 = arith.addf %23, %25 : vector<16x32xf32>
      %27 = arith.truncf %26 : vector<16x32xf32> to vector<16x32xbf16>
      %c0_22 = arith.constant 0 : index
      %c0_23 = arith.constant 0 : index
      %28 = vector.load %arg9[%c0_22, %c0_23] : memref<16x32xbf16, #tpu.memory_space<vmem>>, vector<16x32xbf16>
      tpu.vector_store %arg9[%c0_22, %c0_23], %27 {strides = array<i32>} : memref<16x32xbf16, #tpu.memory_space<vmem>>, vector<16x32xbf16>,
    } else {
    }
    return
  }
  func.func @transform_0(%arg0: i32, %arg1: i32) -> (i32, i32) {
    %c0_i32 = arith.constant 0 : i32
    %c0_i32_0 = arith.constant 0 : i32
    return %arg0, %c0_i32 : i32, i32
  }
  func.func @transform_1(%arg0: i32, %arg1: i32) -> (i32, i32) {
    %c0_i32 = arith.constant 0 : i32
    %c0_i32_0 = arith.constant 0 : i32
    %c0_i32_1 = arith.constant 0 : i32
    return %c0_i32, %c0_i32_0 : i32, i32
  }
  func.func @transform_2(%arg0: i32, %arg1: i32) -> (i32, i32) {
    %c0_i32 = arith.constant 0 : i32
    %c0_i32_0 = arith.constant 0 : i32
    %c0_i32_1 = arith.constant 0 : i32
    return %c0_i32, %c0_i32_0 : i32, i32
  }
  func.func @transform_3(%arg0: i32, %arg1: i32) -> (i32, i32) {
    %c0_i32 = arith.constant 0 : i32
    %c0_i32_0 = arith.constant 0 : i32
    return %c0_i32, %arg1 : i32, i32
  }
  func.func @transform_4(%arg0: i32, %arg1: i32) -> (i32, i32) {
    %c0_i32 = arith.constant 0 : i32
    %c0_i32_0 = arith.constant 0 : i32
    return %c0_i32, %arg1 : i32, i32
  }
  func.func @transform_5(%arg0: i32, %arg1: i32) -> (i32, i32) {
    %c0_i32 = arith.constant 0 : i32
    %c0_i32_0 = arith.constant 0 : i32
    return %arg1, %c0_i32 : i32, i32
  }
  func.func @transform_6(%arg0: i32, %arg1: i32) -> (i32, i32) {
    %c0_i32 = arith.constant 0 : i32
    %c0_i32_0 = arith.constant 0 : i32
    %c0_i32_1 = arith.constant 0 : i32
    return %c0_i32, %c0_i32_0 : i32, i32
  }
  func.func @transform_7(%arg0: i32, %arg1: i32) -> (i32, i32) {
    %c0_i32 = arith.constant 0 : i32
    %c0_i32_0 = arith.constant 0 : i32
    return %arg0, %c0_i32 : i32, i32
  }
}

</mosaic_0001>

<llo_original>
// kernel: decoder_forward.17
$region0: #{decoder_forward.17}
  #allocation0 [shape = 'u32[]', space=smem, size = 0x4, offset = 0x4, fixed_abs, tag = 'smem constant byte address 0x4 - core index']
  #allocation1 [shape = 'u32[144,128]{1,0:T(1,128)}', space=vmem, size = 0x12000, scoped, tag = 'internal scratch']
  #allocation2 [shape = 'bf16[16,32]{1,0:T(16,128)(2,1)}', space=vmem, size = 0x1000, scoped, tag = 'scratch operand']
  %s0 = inlined_call_operand.vmem [shape: bf16[16,32], index: 0, kind: input, shape index: {}]
  %s1 = inlined_call_operand.vmem [shape: f32[1,32], index: 1, kind: input, shape index: {}]
  %s2 = inlined_call_operand.vmem [shape: f32[1,32], index: 2, kind: input, shape index: {}]
  %s3 = inlined_call_operand.vmem [shape: bf16[32,96], index: 3, kind: input, shape index: {}]
  %s4 = inlined_call_operand.vmem [shape: f32[1,96], index: 4, kind: input, shape index: {}]
  %s5 = inlined_call_operand.vmem [shape: bf16[16,96], index: 5, kind: output, shape index: {}]
  %s6 = sld [smem:[#allocation0]]
  $region34: #{decoder_forward.17} parent=0
    _
  %s8 = ssub.s32 1, %s6
  %s9 = scalar_select 0, %s8, %s6
  // Predicated region
  $region2: #{decoder_forward.17} parent=0 // pred_check
    _
  $region3: #{decoder_forward.17} parent=0 // pred_check_branch
    %11 = sbr.rel (0) target = $region5
  $region4: #{decoder_forward.17} parent=0 // pred_region
    _
  $region5: #{decoder_forward.17} parent=0 // pred_fallthru
    _
  // Predicated region
  $region6: #{decoder_forward.17} parent=0 // pred_check
    _
  $region7: #{decoder_forward.17} parent=0 // pred_check_branch
    %13 = sbr.rel (0) target = $region9
  $region8: #{decoder_forward.17} parent=0 // pred_region
    _
  $region9: #{decoder_forward.17} parent=0 // pred_fallthru
    _
  // Predicated region
  $region10: #{decoder_forward.17} parent=0 // pred_check
    _
  $region11: #{decoder_forward.17} parent=0 // pred_check_branch
    %15 = sbr.rel (0) target = $region13
  $region12: #{decoder_forward.17} parent=0 // pred_region
    _
  $region13: #{decoder_forward.17} parent=0 // pred_fallthru
    _
  // Predicated region
  $region14: #{decoder_forward.17} parent=0 // pred_check
    _
  $region15: #{decoder_forward.17} parent=0 // pred_check_branch
    %17 = sbr.rel (0) target = $region17
  $region16: #{decoder_forward.17} parent=0 // pred_region
    _
  $region17: #{decoder_forward.17} parent=0 // pred_fallthru
    _
  // Predicated region
  $region18: #{decoder_forward.17} parent=0 // pred_check
    _
  $region19: #{decoder_forward.17} parent=0 // pred_check_branch
    %19 = sbr.rel (0) target = $region21
  $region20: #{decoder_forward.17} parent=0 // pred_region
    _
  $region21: #{decoder_forward.17} parent=0 // pred_fallthru
    _
  %p21 = scmp.eq.s32.totalorder 0, 0
  // Predicated region
  $region22: #{decoder_forward.17} parent=0 // pred_check
    %p22 = pneg %p21
  $region23: #{decoder_forward.17} parent=0 // pred_check_branch
    %24 = sbr.rel (%p22) target = $region25
  $region24: #{decoder_forward.17} parent=0 // pred_region
    %v25 = vld [vmem:[%s0] sm:$0xf]
    %v26 = vld [vmem:[%s0 + $0x4] sm:$0xf]
    %v27 = vunpack.c.l.bf16 %v25
    %v28 = vunpack.c.l.bf16 %v26
    %vm29 = vcmask 261120
    %v30 = vsel %vm29, %v27, 0.0
    %31 = vadd.xlane.f32.xlu0 %v30
    %v32 = vpop.xlane.xlu0 %31
    %v33 = vsel %vm29, %v28, 0.0
    %34 = vadd.xlane.f32.xlu0 %v33
    %v35 = vpop.xlane.xlu0 %34
    %v36 = vrcp.pop 32.0
    %v37 = vmul.f32 %v32, %v36
    %v38 = vmul.f32 %v35, %v36
    %v39 = vsub.f32 %v27, %v37
    %v40 = vsub.f32 %v28, %v38
    %v41 = vmul.f32 %v39, %v39
    %v42 = vmul.f32 %v40, %v40
    %v43 = vsel %vm29, %v41, 0.0
    %44 = vadd.xlane.f32.xlu0 %v43
    %v45 = vpop.xlane.xlu0 %44
    %v46 = vsel %vm29, %v42, 0.0
    %47 = vadd.xlane.f32.xlu0 %v46
    %v48 = vpop.xlane.xlu0 %47
    %v49 = vmul.f32 %v45, %v36
    %v50 = vmul.f32 %v48, %v36
    %v51 = vadd.f32 %v49, 1e-05
    %v52 = vadd.f32 %v50, 1e-05
    %v53 = vrsqrt.pop %v51
    %v54 = vrsqrt.pop %v52
    %v55 = vmul.f32 %v39, %v53
    %v56 = vmul.f32 %v40, %v54
    %v57 = vld [vmem:[%s1] sm:$0x1]
    %v59 = vlaneseq
    %v60 = vshrl.u32 %v59, 7
    %v61 = vsub.s32 0, %v60
    %v62 = vrot.slane %v57, %v61
    %v64 = vmul.f32 %v55, %v62
    %v65 = vmul.f32 %v56, %v62
    %v66 = vld [vmem:[%s2] sm:$0x1]
    %v68 = vlaneseq
    %v69 = vshrl.u32 %v68, 7
    %v70 = vsub.s32 0, %v69
    %v71 = vrot.slane %v66, %v70
    %v73 = vadd.f32 %v64, %v71
    %v74 = vadd.f32 %v65, %v71
    %v75 = vpack.c.bf16 %v74, %v73
    %76 = vst.msk [vmem:[#allocation2] sm:$0xff] %vm29, %v75
  $region25: #{decoder_forward.17} parent=0 // pred_fallthru
    _
  %v77 = vld [vmem:[#allocation2] sm:$0xff]
  %v78 = vld [vmem:[%s3] sm:$0xf]
  %v79 = vld [vmem:[%s3 + $0x4] sm:$0xf]
  %v80 = vld [vmem:[%s3 + $0x8] sm:$0xf]
  %v81 = vld [vmem:[%s3 + $0xc] sm:$0xf]
  %v82 = vld [vmem:[%s4] sm:$0x1]
  %v84 = vlaneseq
  %v85 = vshrl.u32 %v84, 7
  %v86 = vsub.s32 0, %v85
  %v87 = vrot.slane %v82, %v86
  %v93 = vunpack.c.l.b16 %v78
  %v94 = vunpack.c.l.b16 %v79
  %v95 = vunpack.c.l.b16 %v80
  %v96 = vunpack.c.l.b16 %v81
  %v97 = vpack.c.b16 %v94, %v93
  %v98 = vpack.c.b16 %v96, %v95
  %vm101 = vcmask 261120
  %v103 = vsel %vm101, %v77, 0
  %105 = vmatprep.subr.bf16.mxu0 0
  %106 = vmatpush1.bf16.msra.mxu0 %v97
  %107 = vmatprep.subr.bf16.mxu0 0
  %108 = vmatpush1.bf16.msra.mxu0 %v98
  %109 = vmatprep.subr.bf16.mxu0 0
  %110 = vmatpush1.bf16.msra.mxu0 0
  %111 = vmatprep.subr.bf16.mxu0 0
  %112 = vmatpush1.bf16.msra.mxu0 0
  %113 = vmatprep.subr.bf16.mxu0 0
  %114 = vmatpush1.bf16.msra.mxu0 0
  %115 = vmatprep.subr.bf16.mxu0 0
  %116 = vmatpush1.bf16.msra.mxu0 0
  %117 = vmatprep.subr.bf16.mxu0 0
  %118 = vmatpush1.bf16.msra.mxu0 0
  %119 = vmatprep.subr.bf16.mxu0 0
  %120 = vmatpush1.bf16.msra.mxu0 0
  %121 = vmatprep.subr.bf16.mxu0 0
  %122 = vmatpush1.bf16.msra.mxu0 0
  %123 = vmatprep.subr.bf16.mxu0 0
  %124 = vmatpush1.bf16.msra.mxu0 0
  %125 = vmatprep.subr.bf16.mxu0 0
  %126 = vmatpush1.bf16.msra.mxu0 0
  %127 = vmatprep.subr.bf16.mxu0 0
  %128 = vmatpush1.bf16.msra.mxu0 0
  %129 = vmatprep.subr.bf16.mxu0 0
  %130 = vmatpush1.bf16.msra.mxu0 0
  %131 = vmatprep.subr.bf16.mxu0 0
  %132 = vmatpush1.bf16.msra.mxu0 0
  %133 = vmatprep.subr.bf16.mxu0 0
  %134 = vmatpush1.bf16.msra.mxu0 0
  %135 = vmatprep.subr.bf16.mxu0 0
  %136 = vmatpush1.bf16.msra.mxu0 0
  %137 = vmatprep.mubr.bf16.mxu0 0
  %138 = vmatmul.mubr.bf16.gmra.mrb[0].mxu0 %v103
  %v139 = vpop.f32.mrb[0].mxu0
  %v140 = vadd.f32 %v87, %v139
  %v141 = vpop.f32.mrb[0].mxu0
  %v142 = vpop.f32.mrb[0].mxu0
  %v143 = vadd.f32 %v87, %v142
  %v144 = vpop.f32.mrb[0].mxu0
  %145 = vdwg.mxu0
  %v146 = vpack.c.bf16 %v143, %v140
  %v148 = vunpack.c.l.b16 %v146
  %v149 = vunpack.c.h.b16 %v146
  %v150 = vpack.c.b16 %v148, %v148
  %v151 = vpack.c.b16 %v149, %v149
  %vm154 = vcmask 781312
  %155 = vst.msk [vmem:[%s5] sm:$0xf] %vm154, %v150
  %156 = vst.msk [vmem:[%s5 + $0x4] sm:$0xf] %vm154, %v151
  // Predicated region
  $region26: #{decoder_forward.17} parent=0 // pred_check
    _
  $region27: #{decoder_forward.17} parent=0 // pred_check_branch
    %158 = sbr.rel (0) target = $region29
  $region28: #{decoder_forward.17} parent=0 // pred_region
    _
  $region29: #{decoder_forward.17} parent=0 // pred_fallthru
    _
  // Predicated region
  $region30: #{decoder_forward.17} parent=0 // pred_check
    _
  $region31: #{decoder_forward.17} parent=0 // pred_check_branch
    %160 = sbr.rel (0) target = $region33
  $region32: #{decoder_forward.17} parent=0 // pred_region
    _
  $region33: #{decoder_forward.17} parent=0 // pred_fallthru
    _

// kernel: decoder_forward.18
$region0: #{decoder_forward.18}
  #allocation0 [shape = 'u32[]', space=smem, size = 0x4, offset = 0x4, fixed_abs, tag = 'smem constant byte address 0x4 - core index']
  #allocation1 [shape = 'u32[144,128]{1,0:T(1,128)}', space=vmem, size = 0x12000, scoped, tag = 'internal scratch']
  %s0 = inlined_call_operand.vmem [shape: bf16[2,4,8,8], index: 0, kind: input, shape index: {}]
  %s1 = inlined_call_operand.vmem [shape: bf16[2,4,8,8], index: 1, kind: input, shape index: {}]
  %s2 = inlined_call_operand.vmem [shape: bf16[2,4,8,8], index: 2, kind: input, shape index: {}]
  %s3 = inlined_call_operand.vmem [shape: s32[2,1,8], index: 3, kind: input, shape index: {}]
  %s4 = inlined_call_operand.vmem [shape: bf16[2,4,8,8], index: 4, kind: output, shape index: {}]
  %s5 = sld [smem:[#allocation0]]
  $region49: #{decoder_forward.18} parent=0
    _
  %s7 = ssub.s32 1, %s5
  %s8 = scalar_select 0, %s7, %s5
  loop: start=0, step=1, limit=10
  $region2: #{decoder_forward.18} parent=0 // loop_pre_header
    _
  $region3: #{decoder_forward.18} parent=0 // loop_header
    %s10 = sphi 0, %s14
    %p11 = scmp.ge.s32.totalorder %s10, 10
    %s17 = sphi 0, %s29
    %s18 = sphi 0, %s25
    %s19 = sphi 0, %s17
    %s20 = sphi 0, %s18
    %s21 = sphi 0, %s19
    %s22 = sphi 0, %s20
    %s34 = sphi 0, %s36
    %s37 = sphi 0, %s34
    %s38 = sphi 0, %s37
    %s54 = sphi 0, %s38
    %s62 = sphi 0, %s64
    %s65 = sphi 0, %s62
    %s66 = sphi 0, %s65
    %s82 = sphi 0, %s66
    %s90 = sphi 0, %s92
    %s93 = sphi 0, %s90
    %s94 = sphi 0, %s93
    %s110 = sphi 0, %s94
    %s116 = sphi 0, %s118
    %s119 = sphi 0, %s116
    %s120 = sphi 0, %s119
    %s136 = sphi 0, %s120
    %s144 = sphi 0, %s146
    %s147 = sphi 0, %s144
    %s148 = sphi 0, %s147
    %s164 = sphi 0, %s148
  $region4: #{decoder_forward.18} parent=0 // loop_header_branch
    %13 = sbr.rel (%p11) target = $region8
  $region5: #{decoder_forward.18} parent=0 // loop_body
    %s15 = ssub.s32 %s10, 1
    %s16 = ssub.s32 %s10, 2
    %s23 = sadd.s32 1, %s18
    %p24 = scmp.ge.s32.totalorder %s23, 4
    %s25 = scalar_select %p24, 0, %s23
    %s26 = sadd.s32 1, %s17
    %s27 = scalar_select %p24, %s26, %s17
    %p28 = scmp.ge.s32.totalorder %s27, 2
    %s29 = scalar_select %p28, 0, %s27
    %s30 = ssub.s32 %s17, %s29
    %s31 = ssub.s32 %s18, %s25
    %s32 = sor.u32 %s30, %s31
    %p33 = scmp.eq.s32.totalorder %s32, 0
    %s35 = sadd.s32 %s34, 1
    %s36 = scalar_select %p33, %s34, %s35
    %p39 = pneg %p33
    %p40 = scmp.eq.s32.totalorder %s10, 7
    %p41 = por %p39, %p40
    %p42 = scmp.ne.s32.totalorder %s34, %s37
    %p43 = scmp.eq.s32.totalorder %s10, 0
    %p44 = por %p42, %p43
    %p45 = scmp.ne.s32.totalorder %s34, %s37
    %p46 = scmp.eq.s32.totalorder %s15, 7
    %p47 = por %p45, %p46
    %p48 = scmp.ne.s32.totalorder %s37, %s38
    %p49 = scmp.eq.s32.totalorder %s15, 0
    %p50 = por %p48, %p49
    %p51 = scmp.ne.s32.totalorder %s37, %s38
    %p52 = scmp.eq.s32.totalorder %s16, 7
    %p53 = por %p51, %p52
    %p55 = scmp.ne.s32.totalorder %s38, %s54
    %p56 = scmp.eq.s32.totalorder %s16, 0
    %p57 = por %p55, %p56
    %s58 = ssub.s32 %s17, %s29
    %s59 = ssub.s32 %s18, %s25
    %s60 = sor.u32 %s58, %s59
    %p61 = scmp.eq.s32.totalorder %s60, 0
    %s63 = sadd.s32 %s62, 1
    %s64 = scalar_select %p61, %s62, %s63
    %p67 = pneg %p61
    %p68 = scmp.eq.s32.totalorder %s10, 7
    %p69 = por %p67, %p68
    %p70 = scmp.ne.s32.totalorder %s62, %s65
    %p71 = scmp.eq.s32.totalorder %s10, 0
    %p72 = por %p70, %p71
    %p73 = scmp.ne.s32.totalorder %s62, %s65
    %p74 = scmp.eq.s32.totalorder %s15, 7
    %p75 = por %p73, %p74
    %p76 = scmp.ne.s32.totalorder %s65, %s66
    %p77 = scmp.eq.s32.totalorder %s15, 0
    %p78 = por %p76, %p77
    %p79 = scmp.ne.s32.totalorder %s65, %s66
    %p80 = scmp.eq.s32.totalorder %s16, 7
    %p81 = por %p79, %p80
    %p83 = scmp.ne.s32.totalorder %s66, %s82
    %p84 = scmp.eq.s32.totalorder %s16, 0
    %p85 = por %p83, %p84
    %s86 = ssub.s32 %s17, %s29
    %s87 = ssub.s32 %s18, %s25
    %s88 = sor.u32 %s86, %s87
    %p89 = scmp.eq.s32.totalorder %s88, 0
    %s91 = sadd.s32 %s90, 1
    %s92 = scalar_select %p89, %s90, %s91
    %p95 = pneg %p89
    %p96 = scmp.eq.s32.totalorder %s10, 7
    %p97 = por %p95, %p96
    %p98 = scmp.ne.s32.totalorder %s90, %s93
    %p99 = scmp.eq.s32.totalorder %s10, 0
    %p100 = por %p98, %p99
    %p101 = scmp.ne.s32.totalorder %s90, %s93
    %p102 = scmp.eq.s32.totalorder %s15, 7
    %p103 = por %p101, %p102
    %p104 = scmp.ne.s32.totalorder %s93, %s94
    %p105 = scmp.eq.s32.totalorder %s15, 0
    %p106 = por %p104, %p105
    %p107 = scmp.ne.s32.totalorder %s93, %s94
    %p108 = scmp.eq.s32.totalorder %s16, 7
    %p109 = por %p107, %p108
    %p111 = scmp.ne.s32.totalorder %s94, %s110
    %p112 = scmp.eq.s32.totalorder %s16, 0
    %p113 = por %p111, %p112
    %s114 = ssub.s32 %s17, %s29
    %p115 = scmp.eq.s32.totalorder %s114, 0
    %s117 = sadd.s32 %s116, 1
    %s118 = scalar_select %p115, %s116, %s117
    %p121 = pneg %p115
    %p122 = scmp.eq.s32.totalorder %s10, 7
    %p123 = por %p121, %p122
    %p124 = scmp.ne.s32.totalorder %s116, %s119
    %p125 = scmp.eq.s32.totalorder %s10, 0
    %p126 = por %p124, %p125
    %p127 = scmp.ne.s32.totalorder %s116, %s119
    %p128 = scmp.eq.s32.totalorder %s15, 7
    %p129 = por %p127, %p128
    %p130 = scmp.ne.s32.totalorder %s119, %s120
    %p131 = scmp.eq.s32.totalorder %s15, 0
    %p132 = por %p130, %p131
    %p133 = scmp.ne.s32.totalorder %s119, %s120
    %p134 = scmp.eq.s32.totalorder %s16, 7
    %p135 = por %p133, %p134
    %p137 = scmp.ne.s32.totalorder %s120, %s136
    %p138 = scmp.eq.s32.totalorder %s16, 0
    %p139 = por %p137, %p138
    %s140 = ssub.s32 %s17, %s29
    %s141 = ssub.s32 %s18, %s25
    %s142 = sor.u32 %s140, %s141
    %p143 = scmp.eq.s32.totalorder %s142, 0
    %s145 = sadd.s32 %s144, 1
    %s146 = scalar_select %p143, %s144, %s145
    %p149 = pneg %p143
    %p150 = scmp.eq.s32.totalorder %s10, 7
    %p151 = por %p149, %p150
    %p152 = scmp.ne.s32.totalorder %s144, %s147
    %p153 = scmp.eq.s32.totalorder %s10, 0
    %p154 = por %p152, %p153
    %p155 = scmp.ne.s32.totalorder %s144, %s147
    %p156 = scmp.eq.s32.totalorder %s15, 7
    %p157 = por %p155, %p156
    %p158 = scmp.ne.s32.totalorder %s147, %s148
    %p159 = scmp.eq.s32.totalorder %s15, 0
    %p160 = por %p158, %p159
    %p161 = scmp.ne.s32.totalorder %s147, %s148
    %p162 = scmp.eq.s32.totalorder %s16, 7
    %p163 = por %p161, %p162
    %p165 = scmp.ne.s32.totalorder %s148, %s164
    %p166 = scmp.eq.s32.totalorder %s16, 0
    %p167 = por %p165, %p166
    %p168 = scmp.le.s32.totalorder 1, %s10
    %p169 = scmp.lt.s32.totalorder %s10, 9
    %p170 = pnand %p168, %p169
    %p171 = pneg %p170
    // Predicated region
    $region9: #{decoder_forward.18} parent=5 // pred_check
      _
    $region10: #{decoder_forward.18} parent=5 // pred_check_branch
      %173 = sbr.rel (%p170) target = $region12
    $region11: #{decoder_forward.18} parent=5 // pred_region
      %s174 = ssub.s32 %s10, 1
    $region12: #{decoder_forward.18} parent=5 // pred_fallthru
      _
    %p175 = scmp.lt.s32.totalorder %s10, 8
    // Predicated region
    $region13: #{decoder_forward.18} parent=5 // pred_check
      %p176 = pneg %p175
    $region14: #{decoder_forward.18} parent=5 // pred_check_branch
      %178 = sbr.rel (%p176) target = $region16
    $region15: #{decoder_forward.18} parent=5 // pred_region
      // Predicated region
      $region17: #{decoder_forward.18} parent=15 // pred_check
        %p179 = pneg %p44
      $region18: #{decoder_forward.18} parent=15 // pred_check_branch
        %181 = sbr.rel (%p179) target = $region20
      $region19: #{decoder_forward.18} parent=15 // pred_region
        %p182 = scmp.lt.s32.totalorder %s17, 1
        %s183 = scalar_select %p182, %s17, 1
        %p184 = scmp.lt.s32.totalorder %s18, 3
        %s185 = scalar_select %p184, %s18, 3
        %s186 = smul.addr %s183, 4
        %s187 = sadd.s32 %s185, %s186
        %s188 = smul.addr %s187, 4
        %s189 = scalar_lea.vmem %s0, %s188
      $region20: #{decoder_forward.18} parent=15 // pred_fallthru
        _
      // Predicated region
      $region21: #{decoder_forward.18} parent=15 // pred_check
        %p190 = pneg %p72
      $region22: #{decoder_forward.18} parent=15 // pred_check_branch
        %192 = sbr.rel (%p190) target = $region24
      $region23: #{decoder_forward.18} parent=15 // pred_region
        %p193 = scmp.lt.s32.totalorder %s17, 1
        %s194 = scalar_select %p193, %s17, 1
        %p195 = scmp.lt.s32.totalorder %s18, 3
        %s196 = scalar_select %p195, %s18, 3
        %s197 = smul.addr %s194, 4
        %s198 = sadd.s32 %s196, %s197
        %s199 = smul.addr %s198, 4
        %s200 = scalar_lea.vmem %s1, %s199
      $region24: #{decoder_forward.18} parent=15 // pred_fallthru
        _
      // Predicated region
      $region25: #{decoder_forward.18} parent=15 // pred_check
        %p201 = pneg %p100
      $region26: #{decoder_forward.18} parent=15 // pred_check_branch
        %203 = sbr.rel (%p201) target = $region28
      $region27: #{decoder_forward.18} parent=15 // pred_region
        %p204 = scmp.lt.s32.totalorder %s17, 1
        %s205 = scalar_select %p204, %s17, 1
        %p206 = scmp.lt.s32.totalorder %s18, 3
        %s207 = scalar_select %p206, %s18, 3
        %s208 = smul.addr %s205, 4
        %s209 = sadd.s32 %s207, %s208
        %s210 = smul.addr %s209, 4
        %s211 = scalar_lea.vmem %s2, %s210
      $region28: #{decoder_forward.18} parent=15 // pred_fallthru
        _
      // Predicated region
      $region29: #{decoder_forward.18} parent=15 // pred_check
        %p212 = pneg %p126
      $region30: #{decoder_forward.18} parent=15 // pred_check_branch
        %214 = sbr.rel (%p212) target = $region32
      $region31: #{decoder_forward.18} parent=15 // pred_region
        %p215 = scmp.lt.s32.totalorder %s17, 1
        %s216 = scalar_select %p215, %s17, 1
        %s217 = scalar_lea.vmem %s3, %s216
      $region32: #{decoder_forward.18} parent=15 // pred_fallthru
        _
    $region16: #{decoder_forward.18} parent=5 // pred_fallthru
      _
    %p218 = scmp.le.s32.totalorder 1, %s10
    %p219 = scmp.lt.s32.totalorder %s10, 9
    %p220 = pnand %p218, %p219
    %p221 = pneg %p220
    // Predicated region
    $region33: #{decoder_forward.18} parent=5 // pred_check
      _
    $region34: #{decoder_forward.18} parent=5 // pred_check_branch
      %223 = sbr.rel (%p220) target = $region36
    $region35: #{decoder_forward.18} parent=5 // pred_region
      %s224 = ssub.s32 %s10, 1
      %p225 = scmp.lt.s32.totalorder %s19, 1
      %s226 = scalar_select %p225, %s19, 1
      %p227 = scmp.lt.s32.totalorder %s20, 3
      %s228 = scalar_select %p227, %s20, 3
      %s229 = smul.addr %s226, 4
      %s230 = sadd.s32 %s228, %s229
      %s231 = smul.addr %s230, 4
      %s232 = scalar_lea.vmem %s0, %s231
      %p233 = pneg %p50
      %p234 = pneg %p47
      %p235 = scmp.lt.s32.totalorder %s19, 1
      %s236 = scalar_select %p235, %s19, 1
      %p237 = scmp.lt.s32.totalorder %s20, 3
      %s238 = scalar_select %p237, %s20, 3
      %s239 = smul.addr %s236, 4
      %s240 = sadd.s32 %s238, %s239
      %s241 = smul.addr %s240, 4
      %s242 = scalar_lea.vmem %s1, %s241
      %p243 = pneg %p78
      %p244 = pneg %p75
      %p245 = scmp.lt.s32.totalorder %s19, 1
      %s246 = scalar_select %p245, %s19, 1
      %p247 = scmp.lt.s32.totalorder %s20, 3
      %s248 = scalar_select %p247, %s20, 3
      %s249 = smul.addr %s246, 4
      %s250 = sadd.s32 %s248, %s249
      %s251 = smul.addr %s250, 4
      %s252 = scalar_lea.vmem %s2, %s251
      %p253 = pneg %p106
      %p254 = pneg %p103
      %p255 = scmp.lt.s32.totalorder %s19, 1
      %s256 = scalar_select %p255, %s19, 1
      %s257 = scalar_lea.vmem %s3, %s256
      %p258 = pneg %p132
      %p259 = pneg %p129
      %p260 = pneg %p160
      %p261 = pneg %p157
      %p262 = scmp.lt.s32.totalorder %s19, 1
      %s263 = scalar_select %p262, %s19, 1
      %p264 = scmp.lt.s32.totalorder %s20, 3
      %s265 = scalar_select %p264, %s20, 3
      %s266 = smul.addr %s263, 4
      %s267 = sadd.s32 %s265, %s266
      %s268 = smul.addr %s267, 4
      %s269 = scalar_lea.vmem %s4, %s268
      %p270 = scmp.lt.s32.totalorder %s19, 1
      %s271 = scalar_select %p270, %s19, 1
      %p272 = scmp.lt.s32.totalorder %s20, 3
      %s273 = scalar_select %p272, %s20, 3
      %s274 = smul.addr %s271, 4
      %s275 = sadd.s32 %s273, %s274
      %s276 = smul.addr %s275, 4
      %s277 = scalar_lea.vmem %s0, %s276
      %p278 = scmp.lt.s32.totalorder %s19, 1
      %s279 = scalar_select %p278, %s19, 1
      %p280 = scmp.lt.s32.totalorder %s20, 3
      %s281 = scalar_select %p280, %s20, 3
      %s282 = smul.addr %s279, 4
      %s283 = sadd.s32 %s281, %s282
      %s284 = smul.addr %s283, 4
      %s285 = scalar_lea.vmem %s1, %s284
      %p286 = scmp.lt.s32.totalorder %s19, 1
      %s287 = scalar_select %p286, %s19, 1
      %p288 = scmp.lt.s32.totalorder %s20, 3
      %s289 = scalar_select %p288, %s20, 3
      %s290 = smul.addr %s287, 4
      %s291 = sadd.s32 %s289, %s290
      %s292 = smul.addr %s291, 4
      %s293 = scalar_lea.vmem %s2, %s292
      %p294 = scmp.lt.s32.totalorder %s19, 1
      %s295 = scalar_select %p294, %s19, 1
      %s296 = scalar_lea.vmem %s3, %s295
      %p297 = scmp.lt.s32.totalorder %s19, 1
      %s298 = scalar_select %p297, %s19, 1
      %p299 = scmp.lt.s32.totalorder %s20, 3
      %s300 = scalar_select %p299, %s20, 3
      %s301 = smul.addr %s298, 4
      %s302 = sadd.s32 %s300, %s301
      %s303 = smul.addr %s302, 4
      %s304 = scalar_lea.vmem %s4, %s303
      %v307 = vld [vmem:[%s277] sm:$0xf]
      %v308 = vmul.bf16 %v307, 1052065461
      %v309 = vld [vmem:[%s285] sm:$0xf]
      %v310 = vld [vmem:[%s293] sm:$0xf]
      %vm311 = vcmask 64512
      %v313 = vsel %vm311, %v308, 0
      %v316 = vsel %vm311, %v309, 0
      %318 = vmatprep.subr.bf16.mxu0 0
      %319 = vmatpush1.bf16.xpose.msra.mxu0 %v316
      %320 = vmatprep.subr.bf16.mxu0 0
      %321 = vmatpush1.bf16.xpose.msra.mxu0 0
      %322 = vmatprep.subr.bf16.mxu0 0
      %323 = vmatpush1.bf16.xpose.msra.mxu0 0
      %324 = vmatprep.subr.bf16.mxu0 0
      %325 = vmatpush1.bf16.xpose.msra.mxu0 0
      %326 = vmatprep.subr.bf16.mxu0 0
      %327 = vmatpush1.bf16.xpose.msra.mxu0 0
      %328 = vmatprep.subr.bf16.mxu0 0
      %329 = vmatpush1.bf16.xpose.msra.mxu0 0
      %330 = vmatprep.subr.bf16.mxu0 0
      %331 = vmatpush1.bf16.xpose.msra.mxu0 0
      %332 = vmatprep.subr.bf16.mxu0 0
      %333 = vmatpush1.bf16.xpose.msra.mxu0 0
      %334 = vmatprep.subr.bf16.mxu0 0
      %335 = vmatpush1.bf16.xpose.msra.mxu0 0
      %336 = vmatprep.subr.bf16.mxu0 0
      %337 = vmatpush1.bf16.xpose.msra.mxu0 0
      %338 = vmatprep.subr.bf16.mxu0 0
      %339 = vmatpush1.bf16.xpose.msra.mxu0 0
      %340 = vmatprep.subr.bf16.mxu0 0
      %341 = vmatpush1.bf16.xpose.msra.mxu0 0
      %342 = vmatprep.subr.bf16.mxu0 0
      %343 = vmatpush1.bf16.xpose.msra.mxu0 0
      %344 = vmatprep.subr.bf16.mxu0 0
      %345 = vmatpush1.bf16.xpose.msra.mxu0 0
      %346 = vmatprep.subr.bf16.mxu0 0
      %347 = vmatpush1.bf16.xpose.msra.mxu0 0
      %348 = vmatprep.subr.bf16.mxu0 0
      %349 = vmatpush1.bf16.xpose.msra.mxu0 0
      %350 = vmatprep.mubr.bf16.mxu0 0
      %351 = vmatmul.mubr.bf16.gmra.mrb[0].mxu0 %v313
      %v352 = vpop.f32.mrb[0].mxu0
      %v353 = vadd.f32 0.0, %v352
      %v354 = vpop.f32.mrb[0].mxu0
      %v355 = vpop.f32.mrb[0].mxu0
      %v356 = vpop.f32.mrb[0].mxu0
      %357 = vdwg.mxu0
      %v358 = vld [vmem:[%s296] sm:$0x1]
      %vm359 = vcmp.gt.s32.totalorder %v358, 0
      %v360 = vsel %vm359, 1, 0
      %v361 = vlaneseq
      %v362 = vshrl.u32 %v361, 7
      %v363 = vsub.s32 0, %v362
      %v364 = vrot.slane %v360, %v363
      %vm365 = vcmp.eq.s32.totalorder %v364, 1
      %v366 = vlaneseq
      %v367 = vshrl.u32 %v366, 7
      %v368 = vlaneseq
      %v369 = vand.u32 %v368, 127
      %vm370 = vcmp.le.s32.totalorder %v369, %v367
      %vm371 = vmand %vm365, %vm370
      %v372 = vsel %vm371, %v353, -1e+09
      %v373 = vsel %vm311, %v372, -inf
      %374 = vmax.xlane.f32.xlu0 %v373
      %v375 = vpop.xlane.xlu0 %374
      %v376 = vsub.f32 %v372, %v375
      %v377 = vmul.f32 %v376, 1.442695
      %v378 = vpow.pop %v377
      %v379 = vsel %vm311, %v378, 0.0
      %380 = vadd.xlane.f32.xlu0 %v379
      %v381 = vpop.xlane.xlu0 %380
      %v382 = vrcp.pop %v381
      %v383 = vmul.f32 %v378, %v382
      %v384 = vpack.c.bf16 %v383, %v383
      %v386 = vsel %vm311, %v384, 0
      %vm388 = vcmask 1043456
      %v390 = vsel %vm388, %v310, 0
      %392 = vmatprep.subr.bf16.mxu0 0
      %393 = vmatpush1.bf16.msra.mxu0 %v390
      %394 = vmatprep.subr.bf16.mxu0 0
      %395 = vmatpush1.bf16.msra.mxu0 0
      %396 = vmatprep.subr.bf16.mxu0 0
      %397 = vmatpush1.bf16.msra.mxu0 0
      %398 = vmatprep.subr.bf16.mxu0 0
      %399 = vmatpush1.bf16.msra.mxu0 0
      %400 = vmatprep.subr.bf16.mxu0 0
      %401 = vmatpush1.bf16.msra.mxu0 0
      %402 = vmatprep.subr.bf16.mxu0 0
      %403 = vmatpush1.bf16.msra.mxu0 0
      %404 = vmatprep.subr.bf16.mxu0 0
      %405 = vmatpush1.bf16.msra.mxu0 0
      %406 = vmatprep.subr.bf16.mxu0 0
      %407 = vmatpush1.bf16.msra.mxu0 0
      %408 = vmatprep.subr.bf16.mxu0 0
      %409 = vmatpush1.bf16.msra.mxu0 0
      %410 = vmatprep.subr.bf16.mxu0 0
      %411 = vmatpush1.bf16.msra.mxu0 0
      %412 = vmatprep.subr.bf16.mxu0 0
      %413 = vmatpush1.bf16.msra.mxu0 0
      %414 = vmatprep.subr.bf16.mxu0 0
      %415 = vmatpush1.bf16.msra.mxu0 0
      %416 = vmatprep.subr.bf16.mxu0 0
      %417 = vmatpush1.bf16.msra.mxu0 0
      %418 = vmatprep.subr.bf16.mxu0 0
      %419 = vmatpush1.bf16.msra.mxu0 0
      %420 = vmatprep.subr.bf16.mxu0 0
      %421 = vmatpush1.bf16.msra.mxu0 0
      %422 = vmatprep.subr.bf16.mxu0 0
      %423 = vmatpush1.bf16.msra.mxu0 0
      %424 = vmatprep.mubr.bf16.mxu0 0
      %425 = vmatmul.mubr.bf16.gmra.mrb[0].mxu0 %v386
      %v426 = vpop.f32.mrb[0].mxu0
      %v427 = vadd.f32 0.0, %v426
      %v428 = vpop.f32.mrb[0].mxu0
      %v429 = vpop.f32.mrb[0].mxu0
      %v430 = vpop.f32.mrb[0].mxu0
      %431 = vdwg.mxu0
      %v432 = vpack.c.bf16 %v427, %v427
      %vm433 = vcmask 60416
      %434 = vst.msk [vmem:[%s304] sm:$0xf] %vm433, %v432
      %p435 = scmp.lt.s32.totalorder %s19, 1
      %s436 = scalar_select %p435, %s19, 1
      %p437 = scmp.lt.s32.totalorder %s20, 3
      %s438 = scalar_select %p437, %s20, 3
      %s439 = smul.addr %s436, 4
      %s440 = sadd.s32 %s438, %s439
      %s441 = smul.addr %s440, 4
      %s442 = scalar_lea.vmem %s4, %s441
      // Predicated region
      $region37: #{decoder_forward.18} parent=35 // pred_check
        %p443 = pneg %p157
      $region38: #{decoder_forward.18} parent=35 // pred_check_branch
        %445 = sbr.rel (%p443) target = $region40
      $region39: #{decoder_forward.18} parent=35 // pred_region
        _
      $region40: #{decoder_forward.18} parent=35 // pred_fallthru
        _
    $region36: #{decoder_forward.18} parent=5 // pred_fallthru
      _
    %p446 = scmp.le.s32.totalorder 2, %s10
    // Predicated region
    $region41: #{decoder_forward.18} parent=5 // pred_check
      %p447 = pneg %p446
    $region42: #{decoder_forward.18} parent=5 // pred_check_branch
      %449 = sbr.rel (%p447) target = $region44
    $region43: #{decoder_forward.18} parent=5 // pred_region
      %s450 = ssub.s32 %s10, 2
      // Predicated region
      $region45: #{decoder_forward.18} parent=43 // pred_check
        %p451 = pneg %p163
      $region46: #{decoder_forward.18} parent=43 // pred_check_branch
        %453 = sbr.rel (%p451) target = $region48
      $region47: #{decoder_forward.18} parent=43 // pred_region
        %p454 = scmp.lt.s32.totalorder %s21, 1
        %s455 = scalar_select %p454, %s21, 1
        %p456 = scmp.lt.s32.totalorder %s22, 3
        %s457 = scalar_select %p456, %s22, 3
        %s458 = smul.addr %s455, 4
        %s459 = sadd.s32 %s457, %s458
        %s460 = smul.addr %s459, 4
        %s461 = scalar_lea.vmem %s4, %s460
      $region48: #{decoder_forward.18} parent=43 // pred_fallthru
        _
    $region44: #{decoder_forward.18} parent=5 // pred_fallthru
      _
  $region6: #{decoder_forward.18} parent=0 // loop_footer
    %s14 = sadd.s32 1, %s10
  $region7: #{decoder_forward.18} parent=0 // loop_footer_branch
    %9 = sbr.rel target = $region3
  $region8: #{decoder_forward.18} parent=0 // loop_exit
    _

// kernel: decoder_forward.20
$region0: #{decoder_forward.20}
  #allocation0 [shape = 'u32[]', space=smem, size = 0x4, offset = 0x4, fixed_abs, tag = 'smem constant byte address 0x4 - core index']
  #allocation1 [shape = 'u32[144,128]{1,0:T(1,128)}', space=vmem, size = 0x12000, scoped, tag = 'internal scratch']
  #allocation2 [shape = 'bf16[16,32]{1,0:T(16,128)(2,1)}', space=vmem, size = 0x1000, scoped, tag = 'scratch operand']
  %s0 = inlined_call_operand.vmem [shape: bf16[16,32], index: 0, kind: input, shape index: {}]
  %s1 = inlined_call_operand.vmem [shape: f32[1,32], index: 1, kind: input, shape index: {}]
  %s2 = inlined_call_operand.vmem [shape: f32[1,32], index: 2, kind: input, shape index: {}]
  %s3 = inlined_call_operand.vmem [shape: bf16[32,32], index: 3, kind: input, shape index: {}]
  %s4 = inlined_call_operand.vmem [shape: f32[1,32], index: 4, kind: input, shape index: {}]
  %s5 = inlined_call_operand.vmem [shape: bf16[16,32], index: 5, kind: output, shape index: {}]
  %s6 = sld [smem:[#allocation0]]
  $region34: #{decoder_forward.20} parent=0
    _
  %s8 = ssub.s32 1, %s6
  %s9 = scalar_select 0, %s8, %s6
  // Predicated region
  $region2: #{decoder_forward.20} parent=0 // pred_check
    _
  $region3: #{decoder_forward.20} parent=0 // pred_check_branch
    %11 = sbr.rel (0) target = $region5
  $region4: #{decoder_forward.20} parent=0 // pred_region
    _
  $region5: #{decoder_forward.20} parent=0 // pred_fallthru
    _
  // Predicated region
  $region6: #{decoder_forward.20} parent=0 // pred_check
    _
  $region7: #{decoder_forward.20} parent=0 // pred_check_branch
    %13 = sbr.rel (0) target = $region9
  $region8: #{decoder_forward.20} parent=0 // pred_region
    _
  $region9: #{decoder_forward.20} parent=0 // pred_fallthru
    _
  // Predicated region
  $region10: #{decoder_forward.20} parent=0 // pred_check
    _
  $region11: #{decoder_forward.20} parent=0 // pred_check_branch
    %15 = sbr.rel (0) target = $region13
  $region12: #{decoder_forward.20} parent=0 // pred_region
    _
  $region13: #{decoder_forward.20} parent=0 // pred_fallthru
    _
  // Predicated region
  $region14: #{decoder_forward.20} parent=0 // pred_check
    _
  $region15: #{decoder_forward.20} parent=0 // pred_check_branch
    %17 = sbr.rel (0) target = $region17
  $region16: #{decoder_forward.20} parent=0 // pred_region
    _
  $region17: #{decoder_forward.20} parent=0 // pred_fallthru
    _
  // Predicated region
  $region18: #{decoder_forward.20} parent=0 // pred_check
    _
  $region19: #{decoder_forward.20} parent=0 // pred_check_branch
    %19 = sbr.rel (0) target = $region21
  $region20: #{decoder_forward.20} parent=0 // pred_region
    _
  $region21: #{decoder_forward.20} parent=0 // pred_fallthru
    _
  %p21 = scmp.eq.s32.totalorder 0, 0
  // Predicated region
  $region22: #{decoder_forward.20} parent=0 // pred_check
    %p22 = pneg %p21
  $region23: #{decoder_forward.20} parent=0 // pred_check_branch
    %24 = sbr.rel (%p22) target = $region25
  $region24: #{decoder_forward.20} parent=0 // pred_region
    %v25 = vld [vmem:[%s0] sm:$0xf]
    %v26 = vld [vmem:[%s0 + $0x4] sm:$0xf]
    %v27 = vunpack.c.l.bf16 %v25
    %v28 = vunpack.c.l.bf16 %v26
    %vm29 = vcmask 261120
    %v30 = vsel %vm29, %v27, 0.0
    %31 = vadd.xlane.f32.xlu0 %v30
    %v32 = vpop.xlane.xlu0 %31
    %v33 = vsel %vm29, %v28, 0.0
    %34 = vadd.xlane.f32.xlu0 %v33
    %v35 = vpop.xlane.xlu0 %34
    %v36 = vrcp.pop 32.0
    %v37 = vmul.f32 %v32, %v36
    %v38 = vmul.f32 %v35, %v36
    %v39 = vsub.f32 %v27, %v37
    %v40 = vsub.f32 %v28, %v38
    %v41 = vmul.f32 %v39, %v39
    %v42 = vmul.f32 %v40, %v40
    %v43 = vsel %vm29, %v41, 0.0
    %44 = vadd.xlane.f32.xlu0 %v43
    %v45 = vpop.xlane.xlu0 %44
    %v46 = vsel %vm29, %v42, 0.0
    %47 = vadd.xlane.f32.xlu0 %v46
    %v48 = vpop.xlane.xlu0 %47
    %v49 = vmul.f32 %v45, %v36
    %v50 = vmul.f32 %v48, %v36
    %v51 = vadd.f32 %v49, 1e-05
    %v52 = vadd.f32 %v50, 1e-05
    %v53 = vrsqrt.pop %v51
    %v54 = vrsqrt.pop %v52
    %v55 = vmul.f32 %v39, %v53
    %v56 = vmul.f32 %v40, %v54
    %v57 = vld [vmem:[%s1] sm:$0x1]
    %v59 = vlaneseq
    %v60 = vshrl.u32 %v59, 7
    %v61 = vsub.s32 0, %v60
    %v62 = vrot.slane %v57, %v61
    %v64 = vmul.f32 %v55, %v62
    %v65 = vmul.f32 %v56, %v62
    %v66 = vld [vmem:[%s2] sm:$0x1]
    %v68 = vlaneseq
    %v69 = vshrl.u32 %v68, 7
    %v70 = vsub.s32 0, %v69
    %v71 = vrot.slane %v66, %v70
    %v73 = vadd.f32 %v64, %v71
    %v74 = vadd.f32 %v65, %v71
    %v75 = vpack.c.bf16 %v74, %v73
    %76 = vst.msk [vmem:[#allocation2] sm:$0xff] %vm29, %v75
  $region25: #{decoder_forward.20} parent=0 // pred_fallthru
    _
  %v77 = vld [vmem:[#allocation2] sm:$0xff]
  %v78 = vld [vmem:[%s3] sm:$0xf]
  %v79 = vld [vmem:[%s3 + $0x4] sm:$0xf]
  %v80 = vld [vmem:[%s3 + $0x8] sm:$0xf]
  %v81 = vld [vmem:[%s3 + $0xc] sm:$0xf]
  %v82 = vld [vmem:[%s4] sm:$0x1]
  %v84 = vlaneseq
  %v85 = vshrl.u32 %v84, 7
  %v86 = vsub.s32 0, %v85
  %v87 = vrot.slane %v82, %v86
  %v93 = vunpack.c.l.b16 %v78
  %v94 = vunpack.c.l.b16 %v79
  %v95 = vunpack.c.l.b16 %v80
  %v96 = vunpack.c.l.b16 %v81
  %v97 = vpack.c.b16 %v94, %v93
  %v98 = vpack.c.b16 %v96, %v95
  %vm101 = vcmask 261120
  %v103 = vsel %vm101, %v77, 0
  %105 = vmatprep.subr.bf16.mxu0 0
  %106 = vmatpush1.bf16.msra.mxu0 %v97
  %107 = vmatprep.subr.bf16.mxu0 0
  %108 = vmatpush1.bf16.msra.mxu0 %v98
  %109 = vmatprep.subr.bf16.mxu0 0
  %110 = vmatpush1.bf16.msra.mxu0 0
  %111 = vmatprep.subr.bf16.mxu0 0
  %112 = vmatpush1.bf16.msra.mxu0 0
  %113 = vmatprep.subr.bf16.mxu0 0
  %114 = vmatpush1.bf16.msra.mxu0 0
  %115 = vmatprep.subr.bf16.mxu0 0
  %116 = vmatpush1.bf16.msra.mxu0 0
  %117 = vmatprep.subr.bf16.mxu0 0
  %118 = vmatpush1.bf16.msra.mxu0 0
  %119 = vmatprep.subr.bf16.mxu0 0
  %120 = vmatpush1.bf16.msra.mxu0 0
  %121 = vmatprep.subr.bf16.mxu0 0
  %122 = vmatpush1.bf16.msra.mxu0 0
  %123 = vmatprep.subr.bf16.mxu0 0
  %124 = vmatpush1.bf16.msra.mxu0 0
  %125 = vmatprep.subr.bf16.mxu0 0
  %126 = vmatpush1.bf16.msra.mxu0 0
  %127 = vmatprep.subr.bf16.mxu0 0
  %128 = vmatpush1.bf16.msra.mxu0 0
  %129 = vmatprep.subr.bf16.mxu0 0
  %130 = vmatpush1.bf16.msra.mxu0 0
  %131 = vmatprep.subr.bf16.mxu0 0
  %132 = vmatpush1.bf16.msra.mxu0 0
  %133 = vmatprep.subr.bf16.mxu0 0
  %134 = vmatpush1.bf16.msra.mxu0 0
  %135 = vmatprep.subr.bf16.mxu0 0
  %136 = vmatpush1.bf16.msra.mxu0 0
  %137 = vmatprep.mubr.bf16.mxu0 0
  %138 = vmatmul.mubr.bf16.gmra.mrb[0].mxu0 %v103
  %v139 = vpop.f32.mrb[0].mxu0
  %v140 = vadd.f32 %v87, %v139
  %v141 = vpop.f32.mrb[0].mxu0
  %v142 = vpop.f32.mrb[0].mxu0
  %v143 = vadd.f32 %v87, %v142
  %v144 = vpop.f32.mrb[0].mxu0
  %145 = vdwg.mxu0
  %v146 = vpack.c.bf16 %v143, %v140
  %v148 = vunpack.c.l.b16 %v146
  %v149 = vunpack.c.h.b16 %v146
  %v150 = vpack.c.b16 %v148, %v148
  %v151 = vpack.c.b16 %v149, %v149
  %vm154 = vcmask 257024
  %155 = vst.msk [vmem:[%s5] sm:$0xf] %vm154, %v150
  %156 = vst.msk [vmem:[%s5 + $0x4] sm:$0xf] %vm154, %v151
  // Predicated region
  $region26: #{decoder_forward.20} parent=0 // pred_check
    _
  $region27: #{decoder_forward.20} parent=0 // pred_check_branch
    %158 = sbr.rel (0) target = $region29
  $region28: #{decoder_forward.20} parent=0 // pred_region
    _
  $region29: #{decoder_forward.20} parent=0 // pred_fallthru
    _
  // Predicated region
  $region30: #{decoder_forward.20} parent=0 // pred_check
    _
  $region31: #{decoder_forward.20} parent=0 // pred_check_branch
    %160 = sbr.rel (0) target = $region33
  $region32: #{decoder_forward.20} parent=0 // pred_region
    _
  $region33: #{decoder_forward.20} parent=0 // pred_fallthru
    _

// kernel: decoder_forward.19
$region0: #{decoder_forward.19}
  #allocation0 [shape = 'u32[]', space=smem, size = 0x4, offset = 0x4, fixed_abs, tag = 'smem constant byte address 0x4 - core index']
  #allocation1 [shape = 'u32[144,128]{1,0:T(1,128)}', space=vmem, size = 0x12000, scoped, tag = 'internal scratch']
  #allocation2 [shape = 'f32[16,32]{1,0:T(8,128)}', space=vmem, size = 0x2000, scoped, tag = 'scratch operand']
  %s0 = inlined_call_operand.vmem [shape: bf16[16,32], index: 0, kind: input, shape index: {}]
  %s1 = inlined_call_operand.vmem [shape: bf16[32,32], index: 1, kind: input, shape index: {}]
  %s2 = inlined_call_operand.vmem [shape: f32[1,32], index: 2, kind: input, shape index: {}]
  %s3 = inlined_call_operand.vmem [shape: bf16[16,32], index: 3, kind: input, shape index: {}]
  %s4 = inlined_call_operand.vmem [shape: bf16[16,32], index: 4, kind: output, shape index: {}]
  %s5 = sld [smem:[#allocation0]]
  $region34: #{decoder_forward.19} parent=0
    _
  %s7 = ssub.s32 1, %s5
  %s8 = scalar_select 0, %s7, %s5
  // Predicated region
  $region2: #{decoder_forward.19} parent=0 // pred_check
    _
  $region3: #{decoder_forward.19} parent=0 // pred_check_branch
    %10 = sbr.rel (0) target = $region5
  $region4: #{decoder_forward.19} parent=0 // pred_region
    _
  $region5: #{decoder_forward.19} parent=0 // pred_fallthru
    _
  // Predicated region
  $region6: #{decoder_forward.19} parent=0 // pred_check
    _
  $region7: #{decoder_forward.19} parent=0 // pred_check_branch
    %12 = sbr.rel (0) target = $region9
  $region8: #{decoder_forward.19} parent=0 // pred_region
    _
  $region9: #{decoder_forward.19} parent=0 // pred_fallthru
    _
  // Predicated region
  $region10: #{decoder_forward.19} parent=0 // pred_check
    _
  $region11: #{decoder_forward.19} parent=0 // pred_check_branch
    %14 = sbr.rel (0) target = $region13
  $region12: #{decoder_forward.19} parent=0 // pred_region
    _
  $region13: #{decoder_forward.19} parent=0 // pred_fallthru
    _
  // Predicated region
  $region14: #{decoder_forward.19} parent=0 // pred_check
    _
  $region15: #{decoder_forward.19} parent=0 // pred_check_branch
    %16 = sbr.rel (0) target = $region17
  $region16: #{decoder_forward.19} parent=0 // pred_region
    _
  $region17: #{decoder_forward.19} parent=0 // pred_fallthru
    _
  %p18 = scmp.eq.s32.totalorder 0, 0
  // Predicated region
  $region18: #{decoder_forward.19} parent=0 // pred_check
    %p19 = pneg %p18
  $region19: #{decoder_forward.19} parent=0 // pred_check_branch
    %21 = sbr.rel (%p19) target = $region21
  $region20: #{decoder_forward.19} parent=0 // pred_region
    %vm22 = vcmask 261120
    %23 = vst.msk [vmem:[#allocation2] sm:$0xff] %vm22, 0.0
    %24 = vst.msk [vmem:[#allocation2 + $0x8] sm:$0xff] %vm22, 0.0
  $region21: #{decoder_forward.19} parent=0 // pred_fallthru
    _
  %v25 = vld [vmem:[#allocation2] sm:$0xff]
  %v26 = vld [vmem:[#allocation2 + $0x8] sm:$0xff]
  %v27 = vld [vmem:[%s0] sm:$0xf]
  %v28 = vld [vmem:[%s0 + $0x4] sm:$0xf]
  %v29 = vld [vmem:[%s1] sm:$0xf]
  %v30 = vld [vmem:[%s1 + $0x4] sm:$0xf]
  %v31 = vld [vmem:[%s1 + $0x8] sm:$0xf]
  %v32 = vld [vmem:[%s1 + $0xc] sm:$0xf]
  %v35 = vunpack.c.l.b16 %v27
  %v36 = vunpack.c.l.b16 %v28
  %v37 = vpack.c.b16 %v36, %v35
  %v42 = vunpack.c.l.b16 %v29
  %v43 = vunpack.c.l.b16 %v30
  %v44 = vunpack.c.l.b16 %v31
  %v45 = vunpack.c.l.b16 %v32
  %v46 = vpack.c.b16 %v43, %v42
  %v47 = vpack.c.b16 %v45, %v44
  %vm50 = vcmask 261120
  %v52 = vsel %vm50, %v37, 0
  %54 = vmatprep.subr.bf16.mxu0 0
  %55 = vmatpush1.bf16.msra.mxu0 %v46
  %56 = vmatprep.subr.bf16.mxu0 0
  %57 = vmatpush1.bf16.msra.mxu0 %v47
  %58 = vmatprep.subr.bf16.mxu0 0
  %59 = vmatpush1.bf16.msra.mxu0 0
  %60 = vmatprep.subr.bf16.mxu0 0
  %61 = vmatpush1.bf16.msra.mxu0 0
  %62 = vmatprep.subr.bf16.mxu0 0
  %63 = vmatpush1.bf16.msra.mxu0 0
  %64 = vmatprep.subr.bf16.mxu0 0
  %65 = vmatpush1.bf16.msra.mxu0 0
  %66 = vmatprep.subr.bf16.mxu0 0
  %67 = vmatpush1.bf16.msra.mxu0 0
  %68 = vmatprep.subr.bf16.mxu0 0
  %69 = vmatpush1.bf16.msra.mxu0 0
  %70 = vmatprep.subr.bf16.mxu0 0
  %71 = vmatpush1.bf16.msra.mxu0 0
  %72 = vmatprep.subr.bf16.mxu0 0
  %73 = vmatpush1.bf16.msra.mxu0 0
  %74 = vmatprep.subr.bf16.mxu0 0
  %75 = vmatpush1.bf16.msra.mxu0 0
  %76 = vmatprep.subr.bf16.mxu0 0
  %77 = vmatpush1.bf16.msra.mxu0 0
  %78 = vmatprep.subr.bf16.mxu0 0
  %79 = vmatpush1.bf16.msra.mxu0 0
  %80 = vmatprep.subr.bf16.mxu0 0
  %81 = vmatpush1.bf16.msra.mxu0 0
  %82 = vmatprep.subr.bf16.mxu0 0
  %83 = vmatpush1.bf16.msra.mxu0 0
  %84 = vmatprep.subr.bf16.mxu0 0
  %85 = vmatpush1.bf16.msra.mxu0 0
  %86 = vmatprep.mubr.bf16.mxu0 0
  %87 = vmatmul.mubr.bf16.gmra.mrb[0].mxu0 %v52
  %v88 = vpop.f32.mrb[0].mxu0
  %v89 = vadd.f32 0.0, %v88
  %v90 = vpop.f32.mrb[0].mxu0
  %v91 = vpop.f32.mrb[0].mxu0
  %v92 = vadd.f32 0.0, %v91
  %v93 = vpop.f32.mrb[0].mxu0
  %94 = vdwg.mxu0
  %v95 = vadd.f32 %v25, %v89
  %v96 = vadd.f32 %v26, %v92
  %97 = vst.msk [vmem:[#allocation2] sm:$0xff] %vm50, %v95
  %98 = vst.msk [vmem:[#allocation2 + $0x8] sm:$0xff] %vm50, %v96
  // Predicated region
  $region22: #{decoder_forward.19} parent=0 // pred_check
    %p99 = pneg %p18
  $region23: #{decoder_forward.19} parent=0 // pred_check_branch
    %101 = sbr.rel (%p99) target = $region25
  $region24: #{decoder_forward.19} parent=0 // pred_region
    %v102 = vld [vmem:[#allocation2] sm:$0xff]
    %v103 = vld [vmem:[#allocation2 + $0x8] sm:$0xff]
    %v104 = vld [vmem:[%s2] sm:$0x1]
    %v106 = vlaneseq
    %v107 = vshrl.u32 %v106, 7
    %v108 = vsub.s32 0, %v107
    %v109 = vrot.slane %v104, %v108
    %v111 = vadd.f32 %v102, %v109
    %v112 = vadd.f32 %v103, %v109
    %v113 = vld [vmem:[%s3] sm:$0xf]
    %v114 = vld [vmem:[%s3 + $0x4] sm:$0xf]
    %v115 = vunpack.c.l.bf16 %v113
    %v116 = vunpack.c.l.bf16 %v114
    %v117 = vadd.f32 %v111, %v115
    %v118 = vadd.f32 %v112, %v116
    %v119 = vpack.c.bf16 %v118, %v117
    %v121 = vunpack.c.l.b16 %v119
    %v122 = vunpack.c.h.b16 %v119
    %v123 = vpack.c.b16 %v121, %v121
    %v124 = vpack.c.b16 %v122, %v122
    %vm127 = vcmask 257024
    %128 = vst.msk [vmem:[%s4] sm:$0xf] %vm127, %v123
    %129 = vst.msk [vmem:[%s4 + $0x4] sm:$0xf] %vm127, %v124
  $region25: #{decoder_forward.19} parent=0 // pred_fallthru
    _
  // Predicated region
  $region26: #{decoder_forward.19} parent=0 // pred_check
    _
  $region27: #{decoder_forward.19} parent=0 // pred_check_branch
    %131 = sbr.rel (0) target = $region29
  $region28: #{decoder_forward.19} parent=0 // pred_region
    _
  $region29: #{decoder_forward.19} parent=0 // pred_fallthru
    _
  // Predicated region
  $region30: #{decoder_forward.19} parent=0 // pred_check
    _
  $region31: #{decoder_forward.19} parent=0 // pred_check_branch
    %133 = sbr.rel (0) target = $region33
  $region32: #{decoder_forward.19} parent=0 // pred_region
    _
  $region33: #{decoder_forward.19} parent=0 // pred_fallthru
    _

// kernel: decoder_forward.21
$region0: #{decoder_forward.21}
  #allocation0 [shape = 'u32[]', space=smem, size = 0x4, offset = 0x4, fixed_abs, tag = 'smem constant byte address 0x4 - core index']
  #allocation1 [shape = 'u32[144,128]{1,0:T(1,128)}', space=vmem, size = 0x12000, scoped, tag = 'internal scratch']
  #allocation2 [shape = 'f32[16,64]{1,0:T(8,128)}', space=vmem, size = 0x2000, scoped, tag = 'scratch operand']
  %s0 = inlined_call_operand.vmem [shape: bf16[16,32], index: 0, kind: input, shape index: {}]
  %s1 = inlined_call_operand.vmem [shape: bf16[32,64], index: 1, kind: input, shape index: {}]
  %s2 = inlined_call_operand.vmem [shape: f32[1,64], index: 2, kind: input, shape index: {}]
  %s3 = inlined_call_operand.vmem [shape: bf16[16,64], index: 3, kind: output, shape index: {}]
  %s4 = sld [smem:[#allocation0]]
  $region30: #{decoder_forward.21} parent=0
    _
  %s6 = ssub.s32 1, %s4
  %s7 = scalar_select 0, %s6, %s4
  // Predicated region
  $region2: #{decoder_forward.21} parent=0 // pred_check
    _
  $region3: #{decoder_forward.21} parent=0 // pred_check_branch
    %9 = sbr.rel (0) target = $region5
  $region4: #{decoder_forward.21} parent=0 // pred_region
    _
  $region5: #{decoder_forward.21} parent=0 // pred_fallthru
    _
  // Predicated region
  $region6: #{decoder_forward.21} parent=0 // pred_check
    _
  $region7: #{decoder_forward.21} parent=0 // pred_check_branch
    %11 = sbr.rel (0) target = $region9
  $region8: #{decoder_forward.21} parent=0 // pred_region
    _
  $region9: #{decoder_forward.21} parent=0 // pred_fallthru
    _
  // Predicated region
  $region10: #{decoder_forward.21} parent=0 // pred_check
    _
  $region11: #{decoder_forward.21} parent=0 // pred_check_branch
    %13 = sbr.rel (0) target = $region13
  $region12: #{decoder_forward.21} parent=0 // pred_region
    _
  $region13: #{decoder_forward.21} parent=0 // pred_fallthru
    _
  %p15 = scmp.eq.s32.totalorder 0, 0
  // Predicated region
  $region14: #{decoder_forward.21} parent=0 // pred_check
    %p16 = pneg %p15
  $region15: #{decoder_forward.21} parent=0 // pred_check_branch
    %18 = sbr.rel (%p16) target = $region17
  $region16: #{decoder_forward.21} parent=0 // pred_region
    %vm19 = vcmask 523264
    %20 = vst.msk [vmem:[#allocation2] sm:$0xff] %vm19, 0.0
    %21 = vst.msk [vmem:[#allocation2 + $0x8] sm:$0xff] %vm19, 0.0
  $region17: #{decoder_forward.21} parent=0 // pred_fallthru
    _
  %v22 = vld [vmem:[#allocation2] sm:$0xff]
  %v23 = vld [vmem:[#allocation2 + $0x8] sm:$0xff]
  %v24 = vld [vmem:[%s0] sm:$0xf]
  %v25 = vld [vmem:[%s0 + $0x4] sm:$0xf]
  %v26 = vld [vmem:[%s1] sm:$0xf]
  %v27 = vld [vmem:[%s1 + $0x4] sm:$0xf]
  %v28 = vld [vmem:[%s1 + $0x8] sm:$0xf]
  %v29 = vld [vmem:[%s1 + $0xc] sm:$0xf]
  %v32 = vunpack.c.l.b16 %v24
  %v33 = vunpack.c.l.b16 %v25
  %v34 = vpack.c.b16 %v33, %v32
  %v39 = vunpack.c.l.b16 %v26
  %v40 = vunpack.c.l.b16 %v27
  %v41 = vunpack.c.l.b16 %v28
  %v42 = vunpack.c.l.b16 %v29
  %v43 = vpack.c.b16 %v40, %v39
  %v44 = vpack.c.b16 %v42, %v41
  %vm47 = vcmask 261120
  %v49 = vsel %vm47, %v34, 0
  %51 = vmatprep.subr.bf16.mxu0 0
  %52 = vmatpush1.bf16.msra.mxu0 %v43
  %53 = vmatprep.subr.bf16.mxu0 0
  %54 = vmatpush1.bf16.msra.mxu0 %v44
  %55 = vmatprep.subr.bf16.mxu0 0
  %56 = vmatpush1.bf16.msra.mxu0 0
  %57 = vmatprep.subr.bf16.mxu0 0
  %58 = vmatpush1.bf16.msra.mxu0 0
  %59 = vmatprep.subr.bf16.mxu0 0
  %60 = vmatpush1.bf16.msra.mxu0 0
  %61 = vmatprep.subr.bf16.mxu0 0
  %62 = vmatpush1.bf16.msra.mxu0 0
  %63 = vmatprep.subr.bf16.mxu0 0
  %64 = vmatpush1.bf16.msra.mxu0 0
  %65 = vmatprep.subr.bf16.mxu0 0
  %66 = vmatpush1.bf16.msra.mxu0 0
  %67 = vmatprep.subr.bf16.mxu0 0
  %68 = vmatpush1.bf16.msra.mxu0 0
  %69 = vmatprep.subr.bf16.mxu0 0
  %70 = vmatpush1.bf16.msra.mxu0 0
  %71 = vmatprep.subr.bf16.mxu0 0
  %72 = vmatpush1.bf16.msra.mxu0 0
  %73 = vmatprep.subr.bf16.mxu0 0
  %74 = vmatpush1.bf16.msra.mxu0 0
  %75 = vmatprep.subr.bf16.mxu0 0
  %76 = vmatpush1.bf16.msra.mxu0 0
  %77 = vmatprep.subr.bf16.mxu0 0
  %78 = vmatpush1.bf16.msra.mxu0 0
  %79 = vmatprep.subr.bf16.mxu0 0
  %80 = vmatpush1.bf16.msra.mxu0 0
  %81 = vmatprep.subr.bf16.mxu0 0
  %82 = vmatpush1.bf16.msra.mxu0 0
  %83 = vmatprep.mubr.bf16.mxu0 0
  %84 = vmatmul.mubr.bf16.gmra.mrb[0].mxu0 %v49
  %v85 = vpop.f32.mrb[0].mxu0
  %v86 = vadd.f32 0.0, %v85
  %v87 = vpop.f32.mrb[0].mxu0
  %v88 = vpop.f32.mrb[0].mxu0
  %v89 = vadd.f32 0.0, %v88
  %v90 = vpop.f32.mrb[0].mxu0
  %91 = vdwg.mxu0
  %v92 = vadd.f32 %v22, %v86
  %v93 = vadd.f32 %v23, %v89
  %vm94 = vcmask 523264
  %95 = vst.msk [vmem:[#allocation2] sm:$0xff] %vm94, %v92
  %96 = vst.msk [vmem:[#allocation2 + $0x8] sm:$0xff] %vm94, %v93
  // Predicated region
  $region18: #{decoder_forward.21} parent=0 // pred_check
    %p97 = pneg %p15
  $region19: #{decoder_forward.21} parent=0 // pred_check_branch
    %99 = sbr.rel (%p97) target = $region21
  $region20: #{decoder_forward.21} parent=0 // pred_region
    %v100 = vld [vmem:[#allocation2] sm:$0xff]
    %v101 = vld [vmem:[#allocation2 + $0x8] sm:$0xff]
    %v102 = vld [vmem:[%s2] sm:$0x1]
    %v104 = vlaneseq
    %v105 = vshrl.u32 %v104, 7
    %v106 = vsub.s32 0, %v105
    %v107 = vrot.slane %v102, %v106
    %v109 = vadd.f32 %v100, %v107
    %v110 = vadd.f32 %v101, %v107
    %v111 = vpack.c.bf16 %v110, %v109
    %v113 = vunpack.c.l.b16 %v111
    %v114 = vunpack.c.h.b16 %v111
    %v115 = vpack.c.b16 %v113, %v113
    %v116 = vpack.c.b16 %v114, %v114
    %vm119 = vcmask 519168
    %120 = vst.msk [vmem:[%s3] sm:$0xf] %vm119, %v115
    %121 = vst.msk [vmem:[%s3 + $0x4] sm:$0xf] %vm119, %v116
  $region21: #{decoder_forward.21} parent=0 // pred_fallthru
    _
  // Predicated region
  $region22: #{decoder_forward.21} parent=0 // pred_check
    _
  $region23: #{decoder_forward.21} parent=0 // pred_check_branch
    %123 = sbr.rel (0) target = $region25
  $region24: #{decoder_forward.21} parent=0 // pred_region
    _
  $region25: #{decoder_forward.21} parent=0 // pred_fallthru
    _
  // Predicated region
  $region26: #{decoder_forward.21} parent=0 // pred_check
    _
  $region27: #{decoder_forward.21} parent=0 // pred_check_branch
    %125 = sbr.rel (0) target = $region29
  $region28: #{decoder_forward.21} parent=0 // pred_region
    _
  $region29: #{decoder_forward.21} parent=0 // pred_fallthru
    _

// kernel: decoder_forward.22
$region0: #{decoder_forward.22}
  #allocation0 [shape = 'u32[]', space=smem, size = 0x4, offset = 0x4, fixed_abs, tag = 'smem constant byte address 0x4 - core index']
  #allocation1 [shape = 'u32[144,128]{1,0:T(1,128)}', space=vmem, size = 0x12000, scoped, tag = 'internal scratch']
  %s0 = inlined_call_operand.vmem [shape: bf16[2,4,8,8], index: 0, kind: input, shape index: {}]
  %s1 = inlined_call_operand.vmem [shape: bf16[2,4,8,8], index: 1, kind: input, shape index: {}]
  %s2 = inlined_call_operand.vmem [shape: bf16[2,4,8,8], index: 2, kind: input, shape index: {}]
  %s3 = inlined_call_operand.vmem [shape: s32[2,1,8], index: 3, kind: input, shape index: {}]
  %s4 = inlined_call_operand.vmem [shape: bf16[2,4,8,8], index: 4, kind: output, shape index: {}]
  %s5 = sld [smem:[#allocation0]]
  $region49: #{decoder_forward.22} parent=0
    _
  %s7 = ssub.s32 1, %s5
  %s8 = scalar_select 0, %s7, %s5
  loop: start=0, step=1, limit=10
  $region2: #{decoder_forward.22} parent=0 // loop_pre_header
    _
  $region3: #{decoder_forward.22} parent=0 // loop_header
    %s10 = sphi 0, %s14
    %p11 = scmp.ge.s32.totalorder %s10, 10
    %s17 = sphi 0, %s29
    %s18 = sphi 0, %s25
    %s19 = sphi 0, %s17
    %s20 = sphi 0, %s18
    %s21 = sphi 0, %s19
    %s22 = sphi 0, %s20
    %s34 = sphi 0, %s36
    %s37 = sphi 0, %s34
    %s38 = sphi 0, %s37
    %s54 = sphi 0, %s38
    %s62 = sphi 0, %s64
    %s65 = sphi 0, %s62
    %s66 = sphi 0, %s65
    %s82 = sphi 0, %s66
    %s90 = sphi 0, %s92
    %s93 = sphi 0, %s90
    %s94 = sphi 0, %s93
    %s110 = sphi 0, %s94
    %s116 = sphi 0, %s118
    %s119 = sphi 0, %s116
    %s120 = sphi 0, %s119
    %s136 = sphi 0, %s120
    %s144 = sphi 0, %s146
    %s147 = sphi 0, %s144
    %s148 = sphi 0, %s147
    %s164 = sphi 0, %s148
  $region4: #{decoder_forward.22} parent=0 // loop_header_branch
    %13 = sbr.rel (%p11) target = $region8
  $region5: #{decoder_forward.22} parent=0 // loop_body
    %s15 = ssub.s32 %s10, 1
    %s16 = ssub.s32 %s10, 2
    %s23 = sadd.s32 1, %s18
    %p24 = scmp.ge.s32.totalorder %s23, 4
    %s25 = scalar_select %p24, 0, %s23
    %s26 = sadd.s32 1, %s17
    %s27 = scalar_select %p24, %s26, %s17
    %p28 = scmp.ge.s32.totalorder %s27, 2
    %s29 = scalar_select %p28, 0, %s27
    %s30 = ssub.s32 %s17, %s29
    %s31 = ssub.s32 %s18, %s25
    %s32 = sor.u32 %s30, %s31
    %p33 = scmp.eq.s32.totalorder %s32, 0
    %s35 = sadd.s32 %s34, 1
    %s36 = scalar_select %p33, %s34, %s35
    %p39 = pneg %p33
    %p40 = scmp.eq.s32.totalorder %s10, 7
    %p41 = por %p39, %p40
    %p42 = scmp.ne.s32.totalorder %s34, %s37
    %p43 = scmp.eq.s32.totalorder %s10, 0
    %p44 = por %p42, %p43
    %p45 = scmp.ne.s32.totalorder %s34, %s37
    %p46 = scmp.eq.s32.totalorder %s15, 7
    %p47 = por %p45, %p46
    %p48 = scmp.ne.s32.totalorder %s37, %s38
    %p49 = scmp.eq.s32.totalorder %s15, 0
    %p50 = por %p48, %p49
    %p51 = scmp.ne.s32.totalorder %s37, %s38
    %p52 = scmp.eq.s32.totalorder %s16, 7
    %p53 = por %p51, %p52
    %p55 = scmp.ne.s32.totalorder %s38, %s54
    %p56 = scmp.eq.s32.totalorder %s16, 0
    %p57 = por %p55, %p56
    %s58 = ssub.s32 %s17, %s29
    %s59 = ssub.s32 %s18, %s25
    %s60 = sor.u32 %s58, %s59
    %p61 = scmp.eq.s32.totalorder %s60, 0
    %s63 = sadd.s32 %s62, 1
    %s64 = scalar_select %p61, %s62, %s63
    %p67 = pneg %p61
    %p68 = scmp.eq.s32.totalorder %s10, 7
    %p69 = por %p67, %p68
    %p70 = scmp.ne.s32.totalorder %s62, %s65
    %p71 = scmp.eq.s32.totalorder %s10, 0
    %p72 = por %p70, %p71
    %p73 = scmp.ne.s32.totalorder %s62, %s65
    %p74 = scmp.eq.s32.totalorder %s15, 7
    %p75 = por %p73, %p74
    %p76 = scmp.ne.s32.totalorder %s65, %s66
    %p77 = scmp.eq.s32.totalorder %s15, 0
    %p78 = por %p76, %p77
    %p79 = scmp.ne.s32.totalorder %s65, %s66
    %p80 = scmp.eq.s32.totalorder %s16, 7
    %p81 = por %p79, %p80
    %p83 = scmp.ne.s32.totalorder %s66, %s82
    %p84 = scmp.eq.s32.totalorder %s16, 0
    %p85 = por %p83, %p84
    %s86 = ssub.s32 %s17, %s29
    %s87 = ssub.s32 %s18, %s25
    %s88 = sor.u32 %s86, %s87
    %p89 = scmp.eq.s32.totalorder %s88, 0
    %s91 = sadd.s32 %s90, 1
    %s92 = scalar_select %p89, %s90, %s91
    %p95 = pneg %p89
    %p96 = scmp.eq.s32.totalorder %s10, 7
    %p97 = por %p95, %p96
    %p98 = scmp.ne.s32.totalorder %s90, %s93
    %p99 = scmp.eq.s32.totalorder %s10, 0
    %p100 = por %p98, %p99
    %p101 = scmp.ne.s32.totalorder %s90, %s93
    %p102 = scmp.eq.s32.totalorder %s15, 7
    %p103 = por %p101, %p102
    %p104 = scmp.ne.s32.totalorder %s93, %s94
    %p105 = scmp.eq.s32.totalorder %s15, 0
    %p106 = por %p104, %p105
    %p107 = scmp.ne.s32.totalorder %s93, %s94
    %p108 = scmp.eq.s32.totalorder %s16, 7
    %p109 = por %p107, %p108
    %p111 = scmp.ne.s32.totalorder %s94, %s110
    %p112 = scmp.eq.s32.totalorder %s16, 0
    %p113 = por %p111, %p112
    %s114 = ssub.s32 %s17, %s29
    %p115 = scmp.eq.s32.totalorder %s114, 0
    %s117 = sadd.s32 %s116, 1
    %s118 = scalar_select %p115, %s116, %s117
    %p121 = pneg %p115
    %p122 = scmp.eq.s32.totalorder %s10, 7
    %p123 = por %p121, %p122
    %p124 = scmp.ne.s32.totalorder %s116, %s119
    %p125 = scmp.eq.s32.totalorder %s10, 0
    %p126 = por %p124, %p125
    %p127 = scmp.ne.s32.totalorder %s116, %s119
    %p128 = scmp.eq.s32.totalorder %s15, 7
    %p129 = por %p127, %p128
    %p130 = scmp.ne.s32.totalorder %s119, %s120
    %p131 = scmp.eq.s32.totalorder %s15, 0
    %p132 = por %p130, %p131
    %p133 = scmp.ne.s32.totalorder %s119, %s120
    %p134 = scmp.eq.s32.totalorder %s16, 7
    %p135 = por %p133, %p134
    %p137 = scmp.ne.s32.totalorder %s120, %s136
    %p138 = scmp.eq.s32.totalorder %s16, 0
    %p139 = por %p137, %p138
    %s140 = ssub.s32 %s17, %s29
    %s141 = ssub.s32 %s18, %s25
    %s142 = sor.u32 %s140, %s141
    %p143 = scmp.eq.s32.totalorder %s142, 0
    %s145 = sadd.s32 %s144, 1
    %s146 = scalar_select %p143, %s144, %s145
    %p149 = pneg %p143
    %p150 = scmp.eq.s32.totalorder %s10, 7
    %p151 = por %p149, %p150
    %p152 = scmp.ne.s32.totalorder %s144, %s147
    %p153 = scmp.eq.s32.totalorder %s10, 0
    %p154 = por %p152, %p153
    %p155 = scmp.ne.s32.totalorder %s144, %s147
    %p156 = scmp.eq.s32.totalorder %s15, 7
    %p157 = por %p155, %p156
    %p158 = scmp.ne.s32.totalorder %s147, %s148
    %p159 = scmp.eq.s32.totalorder %s15, 0
    %p160 = por %p158, %p159
    %p161 = scmp.ne.s32.totalorder %s147, %s148
    %p162 = scmp.eq.s32.totalorder %s16, 7
    %p163 = por %p161, %p162
    %p165 = scmp.ne.s32.totalorder %s148, %s164
    %p166 = scmp.eq.s32.totalorder %s16, 0
    %p167 = por %p165, %p166
    %p168 = scmp.le.s32.totalorder 1, %s10
    %p169 = scmp.lt.s32.totalorder %s10, 9
    %p170 = pnand %p168, %p169
    %p171 = pneg %p170
    // Predicated region
    $region9: #{decoder_forward.22} parent=5 // pred_check
      _
    $region10: #{decoder_forward.22} parent=5 // pred_check_branch
      %173 = sbr.rel (%p170) target = $region12
    $region11: #{decoder_forward.22} parent=5 // pred_region
      %s174 = ssub.s32 %s10, 1
    $region12: #{decoder_forward.22} parent=5 // pred_fallthru
      _
    %p175 = scmp.lt.s32.totalorder %s10, 8
    // Predicated region
    $region13: #{decoder_forward.22} parent=5 // pred_check
      %p176 = pneg %p175
    $region14: #{decoder_forward.22} parent=5 // pred_check_branch
      %178 = sbr.rel (%p176) target = $region16
    $region15: #{decoder_forward.22} parent=5 // pred_region
      // Predicated region
      $region17: #{decoder_forward.22} parent=15 // pred_check
        %p179 = pneg %p44
      $region18: #{decoder_forward.22} parent=15 // pred_check_branch
        %181 = sbr.rel (%p179) target = $region20
      $region19: #{decoder_forward.22} parent=15 // pred_region
        %p182 = scmp.lt.s32.totalorder %s17, 1
        %s183 = scalar_select %p182, %s17, 1
        %p184 = scmp.lt.s32.totalorder %s18, 3
        %s185 = scalar_select %p184, %s18, 3
        %s186 = smul.addr %s183, 4
        %s187 = sadd.s32 %s185, %s186
        %s188 = smul.addr %s187, 4
        %s189 = scalar_lea.vmem %s0, %s188
      $region20: #{decoder_forward.22} parent=15 // pred_fallthru
        _
      // Predicated region
      $region21: #{decoder_forward.22} parent=15 // pred_check
        %p190 = pneg %p72
      $region22: #{decoder_forward.22} parent=15 // pred_check_branch
        %192 = sbr.rel (%p190) target = $region24
      $region23: #{decoder_forward.22} parent=15 // pred_region
        %p193 = scmp.lt.s32.totalorder %s17, 1
        %s194 = scalar_select %p193, %s17, 1
        %p195 = scmp.lt.s32.totalorder %s18, 3
        %s196 = scalar_select %p195, %s18, 3
        %s197 = smul.addr %s194, 4
        %s198 = sadd.s32 %s196, %s197
        %s199 = smul.addr %s198, 4
        %s200 = scalar_lea.vmem %s1, %s199
      $region24: #{decoder_forward.22} parent=15 // pred_fallthru
        _
      // Predicated region
      $region25: #{decoder_forward.22} parent=15 // pred_check
        %p201 = pneg %p100
      $region26: #{decoder_forward.22} parent=15 // pred_check_branch
        %203 = sbr.rel (%p201) target = $region28
      $region27: #{decoder_forward.22} parent=15 // pred_region
        %p204 = scmp.lt.s32.totalorder %s17, 1
        %s205 = scalar_select %p204, %s17, 1
        %p206 = scmp.lt.s32.totalorder %s18, 3
        %s207 = scalar_select %p206, %s18, 3
        %s208 = smul.addr %s205, 4
        %s209 = sadd.s32 %s207, %s208
        %s210 = smul.addr %s209, 4
        %s211 = scalar_lea.vmem %s2, %s210
      $region28: #{decoder_forward.22} parent=15 // pred_fallthru
        _
      // Predicated region
      $region29: #{decoder_forward.22} parent=15 // pred_check
        %p212 = pneg %p126
      $region30: #{decoder_forward.22} parent=15 // pred_check_branch
        %214 = sbr.rel (%p212) target = $region32
      $region31: #{decoder_forward.22} parent=15 // pred_region
        %p215 = scmp.lt.s32.totalorder %s17, 1
        %s216 = scalar_select %p215, %s17, 1
        %s217 = scalar_lea.vmem %s3, %s216
      $region32: #{decoder_forward.22} parent=15 // pred_fallthru
        _
    $region16: #{decoder_forward.22} parent=5 // pred_fallthru
      _
    %p218 = scmp.le.s32.totalorder 1, %s10
    %p219 = scmp.lt.s32.totalorder %s10, 9
    %p220 = pnand %p218, %p219
    %p221 = pneg %p220
    // Predicated region
    $region33: #{decoder_forward.22} parent=5 // pred_check
      _
    $region34: #{decoder_forward.22} parent=5 // pred_check_branch
      %223 = sbr.rel (%p220) target = $region36
    $region35: #{decoder_forward.22} parent=5 // pred_region
      %s224 = ssub.s32 %s10, 1
      %p225 = scmp.lt.s32.totalorder %s19, 1
      %s226 = scalar_select %p225, %s19, 1
      %p227 = scmp.lt.s32.totalorder %s20, 3
      %s228 = scalar_select %p227, %s20, 3
      %s229 = smul.addr %s226, 4
      %s230 = sadd.s32 %s228, %s229
      %s231 = smul.addr %s230, 4
      %s232 = scalar_lea.vmem %s0, %s231
      %p233 = pneg %p50
      %p234 = pneg %p47
      %p235 = scmp.lt.s32.totalorder %s19, 1
      %s236 = scalar_select %p235, %s19, 1
      %p237 = scmp.lt.s32.totalorder %s20, 3
      %s238 = scalar_select %p237, %s20, 3
      %s239 = smul.addr %s236, 4
      %s240 = sadd.s32 %s238, %s239
      %s241 = smul.addr %s240, 4
      %s242 = scalar_lea.vmem %s1, %s241
      %p243 = pneg %p78
      %p244 = pneg %p75
      %p245 = scmp.lt.s32.totalorder %s19, 1
      %s246 = scalar_select %p245, %s19, 1
      %p247 = scmp.lt.s32.totalorder %s20, 3
      %s248 = scalar_select %p247, %s20, 3
      %s249 = smul.addr %s246, 4
      %s250 = sadd.s32 %s248, %s249
      %s251 = smul.addr %s250, 4
      %s252 = scalar_lea.vmem %s2, %s251
      %p253 = pneg %p106
      %p254 = pneg %p103
      %p255 = scmp.lt.s32.totalorder %s19, 1
      %s256 = scalar_select %p255, %s19, 1
      %s257 = scalar_lea.vmem %s3, %s256
      %p258 = pneg %p132
      %p259 = pneg %p129
      %p260 = pneg %p160
      %p261 = pneg %p157
      %p262 = scmp.lt.s32.totalorder %s19, 1
      %s263 = scalar_select %p262, %s19, 1
      %p264 = scmp.lt.s32.totalorder %s20, 3
      %s265 = scalar_select %p264, %s20, 3
      %s266 = smul.addr %s263, 4
      %s267 = sadd.s32 %s265, %s266
      %s268 = smul.addr %s267, 4
      %s269 = scalar_lea.vmem %s4, %s268
      %p270 = scmp.lt.s32.totalorder %s19, 1
      %s271 = scalar_select %p270, %s19, 1
      %p272 = scmp.lt.s32.totalorder %s20, 3
      %s273 = scalar_select %p272, %s20, 3
      %s274 = smul.addr %s271, 4
      %s275 = sadd.s32 %s273, %s274
      %s276 = smul.addr %s275, 4
      %s277 = scalar_lea.vmem %s0, %s276
      %p278 = scmp.lt.s32.totalorder %s19, 1
      %s279 = scalar_select %p278, %s19, 1
      %p280 = scmp.lt.s32.totalorder %s20, 3
      %s281 = scalar_select %p280, %s20, 3
      %s282 = smul.addr %s279, 4
      %s283 = sadd.s32 %s281, %s282
      %s284 = smul.addr %s283, 4
      %s285 = scalar_lea.vmem %s1, %s284
      %p286 = scmp.lt.s32.totalorder %s19, 1
      %s287 = scalar_select %p286, %s19, 1
      %p288 = scmp.lt.s32.totalorder %s20, 3
      %s289 = scalar_select %p288, %s20, 3
      %s290 = smul.addr %s287, 4
      %s291 = sadd.s32 %s289, %s290
      %s292 = smul.addr %s291, 4
      %s293 = scalar_lea.vmem %s2, %s292
      %p294 = scmp.lt.s32.totalorder %s19, 1
      %s295 = scalar_select %p294, %s19, 1
      %s296 = scalar_lea.vmem %s3, %s295
      %p297 = scmp.lt.s32.totalorder %s19, 1
      %s298 = scalar_select %p297, %s19, 1
      %p299 = scmp.lt.s32.totalorder %s20, 3
      %s300 = scalar_select %p299, %s20, 3
      %s301 = smul.addr %s298, 4
      %s302 = sadd.s32 %s300, %s301
      %s303 = smul.addr %s302, 4
      %s304 = scalar_lea.vmem %s4, %s303
      %v307 = vld [vmem:[%s277] sm:$0xf]
      %v308 = vmul.bf16 %v307, 1052065461
      %v309 = vld [vmem:[%s285] sm:$0xf]
      %v310 = vld [vmem:[%s293] sm:$0xf]
      %vm311 = vcmask 64512
      %v313 = vsel %vm311, %v308, 0
      %v316 = vsel %vm311, %v309, 0
      %318 = vmatprep.subr.bf16.mxu0 0
      %319 = vmatpush1.bf16.xpose.msra.mxu0 %v316
      %320 = vmatprep.subr.bf16.mxu0 0
      %321 = vmatpush1.bf16.xpose.msra.mxu0 0
      %322 = vmatprep.subr.bf16.mxu0 0
      %323 = vmatpush1.bf16.xpose.msra.mxu0 0
      %324 = vmatprep.subr.bf16.mxu0 0
      %325 = vmatpush1.bf16.xpose.msra.mxu0 0
      %326 = vmatprep.subr.bf16.mxu0 0
      %327 = vmatpush1.bf16.xpose.msra.mxu0 0
      %328 = vmatprep.subr.bf16.mxu0 0
      %329 = vmatpush1.bf16.xpose.msra.mxu0 0
      %330 = vmatprep.subr.bf16.mxu0 0
      %331 = vmatpush1.bf16.xpose.msra.mxu0 0
      %332 = vmatprep.subr.bf16.mxu0 0
      %333 = vmatpush1.bf16.xpose.msra.mxu0 0
      %334 = vmatprep.subr.bf16.mxu0 0
      %335 = vmatpush1.bf16.xpose.msra.mxu0 0
      %336 = vmatprep.subr.bf16.mxu0 0
      %337 = vmatpush1.bf16.xpose.msra.mxu0 0
      %338 = vmatprep.subr.bf16.mxu0 0
      %339 = vmatpush1.bf16.xpose.msra.mxu0 0
      %340 = vmatprep.subr.bf16.mxu0 0
      %341 = vmatpush1.bf16.xpose.msra.mxu0 0
      %342 = vmatprep.subr.bf16.mxu0 0
      %343 = vmatpush1.bf16.xpose.msra.mxu0 0
      %344 = vmatprep.subr.bf16.mxu0 0
      %345 = vmatpush1.bf16.xpose.msra.mxu0 0
      %346 = vmatprep.subr.bf16.mxu0 0
      %347 = vmatpush1.bf16.xpose.msra.mxu0 0
      %348 = vmatprep.subr.bf16.mxu0 0
      %349 = vmatpush1.bf16.xpose.msra.mxu0 0
      %350 = vmatprep.mubr.bf16.mxu0 0
      %351 = vmatmul.mubr.bf16.gmra.mrb[0].mxu0 %v313
      %v352 = vpop.f32.mrb[0].mxu0
      %v353 = vadd.f32 0.0, %v352
      %v354 = vpop.f32.mrb[0].mxu0
      %v355 = vpop.f32.mrb[0].mxu0
      %v356 = vpop.f32.mrb[0].mxu0
      %357 = vdwg.mxu0
      %v358 = vld [vmem:[%s296] sm:$0x1]
      %vm359 = vcmp.gt.s32.totalorder %v358, 0
      %v360 = vsel %vm359, 1, 0
      %v361 = vlaneseq
      %v362 = vshrl.u32 %v361, 7
      %v363 = vsub.s32 0, %v362
      %v364 = vrot.slane %v360, %v363
      %vm365 = vcmp.eq.s32.totalorder %v364, 1
      %v366 = vsel %vm365, %v353, -1e+09
      %v367 = vsel %vm311, %v366, -inf
      %368 = vmax.xlane.f32.xlu0 %v367
      %v369 = vpop.xlane.xlu0 %368
      %v370 = vsub.f32 %v366, %v369
      %v371 = vmul.f32 %v370, 1.442695
      %v372 = vpow.pop %v371
      %v373 = vsel %vm311, %v372, 0.0
      %374 = vadd.xlane.f32.xlu0 %v373
      %v375 = vpop.xlane.xlu0 %374
      %v376 = vrcp.pop %v375
      %v377 = vmul.f32 %v372, %v376
      %v378 = vpack.c.bf16 %v377, %v377
      %v380 = vsel %vm311, %v378, 0
      %vm382 = vcmask 1043456
      %v384 = vsel %vm382, %v310, 0
      %386 = vmatprep.subr.bf16.mxu0 0
      %387 = vmatpush1.bf16.msra.mxu0 %v384
      %388 = vmatprep.subr.bf16.mxu0 0
      %389 = vmatpush1.bf16.msra.mxu0 0
      %390 = vmatprep.subr.bf16.mxu0 0
      %391 = vmatpush1.bf16.msra.mxu0 0
      %392 = vmatprep.subr.bf16.mxu0 0
      %393 = vmatpush1.bf16.msra.mxu0 0
      %394 = vmatprep.subr.bf16.mxu0 0
      %395 = vmatpush1.bf16.msra.mxu0 0
      %396 = vmatprep.subr.bf16.mxu0 0
      %397 = vmatpush1.bf16.msra.mxu0 0
      %398 = vmatprep.subr.bf16.mxu0 0
      %399 = vmatpush1.bf16.msra.mxu0 0
      %400 = vmatprep.subr.bf16.mxu0 0
      %401 = vmatpush1.bf16.msra.mxu0 0
      %402 = vmatprep.subr.bf16.mxu0 0
      %403 = vmatpush1.bf16.msra.mxu0 0
      %404 = vmatprep.subr.bf16.mxu0 0
      %405 = vmatpush1.bf16.msra.mxu0 0
      %406 = vmatprep.subr.bf16.mxu0 0
      %407 = vmatpush1.bf16.msra.mxu0 0
      %408 = vmatprep.subr.bf16.mxu0 0
      %409 = vmatpush1.bf16.msra.mxu0 0
      %410 = vmatprep.subr.bf16.mxu0 0
      %411 = vmatpush1.bf16.msra.mxu0 0
      %412 = vmatprep.subr.bf16.mxu0 0
      %413 = vmatpush1.bf16.msra.mxu0 0
      %414 = vmatprep.subr.bf16.mxu0 0
      %415 = vmatpush1.bf16.msra.mxu0 0
      %416 = vmatprep.subr.bf16.mxu0 0
      %417 = vmatpush1.bf16.msra.mxu0 0
      %418 = vmatprep.mubr.bf16.mxu0 0
      %419 = vmatmul.mubr.bf16.gmra.mrb[0].mxu0 %v380
      %v420 = vpop.f32.mrb[0].mxu0
      %v421 = vadd.f32 0.0, %v420
      %v422 = vpop.f32.mrb[0].mxu0
      %v423 = vpop.f32.mrb[0].mxu0
      %v424 = vpop.f32.mrb[0].mxu0
      %425 = vdwg.mxu0
      %v426 = vpack.c.bf16 %v421, %v421
      %vm427 = vcmask 60416
      %428 = vst.msk [vmem:[%s304] sm:$0xf] %vm427, %v426
      %p429 = scmp.lt.s32.totalorder %s19, 1
      %s430 = scalar_select %p429, %s19, 1
      %p431 = scmp.lt.s32.totalorder %s20, 3
      %s432 = scalar_select %p431, %s20, 3
      %s433 = smul.addr %s430, 4
      %s434 = sadd.s32 %s432, %s433
      %s435 = smul.addr %s434, 4
      %s436 = scalar_lea.vmem %s4, %s435
      // Predicated region
      $region37: #{decoder_forward.22} parent=35 // pred_check
        %p437 = pneg %p157
      $region38: #{decoder_forward.22} parent=35 // pred_check_branch
        %439 = sbr.rel (%p437) target = $region40
      $region39: #{decoder_forward.22} parent=35 // pred_region
        _
      $region40: #{decoder_forward.22} parent=35 // pred_fallthru
        _
    $region36: #{decoder_forward.22} parent=5 // pred_fallthru
      _
    %p440 = scmp.le.s32.totalorder 2, %s10
    // Predicated region
    $region41: #{decoder_forward.22} parent=5 // pred_check
      %p441 = pneg %p440
    $region42: #{decoder_forward.22} parent=5 // pred_check_branch
      %443 = sbr.rel (%p441) target = $region44
    $region43: #{decoder_forward.22} parent=5 // pred_region
      %s444 = ssub.s32 %s10, 2
      // Predicated region
      $region45: #{decoder_forward.22} parent=43 // pred_check
        %p445 = pneg %p163
      $region46: #{decoder_forward.22} parent=43 // pred_check_branch
        %447 = sbr.rel (%p445) target = $region48
      $region47: #{decoder_forward.22} parent=43 // pred_region
        %p448 = scmp.lt.s32.totalorder %s21, 1
        %s449 = scalar_select %p448, %s21, 1
        %p450 = scmp.lt.s32.totalorder %s22, 3
        %s451 = scalar_select %p450, %s22, 3
        %s452 = smul.addr %s449, 4
        %s453 = sadd.s32 %s451, %s452
        %s454 = smul.addr %s453, 4
        %s455 = scalar_lea.vmem %s4, %s454
      $region48: #{decoder_forward.22} parent=43 // pred_fallthru
        _
    $region44: #{decoder_forward.22} parent=5 // pred_fallthru
      _
  $region6: #{decoder_forward.22} parent=0 // loop_footer
    %s14 = sadd.s32 1, %s10
  $region7: #{decoder_forward.22} parent=0 // loop_footer_branch
    %9 = sbr.rel target = $region3
  $region8: #{decoder_forward.22} parent=0 // loop_exit
    _

// kernel: decoder_forward.33
$region0: #{decoder_forward.33}
  #allocation0 [shape = 'u32[]', space=smem, size = 0x4, offset = 0x4, fixed_abs, tag = 'smem constant byte address 0x4 - core index']
  #allocation1 [shape = 'u32[144,128]{1,0:T(1,128)}', space=vmem, size = 0x12000, scoped, tag = 'internal scratch']
  %s0 = inlined_call_operand.vmem [shape: bf16[16,32], index: 0, kind: input, shape index: {}]
  %s1 = inlined_call_operand.vmem [shape: f32[1,32], index: 1, kind: input, shape index: {}]
  %s2 = inlined_call_operand.vmem [shape: f32[1,32], index: 2, kind: input, shape index: {}]
  %s3 = inlined_call_operand.hbm [shape: f32[16,32], index: 3, kind: output, shape index: {}]
  %s4 = sld [smem:[#allocation0]]
  $region22: #{decoder_forward.33} parent=0
    _
  %s6 = ssub.s32 1, %s4
  %s7 = scalar_select 0, %s6, %s4
  $region1: #{decoder_forward.33} parent=0
    #allocation2 [shape = 'u8[8192]{0}', space=vmem, size = 0x2000, scoped, tag = 'output window, operand 0, single buffered']
    #allocation3 [shape = 's32[1]{0}', space=sflag, size = 0x4, scoped, tag = 'scoped memory for decoder_forward.33']
    %8 = vsyncpa [#allocation3], 0
    // Predicated region
    $region2: #{decoder_forward.33} parent=1 // pred_check
      _
    $region3: #{decoder_forward.33} parent=1 // pred_check_branch
      %10 = sbr.rel (0) target = $region5
    $region4: #{decoder_forward.33} parent=1 // pred_region
      _
    $region5: #{decoder_forward.33} parent=1 // pred_fallthru
      _
    // Predicated region
    $region6: #{decoder_forward.33} parent=1 // pred_check
      _
    $region7: #{decoder_forward.33} parent=1 // pred_check_branch
      %12 = sbr.rel (0) target = $region9
    $region8: #{decoder_forward.33} parent=1 // pred_region
      _
    $region9: #{decoder_forward.33} parent=1 // pred_fallthru
      _
    // Predicated region
    $region10: #{decoder_forward.33} parent=1 // pred_check
      _
    $region11: #{decoder_forward.33} parent=1 // pred_check_branch
      %14 = sbr.rel (0) target = $region13
    $region12: #{decoder_forward.33} parent=1 // pred_region
      _
    $region13: #{decoder_forward.33} parent=1 // pred_fallthru
      _
    %v15 = vld [vmem:[%s0] sm:$0xf]
    %v16 = vld [vmem:[%s0 + $0x4] sm:$0xf]
    %v17 = vunpack.c.l.bf16 %v15
    %v18 = vunpack.c.l.bf16 %v16
    %vm19 = vcmask 261120
    %v20 = vsel %vm19, %v17, 0.0
    %21 = vadd.xlane.f32.xlu0 %v20
    %v22 = vpop.xlane.xlu0 %21
    %v23 = vsel %vm19, %v18, 0.0
    %24 = vadd.xlane.f32.xlu0 %v23
    %v25 = vpop.xlane.xlu0 %24
    %v26 = vrcp.pop 32.0
    %v27 = vmul.f32 %v22, %v26
    %v28 = vmul.f32 %v25, %v26
    %v29 = vsub.f32 %v17, %v27
    %v30 = vsub.f32 %v18, %v28
    %v31 = vmul.f32 %v29, %v29
    %v32 = vmul.f32 %v30, %v30
    %v33 = vsel %vm19, %v31, 0.0
    %34 = vadd.xlane.f32.xlu0 %v33
    %v35 = vpop.xlane.xlu0 %34
    %v36 = vsel %vm19, %v32, 0.0
    %37 = vadd.xlane.f32.xlu0 %v36
    %v38 = vpop.xlane.xlu0 %37
    %v39 = vmul.f32 %v35, %v26
    %v40 = vmul.f32 %v38, %v26
    %v41 = vadd.f32 %v39, 1e-05
    %v42 = vadd.f32 %v40, 1e-05
    %v43 = vrsqrt.pop %v41
    %v44 = vrsqrt.pop %v42
    %v45 = vmul.f32 %v29, %v43
    %v46 = vmul.f32 %v30, %v44
    %v47 = vld [vmem:[%s1] sm:$0x1]
    %v49 = vlaneseq
    %v50 = vshrl.u32 %v49, 7
    %v51 = vsub.s32 0, %v50
    %v52 = vrot.slane %v47, %v51
    %v54 = vmul.f32 %v45, %v52
    %v55 = vmul.f32 %v46, %v52
    %v56 = vld [vmem:[%s2] sm:$0x1]
    %v58 = vlaneseq
    %v59 = vshrl.u32 %v58, 7
    %v60 = vsub.s32 0, %v59
    %v61 = vrot.slane %v56, %v60
    %v63 = vadd.f32 %v54, %v61
    %v64 = vadd.f32 %v55, %v61
    %65 = vst.msk [vmem:[#allocation2] sm:$0xff] %vm19, %v63
    %66 = vst.msk [vmem:[#allocation2 + $0x8] sm:$0xff] %vm19, %v64
    // Predicated region
    $region14: #{decoder_forward.33} parent=1 // pred_check
      _
    $region15: #{decoder_forward.33} parent=1 // pred_check_branch
      %68 = sbr.rel (0) target = $region17
    $region16: #{decoder_forward.33} parent=1 // pred_region
      %s70 = ssub.s32 256, 256
      %71 = vsyncadd [#allocation3], %s70
      %s72 = sshll.u32 [#allocation2], 4
      %s73 = int_to_ptr.vmem [resolvable:$true] %s72
      %78 = dma.vmem_to_hbm [thread:$0]  %s73, 256, %s3, [#allocation3], 128, 128, 8
    $region17: #{decoder_forward.33} parent=1 // pred_fallthru
      _
    // Predicated region
    $region18: #{decoder_forward.33} parent=1 // pred_check
      _
    $region19: #{decoder_forward.33} parent=1 // pred_check_branch
      %80 = sbr.rel (0) target = $region21
    $region20: #{decoder_forward.33} parent=1 // pred_region
      %81 = dma.done [#allocation3], 256
    $region21: #{decoder_forward.33} parent=1 // pred_fallthru
      _
    %82 = vsyncpa [#allocation3], 1

// kernel: decoder_forward.24
$region0: #{decoder_forward.24}
  #allocation0 [shape = 'u32[]', space=smem, size = 0x4, offset = 0x4, fixed_abs, tag = 'smem constant byte address 0x4 - core index']
  #allocation1 [shape = 'u32[144,128]{1,0:T(1,128)}', space=vmem, size = 0x12000, scoped, tag = 'internal scratch']
  #allocation2 [shape = 'f32[16,32]{1,0:T(8,128)}', space=vmem, size = 0x2000, scoped, tag = 'scratch operand']
  #allocation3 [shape = 'bf16[16,32]{1,0:T(16,128)(2,1)}', space=vmem, size = 0x1000, scoped, tag = 'scratch operand']
  %s0 = inlined_call_operand.vmem [shape: bf16[16,32], index: 0, kind: input, shape index: {}]
  %s1 = inlined_call_operand.vmem [shape: f32[1,32], index: 1, kind: input, shape index: {}]
  %s2 = inlined_call_operand.vmem [shape: f32[1,32], index: 2, kind: input, shape index: {}]
  %s3 = inlined_call_operand.vmem [shape: bf16[32,64], index: 3, kind: input, shape index: {}]
  %s4 = inlined_call_operand.vmem [shape: f32[1,64], index: 4, kind: input, shape index: {}]
  %s5 = inlined_call_operand.vmem [shape: bf16[64,32], index: 5, kind: input, shape index: {}]
  %s6 = inlined_call_operand.vmem [shape: f32[1,32], index: 6, kind: input, shape index: {}]
  %s7 = inlined_call_operand.vmem [shape: bf16[16,32], index: 7, kind: output, shape index: {}]
  %s8 = sld [smem:[#allocation0]]
  $region46: #{decoder_forward.24} parent=0
    _
  %s10 = ssub.s32 1, %s8
  %s11 = scalar_select 0, %s10, %s8
  // Predicated region
  $region2: #{decoder_forward.24} parent=0 // pred_check
    _
  $region3: #{decoder_forward.24} parent=0 // pred_check_branch
    %13 = sbr.rel (0) target = $region5
  $region4: #{decoder_forward.24} parent=0 // pred_region
    _
  $region5: #{decoder_forward.24} parent=0 // pred_fallthru
    _
  // Predicated region
  $region6: #{decoder_forward.24} parent=0 // pred_check
    _
  $region7: #{decoder_forward.24} parent=0 // pred_check_branch
    %15 = sbr.rel (0) target = $region9
  $region8: #{decoder_forward.24} parent=0 // pred_region
    _
  $region9: #{decoder_forward.24} parent=0 // pred_fallthru
    _
  // Predicated region
  $region10: #{decoder_forward.24} parent=0 // pred_check
    _
  $region11: #{decoder_forward.24} parent=0 // pred_check_branch
    %17 = sbr.rel (0) target = $region13
  $region12: #{decoder_forward.24} parent=0 // pred_region
    _
  $region13: #{decoder_forward.24} parent=0 // pred_fallthru
    _
  // Predicated region
  $region14: #{decoder_forward.24} parent=0 // pred_check
    _
  $region15: #{decoder_forward.24} parent=0 // pred_check_branch
    %19 = sbr.rel (0) target = $region17
  $region16: #{decoder_forward.24} parent=0 // pred_region
    _
  $region17: #{decoder_forward.24} parent=0 // pred_fallthru
    _
  // Predicated region
  $region18: #{decoder_forward.24} parent=0 // pred_check
    _
  $region19: #{decoder_forward.24} parent=0 // pred_check_branch
    %21 = sbr.rel (0) target = $region21
  $region20: #{decoder_forward.24} parent=0 // pred_region
    _
  $region21: #{decoder_forward.24} parent=0 // pred_fallthru
    _
  // Predicated region
  $region22: #{decoder_forward.24} parent=0 // pred_check
    _
  $region23: #{decoder_forward.24} parent=0 // pred_check_branch
    %23 = sbr.rel (0) target = $region25
  $region24: #{decoder_forward.24} parent=0 // pred_region
    _
  $region25: #{decoder_forward.24} parent=0 // pred_fallthru
    _
  // Predicated region
  $region26: #{decoder_forward.24} parent=0 // pred_check
    _
  $region27: #{decoder_forward.24} parent=0 // pred_check_branch
    %25 = sbr.rel (0) target = $region29
  $region28: #{decoder_forward.24} parent=0 // pred_region
    _
  $region29: #{decoder_forward.24} parent=0 // pred_fallthru
    _
  %p27 = scmp.eq.s32.totalorder 0, 0
  // Predicated region
  $region30: #{decoder_forward.24} parent=0 // pred_check
    %p28 = pneg %p27
  $region31: #{decoder_forward.24} parent=0 // pred_check_branch
    %30 = sbr.rel (%p28) target = $region33
  $region32: #{decoder_forward.24} parent=0 // pred_region
    %v31 = vld [vmem:[%s0] sm:$0xf]
    %v32 = vld [vmem:[%s0 + $0x4] sm:$0xf]
    %v33 = vunpack.c.l.bf16 %v31
    %v34 = vunpack.c.l.bf16 %v32
    %vm35 = vcmask 261120
    %v36 = vsel %vm35, %v33, 0.0
    %37 = vadd.xlane.f32.xlu0 %v36
    %v38 = vpop.xlane.xlu0 %37
    %v39 = vsel %vm35, %v34, 0.0
    %40 = vadd.xlane.f32.xlu0 %v39
    %v41 = vpop.xlane.xlu0 %40
    %v42 = vrcp.pop 32.0
    %v43 = vmul.f32 %v38, %v42
    %v44 = vmul.f32 %v41, %v42
    %v45 = vsub.f32 %v33, %v43
    %v46 = vsub.f32 %v34, %v44
    %v47 = vmul.f32 %v45, %v45
    %v48 = vmul.f32 %v46, %v46
    %v49 = vsel %vm35, %v47, 0.0
    %50 = vadd.xlane.f32.xlu0 %v49
    %v51 = vpop.xlane.xlu0 %50
    %v52 = vsel %vm35, %v48, 0.0
    %53 = vadd.xlane.f32.xlu0 %v52
    %v54 = vpop.xlane.xlu0 %53
    %v55 = vmul.f32 %v51, %v42
    %v56 = vmul.f32 %v54, %v42
    %v57 = vadd.f32 %v55, 1e-05
    %v58 = vadd.f32 %v56, 1e-05
    %v59 = vrsqrt.pop %v57
    %v60 = vrsqrt.pop %v58
    %v61 = vmul.f32 %v45, %v59
    %v62 = vmul.f32 %v46, %v60
    %v63 = vld [vmem:[%s1] sm:$0x1]
    %v65 = vlaneseq
    %v66 = vshrl.u32 %v65, 7
    %v67 = vsub.s32 0, %v66
    %v68 = vrot.slane %v63, %v67
    %v70 = vmul.f32 %v61, %v68
    %v71 = vmul.f32 %v62, %v68
    %v72 = vld [vmem:[%s2] sm:$0x1]
    %v74 = vlaneseq
    %v75 = vshrl.u32 %v74, 7
    %v76 = vsub.s32 0, %v75
    %v77 = vrot.slane %v72, %v76
    %v79 = vadd.f32 %v70, %v77
    %v80 = vadd.f32 %v71, %v77
    %v81 = vpack.c.bf16 %v80, %v79
    %82 = vst.msk [vmem:[#allocation3] sm:$0xff] %vm35, %v81
    %83 = vst.msk [vmem:[#allocation2] sm:$0xff] %vm35, 0.0
    %84 = vst.msk [vmem:[#allocation2 + $0x8] sm:$0xff] %vm35, 0.0
  $region33: #{decoder_forward.24} parent=0 // pred_fallthru
    _
  %v85 = vld [vmem:[#allocation3] sm:$0xff]
  %v86 = vld [vmem:[%s3] sm:$0xf]
  %v87 = vld [vmem:[%s3 + $0x4] sm:$0xf]
  %v88 = vld [vmem:[%s3 + $0x8] sm:$0xf]
  %v89 = vld [vmem:[%s3 + $0xc] sm:$0xf]
  %v90 = vld [vmem:[%s4] sm:$0x1]
  %v92 = vlaneseq
  %v93 = vshrl.u32 %v92, 7
  %v94 = vsub.s32 0, %v93
  %v95 = vrot.slane %v90, %v94
  %v101 = vunpack.c.l.b16 %v86
  %v102 = vunpack.c.l.b16 %v87
  %v103 = vunpack.c.l.b16 %v88
  %v104 = vunpack.c.l.b16 %v89
  %v105 = vpack.c.b16 %v102, %v101
  %v106 = vpack.c.b16 %v104, %v103
  %vm109 = vcmask 261120
  %v111 = vsel %vm109, %v85, 0
  %113 = vmatprep.subr.bf16.mxu0 0
  %114 = vmatpush1.bf16.msra.mxu0 %v105
  %115 = vmatprep.subr.bf16.mxu0 0
  %116 = vmatpush1.bf16.msra.mxu0 %v106
  %117 = vmatprep.subr.bf16.mxu0 0
  %118 = vmatpush1.bf16.msra.mxu0 0
  %119 = vmatprep.subr.bf16.mxu0 0
  %120 = vmatpush1.bf16.msra.mxu0 0
  %121 = vmatprep.subr.bf16.mxu0 0
  %122 = vmatpush1.bf16.msra.mxu0 0
  %123 = vmatprep.subr.bf16.mxu0 0
  %124 = vmatpush1.bf16.msra.mxu0 0
  %125 = vmatprep.subr.bf16.mxu0 0
  %126 = vmatpush1.bf16.msra.mxu0 0
  %127 = vmatprep.subr.bf16.mxu0 0
  %128 = vmatpush1.bf16.msra.mxu0 0
  %129 = vmatprep.subr.bf16.mxu0 0
  %130 = vmatpush1.bf16.msra.mxu0 0
  %131 = vmatprep.subr.bf16.mxu0 0
  %132 = vmatpush1.bf16.msra.mxu0 0
  %133 = vmatprep.subr.bf16.mxu0 0
  %134 = vmatpush1.bf16.msra.mxu0 0
  %135 = vmatprep.subr.bf16.mxu0 0
  %136 = vmatpush1.bf16.msra.mxu0 0
  %137 = vmatprep.subr.bf16.mxu0 0
  %138 = vmatpush1.bf16.msra.mxu0 0
  %139 = vmatprep.subr.bf16.mxu0 0
  %140 = vmatpush1.bf16.msra.mxu0 0
  %141 = vmatprep.subr.bf16.mxu0 0
  %142 = vmatpush1.bf16.msra.mxu0 0
  %143 = vmatprep.subr.bf16.mxu0 0
  %144 = vmatpush1.bf16.msra.mxu0 0
  %145 = vmatprep.mubr.bf16.mxu0 0
  %146 = vmatmul.mubr.bf16.gmra.mrb[0].mxu0 %v111
  %v147 = vpop.f32.mrb[0].mxu0
  %v148 = vadd.f32 %v95, %v147
  %v149 = vpop.f32.mrb[0].mxu0
  %v150 = vpop.f32.mrb[0].mxu0
  %v151 = vadd.f32 %v95, %v150
  %v152 = vpop.f32.mrb[0].mxu0
  %153 = vdwg.mxu0
  %v154 = vmax.f32 %v148, 0.0
  %v155 = vmax.f32 %v151, 0.0
  %v156 = vld [vmem:[#allocation2] sm:$0xff]
  %v157 = vld [vmem:[#allocation2 + $0x8] sm:$0xff]
  %v158 = vpack.c.bf16 %v155, %v154
  %v159 = vld [vmem:[%s5] sm:$0xf]
  %v160 = vld [vmem:[%s5 + $0x4] sm:$0xf]
  %v161 = vld [vmem:[%s5 + $0x8] sm:$0xf]
  %v162 = vld [vmem:[%s5 + $0xc] sm:$0xf]
  %v163 = vld [vmem:[%s5 + $0x10] sm:$0xf]
  %v164 = vld [vmem:[%s5 + $0x14] sm:$0xf]
  %v165 = vld [vmem:[%s5 + $0x18] sm:$0xf]
  %v166 = vld [vmem:[%s5 + $0x1c] sm:$0xf]
  %v175 = vunpack.c.l.b16 %v159
  %v176 = vunpack.c.l.b16 %v160
  %v177 = vunpack.c.l.b16 %v161
  %v178 = vunpack.c.l.b16 %v162
  %v179 = vunpack.c.l.b16 %v163
  %v180 = vunpack.c.l.b16 %v164
  %v181 = vunpack.c.l.b16 %v165
  %v182 = vunpack.c.l.b16 %v166
  %v183 = vpack.c.b16 %v176, %v175
  %v184 = vpack.c.b16 %v178, %v177
  %v185 = vpack.c.b16 %v180, %v179
  %v186 = vpack.c.b16 %v182, %v181
  %vm191 = vcmask 523264
  %v193 = vsel %vm191, %v158, 0
  %195 = vmatprep.subr.bf16.mxu0 0
  %196 = vmatpush1.bf16.msra.mxu0 %v183
  %197 = vmatprep.subr.bf16.mxu0 0
  %198 = vmatpush1.bf16.msra.mxu0 %v184
  %199 = vmatprep.subr.bf16.mxu0 0
  %200 = vmatpush1.bf16.msra.mxu0 %v185
  %201 = vmatprep.subr.bf16.mxu0 0
  %202 = vmatpush1.bf16.msra.mxu0 %v186
  %203 = vmatprep.subr.bf16.mxu0 0
  %204 = vmatpush1.bf16.msra.mxu0 0
  %205 = vmatprep.subr.bf16.mxu0 0
  %206 = vmatpush1.bf16.msra.mxu0 0
  %207 = vmatprep.subr.bf16.mxu0 0
  %208 = vmatpush1.bf16.msra.mxu0 0
  %209 = vmatprep.subr.bf16.mxu0 0
  %210 = vmatpush1.bf16.msra.mxu0 0
  %211 = vmatprep.subr.bf16.mxu0 0
  %212 = vmatpush1.bf16.msra.mxu0 0
  %213 = vmatprep.subr.bf16.mxu0 0
  %214 = vmatpush1.bf16.msra.mxu0 0
  %215 = vmatprep.subr.bf16.mxu0 0
  %216 = vmatpush1.bf16.msra.mxu0 0
  %217 = vmatprep.subr.bf16.mxu0 0
  %218 = vmatpush1.bf16.msra.mxu0 0
  %219 = vmatprep.subr.bf16.mxu0 0
  %220 = vmatpush1.bf16.msra.mxu0 0
  %221 = vmatprep.subr.bf16.mxu0 0
  %222 = vmatpush1.bf16.msra.mxu0 0
  %223 = vmatprep.subr.bf16.mxu0 0
  %224 = vmatpush1.bf16.msra.mxu0 0
  %225 = vmatprep.subr.bf16.mxu0 0
  %226 = vmatpush1.bf16.msra.mxu0 0
  %227 = vmatprep.mubr.bf16.mxu0 0
  %228 = vmatmul.mubr.bf16.gmra.mrb[0].mxu0 %v193
  %v229 = vpop.f32.mrb[0].mxu0
  %v230 = vadd.f32 0.0, %v229
  %v231 = vpop.f32.mrb[0].mxu0
  %v232 = vpop.f32.mrb[0].mxu0
  %v233 = vadd.f32 0.0, %v232
  %v234 = vpop.f32.mrb[0].mxu0
  %235 = vdwg.mxu0
  %v236 = vadd.f32 %v156, %v230
  %v237 = vadd.f32 %v157, %v233
  %238 = vst.msk [vmem:[#allocation2] sm:$0xff] %vm109, %v236
  %239 = vst.msk [vmem:[#allocation2 + $0x8] sm:$0xff] %vm109, %v237
  // Predicated region
  $region34: #{decoder_forward.24} parent=0 // pred_check
    %p240 = pneg %p27
  $region35: #{decoder_forward.24} parent=0 // pred_check_branch
    %242 = sbr.rel (%p240) target = $region37
  $region36: #{decoder_forward.24} parent=0 // pred_region
    %v243 = vld [vmem:[%s0] sm:$0xf]
    %v244 = vld [vmem:[%s0 + $0x4] sm:$0xf]
    %v245 = vunpack.c.l.bf16 %v243
    %v246 = vunpack.c.l.bf16 %v244
    %v247 = vld [vmem:[#allocation2] sm:$0xff]
    %v248 = vld [vmem:[#allocation2 + $0x8] sm:$0xff]
    %v249 = vadd.f32 %v245, %v247
    %v250 = vadd.f32 %v246, %v248
    %v251 = vld [vmem:[%s6] sm:$0x1]
    %v253 = vlaneseq
    %v254 = vshrl.u32 %v253, 7
    %v255 = vsub.s32 0, %v254
    %v256 = vrot.slane %v251, %v255
    %v258 = vadd.f32 %v249, %v256
    %v259 = vadd.f32 %v250, %v256
    %v260 = vpack.c.bf16 %v259, %v258
    %v262 = vunpack.c.l.b16 %v260
    %v263 = vunpack.c.h.b16 %v260
    %v264 = vpack.c.b16 %v262, %v262
    %v265 = vpack.c.b16 %v263, %v263
    %vm268 = vcmask 257024
    %269 = vst.msk [vmem:[%s7] sm:$0xf] %vm268, %v264
    %270 = vst.msk [vmem:[%s7 + $0x4] sm:$0xf] %vm268, %v265
  $region37: #{decoder_forward.24} parent=0 // pred_fallthru
    _
  // Predicated region
  $region38: #{decoder_forward.24} parent=0 // pred_check
    _
  $region39: #{decoder_forward.24} parent=0 // pred_check_branch
    %272 = sbr.rel (0) target = $region41
  $region40: #{decoder_forward.24} parent=0 // pred_region
    _
  $region41: #{decoder_forward.24} parent=0 // pred_fallthru
    _
  // Predicated region
  $region42: #{decoder_forward.24} parent=0 // pred_check
    _
  $region43: #{decoder_forward.24} parent=0 // pred_check_branch
    %274 = sbr.rel (0) target = $region45
  $region44: #{decoder_forward.24} parent=0 // pred_region
    _
  $region45: #{decoder_forward.24} parent=0 // pred_fallthru
    _

</llo_original>
